<compile_context>
chip_gen: v7x
topology: tpu7x:2x2x1
jax: 0.10.0
libtpu: 0.0.40
codegen_flags: <defaults>
</compile_context>

<pallas_src>
import functools

import jax
import jax.numpy as jnp
from jax import lax
from jax.experimental import pallas as pl
from jax.experimental.pallas import tpu as pltpu

EPS = 1e-5       # nn.BatchNorm2d default eps
LANE = 128       # channel padding granularity (lane width)
TM = 512         # row tile for the elementwise / 1x1-conv kernels


# ------------------------------- helpers ----------------------------------- #
def _round_up(x, m):
    return (x + m - 1) // m * m


def _pact(z, alpha):
    """PACT forward: relu(0.5*(|z| - |z - alpha| + alpha)) == clamp(z, 0, alpha)."""
    return jnp.maximum(0.5 * (jnp.abs(z) - jnp.abs(z - alpha) + alpha), 0.0)


# ------------------------------ Pallas kernels ------------------------------ #
def _conv3x3_stats_kernel(x0_ref, x1_ref, x2_ref, w_ref, y_ref, st_ref, *,
                          stride, wout):
    """One output row (all batch images): y = conv3x3(x) plus per-row partial
    BatchNorm statistics (sum, sum of squares) over the N*Wout samples."""
    n, _, wp, cp = x0_ref.shape          # block: (N, 1, Wpad, Cpad)
    opad = w_ref.shape[-1]
    acc = jnp.zeros((n * wout, opad), jnp.float32)
    rows = (x0_ref, x1_ref, x2_ref)
    for kh in range(3):
        slab = rows[kh][...].reshape(n, wp, cp)          # padded input row h*s+kh
        for kw in range(3):
            if stride == 1:
                lhs = slab[:, kw:kw + wout, :]
            else:
                lhs = lax.slice(slab, (0, kw, 0),
                                (n, kw + stride * (wout - 1) + 1, cp),
                                (1, stride, 1))
            acc = acc + jnp.dot(lhs.reshape(n * wout, cp),
                                w_ref[kh * 3 + kw],
                                preferred_element_type=jnp.float32)
    y_ref[...] = acc.reshape(n, 1, wout, opad)
    ssum = jnp.sum(acc, axis=0, keepdims=True)
    ssq = jnp.sum(acc * acc, axis=0, keepdims=True)
    st_ref[...] = jnp.concatenate([ssum, ssq], axis=0).reshape(1, 2, opad)


def _matmul_stats_kernel(x_ref, w_ref, y_ref, st_ref):
    """Row-tiled 1x1 conv (projection shortcut): y = x @ w, plus partial stats."""
    acc = jnp.dot(x_ref[...], w_ref[...], preferred_element_type=jnp.float32)
    y_ref[...] = acc
    ssum = jnp.sum(acc, axis=0, keepdims=True)
    ssq = jnp.sum(acc * acc, axis=0, keepdims=True)
    st_ref[...] = jnp.concatenate([ssum, ssq], axis=0).reshape(1, 2, acc.shape[-1])


def _bn_pact_kernel(y_ref, s_ref, b_ref, a_ref, o_ref):
    """out = PACT(y * scale + shift)  (BN apply, pass 2)."""
    z = y_ref[...] * s_ref[...] + b_ref[...]
    o_ref[...] = _pact(z, a_ref[0, 0]).astype(o_ref.dtype)


def _bn_add_pact_kernel(y_ref, sc_ref, s2_ref, b2_ref, ssc_ref, bsc_ref,
                        a_ref, o_ref):
    """out = PACT(y*s2 + b2 + sc*ssc + bsc)  (BN apply + residual add)."""
    z = (y_ref[...] * s2_ref[...] + b2_ref[...]
         + sc_ref[...] * ssc_ref[...] + bsc_ref[...])
    o_ref[...] = _pact(z, a_ref[0, 0]).astype(o_ref.dtype)


# ------------------------------ kernel wrappers ----------------------------- #
def _conv3x3_stats(xpad, w9, stride, hout, wout):
    """xpad: (N, H+2, W+2, Cpad) bf16; w9: (9, Cpad, Opad) bf16."""
    n, _, wp, cp = xpad.shape
    opad = w9.shape[-1]
    kern = functools.partial(_conv3x3_stats_kernel, stride=stride, wout=wout)
    row_specs = [
        pl.BlockSpec((n, 1, wp, cp),
                     lambda h, kh=kh: (0, h * stride + kh, 0, 0))
        for kh in range(3)
    ]
    y, st = pl.pallas_call(
        kern,
        grid=(hout,),
        in_specs=row_specs + [pl.BlockSpec((9, cp, opad), lambda h: (0, 0, 0))],
        out_specs=[pl.BlockSpec((n, 1, wout, opad), lambda h: (0, h, 0, 0)),
                   pl.BlockSpec((1, 2, opad), lambda h: (h, 0, 0))],
        out_shape=[jax.ShapeDtypeStruct((n, hout, wout, opad), jnp.float32),
                   jax.ShapeDtypeStruct((hout, 2, opad), jnp.float32)],
        compiler_params=pltpu.CompilerParams(
            dimension_semantics=("parallel",),
            vmem_limit_bytes=32 * 1024 * 1024),
    )(xpad, xpad, xpad, w9)
    return y, st


def _matmul_stats(x, wmat):
    m, cp = x.shape
    opad = wmat.shape[-1]
    mpad = _round_up(m, TM)
    if mpad != m:
        x = jnp.pad(x, ((0, mpad - m), (0, 0)))
    nt = mpad // TM
    y, st = pl.pallas_call(
        _matmul_stats_kernel,
        grid=(nt,),
        in_specs=[pl.BlockSpec((TM, cp), lambda i: (i, 0)),
                  pl.BlockSpec((cp, opad), lambda i: (0, 0))],
        out_specs=[pl.BlockSpec((TM, opad), lambda i: (i, 0)),
                   pl.BlockSpec((1, 2, opad), lambda i: (i, 0, 0))],
        out_shape=[jax.ShapeDtypeStruct((mpad, opad), jnp.float32),
                   jax.ShapeDtypeStruct((nt, 2, opad), jnp.float32)],
        compiler_params=pltpu.CompilerParams(
            dimension_semantics=("parallel",)),
    )(x, wmat)
    return y[:m], st


def _bn_pact_apply(y, scale, shift, alpha, out_dtype):
    m, opad = y.shape
    mpad = _round_up(m, TM)
    if mpad != m:
        y = jnp.pad(y, ((0, mpad - m), (0, 0)))
    out = pl.pallas_call(
        _bn_pact_kernel,
        grid=(mpad // TM,),
        in_specs=[pl.BlockSpec((TM, opad), lambda i: (i, 0)),
                  pl.BlockSpec((1, opad), lambda i: (0, 0)),
                  pl.BlockSpec((1, opad), lambda i: (0, 0)),
                  pl.BlockSpec(memory_space=pltpu.MemorySpace.SMEM)],
        out_specs=pl.BlockSpec((TM, opad), lambda i: (i, 0)),
        out_shape=jax.ShapeDtypeStruct((mpad, opad), out_dtype),
        compiler_params=pltpu.CompilerParams(
            dimension_semantics=("parallel",)),
    )(y, scale, shift, alpha)
    return out[:m]


def _bn_add_pact_apply(y, sc, s2, b2, ssc, bsc, alpha):
    m, opad = y.shape
    mpad = _round_up(m, TM)
    if mpad != m:
        pad = ((0, mpad - m), (0, 0))
        y = jnp.pad(y, pad)
        sc = jnp.pad(sc, pad)
    out = pl.pallas_call(
        _bn_add_pact_kernel,
        grid=(mpad // TM,),
        in_specs=[pl.BlockSpec((TM, opad), lambda i: (i, 0)),
                  pl.BlockSpec((TM, opad), lambda i: (i, 0)),
                  pl.BlockSpec((1, opad), lambda i: (0, 0)),
                  pl.BlockSpec((1, opad), lambda i: (0, 0)),
                  pl.BlockSpec((1, opad), lambda i: (0, 0)),
                  pl.BlockSpec((1, opad), lambda i: (0, 0)),
                  pl.BlockSpec(memory_space=pltpu.MemorySpace.SMEM)],
        out_specs=pl.BlockSpec((TM, opad), lambda i: (i, 0)),
        out_shape=jax.ShapeDtypeStruct((mpad, opad), jnp.float32),
        compiler_params=pltpu.CompilerParams(
            dimension_semantics=("parallel",)),
    )(y, sc, s2, b2, ssc, bsc, alpha)
    return out[:m]


# ------------------------------- JAX glue ----------------------------------- #
def _bn_scale_shift(stats, count, gamma, beta, opad):
    """Reduce per-row partial (sum, sumsq) -> per-channel scale/shift (tiny)."""
    g = jnp.pad(gamma.astype(jnp.float32), (0, opad - gamma.shape[0]))
    b = jnp.pad(beta.astype(jnp.float32), (0, opad - beta.shape[0]))
    tot = jnp.sum(stats, axis=0)                        # (2, opad)
    mean = tot[0] / count
    var = jnp.maximum(tot[1] / count - mean * mean, 0.0)
    scale = g * lax.rsqrt(var + EPS)
    shift = b - mean * scale
    return scale.reshape(1, opad), shift.reshape(1, opad)


def _prep_w3x3(w_oihw, cin_p, opad):
    """OIHW 3x3 weight -> (9, Cpad, Opad) bf16 tap matrices."""
    o, i, kh, kw = w_oihw.shape
    wt = jnp.transpose(w_oihw, (2, 3, 1, 0))            # (3, 3, I, O)
    wt = jnp.pad(wt, ((0, 0), (0, 0), (0, cin_p - i), (0, opad - o)))
    return wt.reshape(kh * kw, cin_p, opad).astype(jnp.bfloat16)


def _prep_w1x1(w_oihw, cin_p, opad):
    o, i = w_oihw.shape[:2]
    wt = jnp.transpose(w_oihw[:, :, 0, 0], (1, 0))      # (I, O)
    wt = jnp.pad(wt, ((0, cin_p - i), (0, opad - o)))
    return wt.astype(jnp.bfloat16)


@functools.partial(jax.jit, static_argnames=("stride",))
def basic_block_forward(x_nchw, params, *, stride=1):
    """Pallas-backed forward of the PyTorch BasicBlock. Input/output: NCHW."""
    n, cin, h, w = x_nchw.shape
    planes = params["w1"].shape[0]
    need_proj = "w_sc" in params

    cin_p = _round_up(cin, LANE)
    opad = _round_up(planes, LANE)
    hout = (h - 1) // stride + 1
    wout = (w - 1) // stride + 1
    m = n * hout * wout

    x_nhwc = jnp.transpose(x_nchw, (0, 2, 3, 1))        # NCHW -> NHWC

    # ---- stage 1: conv1 (3x3, stride) + BN1 statistics ----
    x1p = jnp.pad(x_nhwc, ((0, 0), (1, 1), (1, 1), (0, cin_p - cin))
                  ).astype(jnp.bfloat16)
    y1, st1 = _conv3x3_stats(x1p, _prep_w3x3(params["w1"], cin_p, opad),
                             stride, hout, wout)
    s1, b1 = _bn_scale_shift(st1, m, params["g1"], params["b1"], opad)

    # ---- BN1 apply + PACT ----
    a1 = jnp.asarray(params["alpha1"], jnp.float32).reshape(1, 1)
    h1 = _bn_pact_apply(y1.reshape(m, opad), s1, b1, a1, jnp.bfloat16)
    h1p = jnp.pad(h1.reshape(n, hout, wout, opad),
                  ((0, 0), (1, 1), (1, 1), (0, 0)))

    # ---- stage 2: conv2 (3x3, stride 1) + BN2 statistics ----
    y2, st2 = _conv3x3_stats(h1p, _prep_w3x3(params["w2"], opad, opad),
                             1, hout, wout)
    s2, b2 = _bn_scale_shift(st2, m, params["g2"], params["b2"], opad)

    # ---- shortcut ----
    if need_proj:
        xs = x_nhwc[:, ::stride, ::stride, :]
        xs = jnp.pad(xs, ((0, 0), (0, 0), (0, 0), (0, cin_p - cin))
                     ).astype(jnp.bfloat16).reshape(m, cin_p)
        ysc, stsc = _matmul_stats(xs, _prep_w1x1(params["w_sc"], cin_p, opad))
        ssc, bsc = _bn_scale_shift(stsc, m, params["g_sc"], params["b_sc"], opad)
        sc = ysc
    else:
        sc = jnp.pad(x_nhwc, ((0, 0), (0, 0), (0, 0), (0, opad - cin))
                     ).reshape(m, opad)
        ssc = jnp.ones((1, opad), jnp.float32)
        bsc = jnp.zeros((1, opad), jnp.float32)

    # ---- BN2 apply + shortcut add + PACT ----
    a2 = jnp.asarray(params["alpha2"], jnp.float32).reshape(1, 1)
    out = _bn_add_pact_apply(y2.reshape(m, opad), sc, s2, b2, ssc, bsc, a2)
    out = out[:, :planes].reshape(n, hout, wout, planes)
    return jnp.transpose(out, (0, 3, 1, 2))             # NHWC -> NCHW


# --------------------------------- params ----------------------------------- #
def make_basic_block_params(key, in_planes, planes, stride):
    ks = jax.random.split(key, 9)
    p = {
        "w1": 0.1 * jax.random.normal(ks[0], (planes, in_planes, 3, 3), jnp.float32),
        "g1": jax.random.uniform(ks[1], (planes,), jnp.float32, 0.5, 1.5),
        "b1": 0.1 * jax.random.normal(ks[2], (planes,), jnp.float32),
        "w2": 0.1 * jax.random.normal(ks[3], (planes, planes, 3, 3), jnp.float32),
        "g2": jax.random.uniform(ks[4], (planes,), jnp.float32, 0.5, 1.5),
        "b2": 0.1 * jax.random.normal(ks[5], (planes,), jnp.float32),
        "alpha1": jnp.float32(10.0),   # PACT alpha init = 10
        "alpha2": jnp.float32(10.0),
    }
    if (stride != 1) or (in_planes != planes):
        p["w_sc"] = 0.1 * jax.random.normal(ks[6], (planes, in_planes, 1, 1),
                                            jnp.float32)
        p["g_sc"] = jax.random.uniform(ks[7], (planes,), jnp.float32, 0.5, 1.5)
        p["b_sc"] = 0.1 * jax.random.normal(ks[8], (planes,), jnp.float32)
    return p


# ------------------------- pure-JAX reference check ------------------------- #
def _ref_bn(y, g, b):
    mu = y.mean(axis=(0, 2, 3), keepdims=True)
    v = ((y - mu) ** 2).mean(axis=(0, 2, 3), keepdims=True)
    return (y - mu) / jnp.sqrt(v + EPS) * g.reshape(1, -1, 1, 1) + b.reshape(1, -1, 1, 1)


def _ref_conv(x, wgt, stride, pad):
    return lax.conv_general_dilated(
        x, wgt, (stride, stride), ((pad, pad), (pad, pad)),
        dimension_numbers=("NCHW", "OIHW", "NCHW"))


def ref_basic_block(x, p, stride):
    out = _pact(_ref_bn(_ref_conv(x, p["w1"], stride, 1), p["g1"], p["b1"]),
                p["alpha1"])
    out = _ref_bn(_ref_conv(out, p["w2"], 1, 1), p["g2"], p["b2"])
    if "w_sc" in p:
        sc = _ref_bn(_ref_conv(x, p["w_sc"], stride, 0), p["g_sc"], p["b_sc"])
    else:
        sc = x
    return _pact(out + sc, p["alpha2"])


# ----------------------------------- main ------------------------------------ #
if __name__ == "__main__":
    key = jax.random.PRNGKey(0)
    kx1, kx2, kp1, kp2 = jax.random.split(key, 4)

    # Config A: projection shortcut (in_planes != planes), stride=1.
    x_a = jax.random.normal(kx1, (2, 4, 16, 16), jnp.float32)
    params_a = make_basic_block_params(kp1, in_planes=4, planes=8, stride=1)
    y_a = jax.block_until_ready(basic_block_forward(x_a, params_a, stride=1))
    ref_a = ref_basic_block(x_a, params_a, 1)
    assert y_a.shape == (2, 8, 16, 16)
    # bf16 MXU operands (per perf review) -> slightly looser tolerance than f32.
    assert jnp.allclose(y_a, ref_a, atol=5e-2, rtol=5e-2), "config A mismatch"

    # Config B: identity shortcut (in_planes == planes, stride=1).
    x_b = jax.random.normal(kx2, (2, 8, 16, 16), jnp.float32)
    params_b = make_basic_block_params(kp2, in_planes=8, planes=8, stride=1)
    y_b = jax.block_until_ready(basic_block_forward(x_b, params_b, stride=1))
    ref_b = ref_basic_block(x_b, params_b, 1)
    assert y_b.shape == (2, 8, 16, 16)
    assert jnp.allclose(y_b, ref_b, atol=5e-2, rtol=5e-2), "config B mismatch"

    print("KERNEL_OK")
</pallas_src>

<mosaic_0001>
module attributes {stable_mosaic.version = 11 : i64} {
  func.func @_conv3x3_stats_kernel(%arg0: i32, %arg1: memref<2x1x18x128xbf16, #tpu.memory_space<vmem>>, %arg2: memref<2x1x18x128xbf16, #tpu.memory_space<vmem>>, %arg3: memref<2x1x18x128xbf16, #tpu.memory_space<vmem>>, %arg4: memref<9x128x128xbf16, #tpu.memory_space<vmem>>, %arg5: memref<2x1x16x128xf32, #tpu.memory_space<vmem>>, %arg6: memref<1x2x128xf32, #tpu.memory_space<vmem>>) attributes {dimension_semantics = [#tpu.dimension_semantics<parallel>], iteration_bounds = array<i64: 16>, scalar_prefetch = 0 : i64, scratch_operands = 0 : i64, tpu.core_type = #tpu.core_type<tc>, window_params = [{transform_indices = @transform_0, window_bounds = array<i64: 2, 1, 18, 128>}, {transform_indices = @transform_1, window_bounds = array<i64: 2, 1, 18, 128>}, {transform_indices = @transform_2, window_bounds = array<i64: 2, 1, 18, 128>}, {pipeline_mode = #tpu.pipeline_mode<synchronous>, transform_indices = @transform_3, window_bounds = array<i64: 9, 128, 128>}, {transform_indices = @transform_4, window_bounds = array<i64: 2, 1, 16, 128>}, {transform_indices = @transform_5, window_bounds = array<i64: 1, 2, 128>}]} {
    %cst = arith.constant 0.000000e+00 : f32
    %0 = vector.broadcast %cst : f32 to vector<32x128xf32>
    %c0 = arith.constant 0 : index
    %c0_0 = arith.constant 0 : index
    %c0_1 = arith.constant 0 : index
    %c0_2 = arith.constant 0 : index
    %1 = vector.load %arg1[%c0, %c0_0, %c0_1, %c0_2] : memref<2x1x18x128xbf16, #tpu.memory_space<vmem>>, vector<2x1x18x128xbf16>
    %2 = vector.shape_cast %1 : vector<2x1x18x128xbf16> to vector<2x18x128xbf16>
    %3 = vector.extract_strided_slice %2 {offsets = [0, 0, 0], sizes = [2, 16, 128], strides = [1, 1, 1]} : vector<2x18x128xbf16> to vector<2x16x128xbf16>
    %4 = vector.shape_cast %3 : vector<2x16x128xbf16> to vector<32x128xbf16>
    %c0_3 = arith.constant 0 : index
    %c0_4 = arith.constant 0 : index
    %c0_5 = arith.constant 0 : index
    %5 = vector.load %arg4[%c0_3, %c0_4, %c0_5] : memref<9x128x128xbf16, #tpu.memory_space<vmem>>, vector<1x128x128xbf16>
    %6 = vector.shape_cast %5 : vector<1x128x128xbf16> to vector<128x128xbf16>
    %cst_6 = arith.constant dense<0.000000e+00> : vector<32x128xf32>
    %7 = tpu.matmul %4, %6, %cst_6 {dimension_numbers = #tpu.dot_dimension_numbers<[1], [0], [0], [1], [0, 0, 1, 1], [], []>} : vector<32x128xbf16>, vector<128x128xbf16>, vector<32x128xf32> -> vector<32x128xf32>
    %8 = arith.addf %0, %7 : vector<32x128xf32>
    %9 = vector.extract_strided_slice %2 {offsets = [0, 1, 0], sizes = [2, 16, 128], strides = [1, 1, 1]} : vector<2x18x128xbf16> to vector<2x16x128xbf16>
    %10 = vector.shape_cast %9 : vector<2x16x128xbf16> to vector<32x128xbf16>
    %c1 = arith.constant 1 : index
    %c0_7 = arith.constant 0 : index
    %c0_8 = arith.constant 0 : index
    %11 = vector.load %arg4[%c1, %c0_7, %c0_8] : memref<9x128x128xbf16, #tpu.memory_space<vmem>>, vector<1x128x128xbf16>
    %12 = vector.shape_cast %11 : vector<1x128x128xbf16> to vector<128x128xbf16>
    %cst_9 = arith.constant dense<0.000000e+00> : vector<32x128xf32>
    %13 = tpu.matmul %10, %12, %cst_9 {dimension_numbers = #tpu.dot_dimension_numbers<[1], [0], [0], [1], [0, 0, 1, 1], [], []>} : vector<32x128xbf16>, vector<128x128xbf16>, vector<32x128xf32> -> vector<32x128xf32>
    %14 = arith.addf %8, %13 : vector<32x128xf32>
    %15 = vector.extract_strided_slice %2 {offsets = [0, 2, 0], sizes = [2, 16, 128], strides = [1, 1, 1]} : vector<2x18x128xbf16> to vector<2x16x128xbf16>
    %16 = vector.shape_cast %15 : vector<2x16x128xbf16> to vector<32x128xbf16>
    %c2 = arith.constant 2 : index
    %c0_10 = arith.constant 0 : index
    %c0_11 = arith.constant 0 : index
    %17 = vector.load %arg4[%c2, %c0_10, %c0_11] : memref<9x128x128xbf16, #tpu.memory_space<vmem>>, vector<1x128x128xbf16>
    %18 = vector.shape_cast %17 : vector<1x128x128xbf16> to vector<128x128xbf16>
    %cst_12 = arith.constant dense<0.000000e+00> : vector<32x128xf32>
    %19 = tpu.matmul %16, %18, %cst_12 {dimension_numbers = #tpu.dot_dimension_numbers<[1], [0], [0], [1], [0, 0, 1, 1], [], []>} : vector<32x128xbf16>, vector<128x128xbf16>, vector<32x128xf32> -> vector<32x128xf32>
    %20 = arith.addf %14, %19 : vector<32x128xf32>
    %c0_13 = arith.constant 0 : index
    %c0_14 = arith.constant 0 : index
    %c0_15 = arith.constant 0 : index
    %c0_16 = arith.constant 0 : index
    %21 = vector.load %arg2[%c0_13, %c0_14, %c0_15, %c0_16] : memref<2x1x18x128xbf16, #tpu.memory_space<vmem>>, vector<2x1x18x128xbf16>
    %22 = vector.shape_cast %21 : vector<2x1x18x128xbf16> to vector<2x18x128xbf16>
    %23 = vector.extract_strided_slice %22 {offsets = [0, 0, 0], sizes = [2, 16, 128], strides = [1, 1, 1]} : vector<2x18x128xbf16> to vector<2x16x128xbf16>
    %24 = vector.shape_cast %23 : vector<2x16x128xbf16> to vector<32x128xbf16>
    %c3 = arith.constant 3 : index
    %c0_17 = arith.constant 0 : index
    %c0_18 = arith.constant 0 : index
    %25 = vector.load %arg4[%c3, %c0_17, %c0_18] : memref<9x128x128xbf16, #tpu.memory_space<vmem>>, vector<1x128x128xbf16>
    %26 = vector.shape_cast %25 : vector<1x128x128xbf16> to vector<128x128xbf16>
    %cst_19 = arith.constant dense<0.000000e+00> : vector<32x128xf32>
    %27 = tpu.matmul %24, %26, %cst_19 {dimension_numbers = #tpu.dot_dimension_numbers<[1], [0], [0], [1], [0, 0, 1, 1], [], []>} : vector<32x128xbf16>, vector<128x128xbf16>, vector<32x128xf32> -> vector<32x128xf32>
    %28 = arith.addf %20, %27 : vector<32x128xf32>
    %29 = vector.extract_strided_slice %22 {offsets = [0, 1, 0], sizes = [2, 16, 128], strides = [1, 1, 1]} : vector<2x18x128xbf16> to vector<2x16x128xbf16>
    %30 = vector.shape_cast %29 : vector<2x16x128xbf16> to vector<32x128xbf16>
    %c4 = arith.constant 4 : index
    %c0_20 = arith.constant 0 : index
    %c0_21 = arith.constant 0 : index
    %31 = vector.load %arg4[%c4, %c0_20, %c0_21] : memref<9x128x128xbf16, #tpu.memory_space<vmem>>, vector<1x128x128xbf16>
    %32 = vector.shape_cast %31 : vector<1x128x128xbf16> to vector<128x128xbf16>
    %cst_22 = arith.constant dense<0.000000e+00> : vector<32x128xf32>
    %33 = tpu.matmul %30, %32, %cst_22 {dimension_numbers = #tpu.dot_dimension_numbers<[1], [0], [0], [1], [0, 0, 1, 1], [], []>} : vector<32x128xbf16>, vector<128x128xbf16>, vector<32x128xf32> -> vector<32x128xf32>
    %34 = arith.addf %28, %33 : vector<32x128xf32>
    %35 = vector.extract_strided_slice %22 {offsets = [0, 2, 0], sizes = [2, 16, 128], strides = [1, 1, 1]} : vector<2x18x128xbf16> to vector<2x16x128xbf16>
    %36 = vector.shape_cast %35 : vector<2x16x128xbf16> to vector<32x128xbf16>
    %c5 = arith.constant 5 : index
    %c0_23 = arith.constant 0 : index
    %c0_24 = arith.constant 0 : index
    %37 = vector.load %arg4[%c5, %c0_23, %c0_24] : memref<9x128x128xbf16, #tpu.memory_space<vmem>>, vector<1x128x128xbf16>
    %38 = vector.shape_cast %37 : vector<1x128x128xbf16> to vector<128x128xbf16>
    %cst_25 = arith.constant dense<0.000000e+00> : vector<32x128xf32>
    %39 = tpu.matmul %36, %38, %cst_25 {dimension_numbers = #tpu.dot_dimension_numbers<[1], [0], [0], [1], [0, 0, 1, 1], [], []>} : vector<32x128xbf16>, vector<128x128xbf16>, vector<32x128xf32> -> vector<32x128xf32>
    %40 = arith.addf %34, %39 : vector<32x128xf32>
    %c0_26 = arith.constant 0 : index
    %c0_27 = arith.constant 0 : index
    %c0_28 = arith.constant 0 : index
    %c0_29 = arith.constant 0 : index
    %41 = vector.load %arg3[%c0_26, %c0_27, %c0_28, %c0_29] : memref<2x1x18x128xbf16, #tpu.memory_space<vmem>>, vector<2x1x18x128xbf16>
    %42 = vector.shape_cast %41 : vector<2x1x18x128xbf16> to vector<2x18x128xbf16>
    %43 = vector.extract_strided_slice %42 {offsets = [0, 0, 0], sizes = [2, 16, 128], strides = [1, 1, 1]} : vector<2x18x128xbf16> to vector<2x16x128xbf16>
    %44 = vector.shape_cast %43 : vector<2x16x128xbf16> to vector<32x128xbf16>
    %c6 = arith.constant 6 : index
    %c0_30 = arith.constant 0 : index
    %c0_31 = arith.constant 0 : index
    %45 = vector.load %arg4[%c6, %c0_30, %c0_31] : memref<9x128x128xbf16, #tpu.memory_space<vmem>>, vector<1x128x128xbf16>
    %46 = vector.shape_cast %45 : vector<1x128x128xbf16> to vector<128x128xbf16>
    %cst_32 = arith.constant dense<0.000000e+00> : vector<32x128xf32>
    %47 = tpu.matmul %44, %46, %cst_32 {dimension_numbers = #tpu.dot_dimension_numbers<[1], [0], [0], [1], [0, 0, 1, 1], [], []>} : vector<32x128xbf16>, vector<128x128xbf16>, vector<32x128xf32> -> vector<32x128xf32>
    %48 = arith.addf %40, %47 : vector<32x128xf32>
    %49 = vector.extract_strided_slice %42 {offsets = [0, 1, 0], sizes = [2, 16, 128], strides = [1, 1, 1]} : vector<2x18x128xbf16> to vector<2x16x128xbf16>
    %50 = vector.shape_cast %49 : vector<2x16x128xbf16> to vector<32x128xbf16>
    %c7 = arith.constant 7 : index
    %c0_33 = arith.constant 0 : index
    %c0_34 = arith.constant 0 : index
    %51 = vector.load %arg4[%c7, %c0_33, %c0_34] : memref<9x128x128xbf16, #tpu.memory_space<vmem>>, vector<1x128x128xbf16>
    %52 = vector.shape_cast %51 : vector<1x128x128xbf16> to vector<128x128xbf16>
    %cst_35 = arith.constant dense<0.000000e+00> : vector<32x128xf32>
    %53 = tpu.matmul %50, %52, %cst_35 {dimension_numbers = #tpu.dot_dimension_numbers<[1], [0], [0], [1], [0, 0, 1, 1], [], []>} : vector<32x128xbf16>, vector<128x128xbf16>, vector<32x128xf32> -> vector<32x128xf32>
    %54 = arith.addf %48, %53 : vector<32x128xf32>
    %55 = vector.extract_strided_slice %42 {offsets = [0, 2, 0], sizes = [2, 16, 128], strides = [1, 1, 1]} : vector<2x18x128xbf16> to vector<2x16x128xbf16>
    %56 = vector.shape_cast %55 : vector<2x16x128xbf16> to vector<32x128xbf16>
    %c8 = arith.constant 8 : index
    %c0_36 = arith.constant 0 : index
    %c0_37 = arith.constant 0 : index
    %57 = vector.load %arg4[%c8, %c0_36, %c0_37] : memref<9x128x128xbf16, #tpu.memory_space<vmem>>, vector<1x128x128xbf16>
    %58 = vector.shape_cast %57 : vector<1x128x128xbf16> to vector<128x128xbf16>
    %cst_38 = arith.constant dense<0.000000e+00> : vector<32x128xf32>
    %59 = tpu.matmul %56, %58, %cst_38 {dimension_numbers = #tpu.dot_dimension_numbers<[1], [0], [0], [1], [0, 0, 1, 1], [], []>} : vector<32x128xbf16>, vector<128x128xbf16>, vector<32x128xf32> -> vector<32x128xf32>
    %60 = arith.addf %54, %59 : vector<32x128xf32>
    %61 = vector.shape_cast %60 : vector<32x128xf32> to vector<2x1x16x128xf32>
    %c0_39 = arith.constant 0 : index
    %c0_40 = arith.constant 0 : index
    %c0_41 = arith.constant 0 : index
    %c0_42 = arith.constant 0 : index
    %62 = vector.load %arg5[%c0_39, %c0_40, %c0_41, %c0_42] : memref<2x1x16x128xf32, #tpu.memory_space<vmem>>, vector<2x1x16x128xf32>
    tpu.vector_store %arg5[%c0_39, %c0_40, %c0_41, %c0_42], %61 {strides = array<i32>} : memref<2x1x16x128xf32, #tpu.memory_space<vmem>>, vector<2x1x16x128xf32>,
    %cst_43 = arith.constant dense<0.000000e+00> : vector<128xf32>
    %63 = vector.multi_reduction <add>, %60, %cst_43 [0] : vector<32x128xf32> to vector<128xf32>
    %64 = vector.shape_cast %63 : vector<128xf32> to vector<1x128xf32>
    %65 = arith.mulf %60, %60 : vector<32x128xf32>
    %cst_44 = arith.constant dense<0.000000e+00> : vector<128xf32>
    %66 = vector.multi_reduction <add>, %65, %cst_44 [0] : vector<32x128xf32> to vector<128xf32>
    %67 = vector.shape_cast %66 : vector<128xf32> to vector<1x128xf32>
    %68 = tpu.concatenate %64, %67 in 0 : vector<1x128xf32>, vector<1x128xf32> -> vector<2x128xf32>
    %69 = vector.shape_cast %68 : vector<2x128xf32> to vector<1x2x128xf32>
    %c0_45 = arith.constant 0 : index
    %c0_46 = arith.constant 0 : index
    %c0_47 = arith.constant 0 : index
    %70 = vector.load %arg6[%c0_45, %c0_46, %c0_47] : memref<1x2x128xf32, #tpu.memory_space<vmem>>, vector<1x2x128xf32>
    tpu.vector_store %arg6[%c0_45, %c0_46, %c0_47], %69 {strides = array<i32>} : memref<1x2x128xf32, #tpu.memory_space<vmem>>, vector<1x2x128xf32>,
    return
  }
  func.func @transform_0(%arg0: i32) -> (i32, i32, i32, i32) {
    %c1_i32 = arith.constant 1 : i32
    %0 = arith.muli %arg0, %c1_i32 : i32
    %c0_i32 = arith.constant 0 : i32
    %1 = arith.addi %0, %c0_i32 : i32
    %c0_i32_0 = arith.constant 0 : i32
    %c0_i32_1 = arith.constant 0 : i32
    %c0_i32_2 = arith.constant 0 : i32
    %c0_i32_3 = arith.constant 0 : i32
    return %c0_i32_0, %1, %c0_i32_1, %c0_i32_2 : i32, i32, i32, i32
  }
  func.func @transform_1(%arg0: i32) -> (i32, i32, i32, i32) {
    %c1_i32 = arith.constant 1 : i32
    %0 = arith.muli %arg0, %c1_i32 : i32
    %c1_i32_0 = arith.constant 1 : i32
    %1 = arith.addi %0, %c1_i32_0 : i32
    %c0_i32 = arith.constant 0 : i32
    %c0_i32_1 = arith.constant 0 : i32
    %c0_i32_2 = arith.constant 0 : i32
    %c0_i32_3 = arith.constant 0 : i32
    return %c0_i32, %1, %c0_i32_1, %c0_i32_2 : i32, i32, i32, i32
  }
  func.func @transform_2(%arg0: i32) -> (i32, i32, i32, i32) {
    %c1_i32 = arith.constant 1 : i32
    %0 = arith.muli %arg0, %c1_i32 : i32
    %c2_i32 = arith.constant 2 : i32
    %1 = arith.addi %0, %c2_i32 : i32
    %c0_i32 = arith.constant 0 : i32
    %c0_i32_0 = arith.constant 0 : i32
    %c0_i32_1 = arith.constant 0 : i32
    %c0_i32_2 = arith.constant 0 : i32
    return %c0_i32, %1, %c0_i32_0, %c0_i32_1 : i32, i32, i32, i32
  }
  func.func @transform_3(%arg0: i32) -> (i32, i32, i32) {
    %c0_i32 = arith.constant 0 : i32
    %c0_i32_0 = arith.constant 0 : i32
    %c0_i32_1 = arith.constant 0 : i32
    %c0_i32_2 = arith.constant 0 : i32
    return %c0_i32, %c0_i32_0, %c0_i32_1 : i32, i32, i32
  }
  func.func @transform_4(%arg0: i32) -> (i32, i32, i32, i32) {
    %c0_i32 = arith.constant 0 : i32
    %c0_i32_0 = arith.constant 0 : i32
    %c0_i32_1 = arith.constant 0 : i32
    %c0_i32_2 = arith.constant 0 : i32
    return %c0_i32, %arg0, %c0_i32_0, %c0_i32_1 : i32, i32, i32, i32
  }
  func.func @transform_5(%arg0: i32) -> (i32, i32, i32) {
    %c0_i32 = arith.constant 0 : i32
    %c0_i32_0 = arith.constant 0 : i32
    %c0_i32_1 = arith.constant 0 : i32
    return %arg0, %c0_i32, %c0_i32_0 : i32, i32, i32
  }
}

module attributes {stable_mosaic.version = 11 : i64} {
  func.func @_bn_pact_kernel(%arg0: i32, %arg1: memref<512x128xf32, #tpu.memory_space<vmem>>, %arg2: memref<1x128xf32, #tpu.memory_space<vmem>>, %arg3: memref<1x128xf32, #tpu.memory_space<vmem>>, %arg4: memref<1x1xf32, #tpu.memory_space<smem>>, %arg5: memref<512x128xbf16, #tpu.memory_space<vmem>>) attributes {dimension_semantics = [#tpu.dimension_semantics<parallel>], iteration_bounds = array<i64: 1>, scalar_prefetch = 0 : i64, scratch_operands = 0 : i64, tpu.core_type = #tpu.core_type<tc>, window_params = [{transform_indices = @transform_0, window_bounds = array<i64: 512, 128>}, {pipeline_mode = #tpu.pipeline_mode<synchronous>, transform_indices = @transform_1, window_bounds = array<i64: 1, 128>}, {pipeline_mode = #tpu.pipeline_mode<synchronous>, transform_indices = @transform_2, window_bounds = array<i64: 1, 128>}, {transform_indices = @transform_3, window_bounds = array<i64: 1, 1>}, {transform_indices = @transform_4, window_bounds = array<i64: 512, 128>}]} {
    %c0 = arith.constant 0 : index
    %c0_0 = arith.constant 0 : index
    %0 = vector.load %arg1[%c0, %c0_0] : memref<512x128xf32, #tpu.memory_space<vmem>>, vector<512x128xf32>
    %c0_1 = arith.constant 0 : index
    %c0_2 = arith.constant 0 : index
    %1 = vector.load %arg2[%c0_1, %c0_2] : memref<1x128xf32, #tpu.memory_space<vmem>>, vector<1x128xf32>
    %2 = vector.broadcast %1 : vector<1x128xf32> to vector<512x128xf32>
    %3 = arith.mulf %0, %2 : vector<512x128xf32>
    %c0_3 = arith.constant 0 : index
    %c0_4 = arith.constant 0 : index
    %4 = vector.load %arg3[%c0_3, %c0_4] : memref<1x128xf32, #tpu.memory_space<vmem>>, vector<1x128xf32>
    %5 = vector.broadcast %4 : vector<1x128xf32> to vector<512x128xf32>
    %6 = arith.addf %3, %5 : vector<512x128xf32>
    %c0_5 = arith.constant 0 : index
    %c0_6 = arith.constant 0 : index
    %7 = memref.load %arg4[%c0_5, %c0_6] : memref<1x1xf32, #tpu.memory_space<smem>>
    %8 = math.absf %6 : vector<512x128xf32>
    %9 = vector.broadcast %7 : f32 to vector<512x128xf32>
    %10 = arith.subf %6, %9 : vector<512x128xf32>
    %11 = math.absf %10 : vector<512x128xf32>
    %12 = arith.subf %8, %11 : vector<512x128xf32>
    %13 = vector.broadcast %7 : f32 to vector<512x128xf32>
    %14 = arith.addf %12, %13 : vector<512x128xf32>
    %cst = arith.constant 5.000000e-01 : f32
    %15 = vector.broadcast %cst : f32 to vector<512x128xf32>
    %16 = arith.mulf %15, %14 : vector<512x128xf32>
    %cst_7 = arith.constant 0.000000e+00 : f32
    %17 = vector.broadcast %cst_7 : f32 to vector<512x128xf32>
    %18 = arith.maximumf %16, %17 : vector<512x128xf32>
    %19 = arith.truncf %18 : vector<512x128xf32> to vector<512x128xbf16>
    %c0_8 = arith.constant 0 : index
    %c0_9 = arith.constant 0 : index
    %20 = vector.load %arg5[%c0_8, %c0_9] : memref<512x128xbf16, #tpu.memory_space<vmem>>, vector<512x128xbf16>
    tpu.vector_store %arg5[%c0_8, %c0_9], %19 {strides = array<i32>} : memref<512x128xbf16, #tpu.memory_space<vmem>>, vector<512x128xbf16>,
    return
  }
  func.func @transform_0(%arg0: i32) -> (i32, i32) {
    %c0_i32 = arith.constant 0 : i32
    %c0_i32_0 = arith.constant 0 : i32
    return %arg0, %c0_i32 : i32, i32
  }
  func.func @transform_1(%arg0: i32) -> (i32, i32) {
    %c0_i32 = arith.constant 0 : i32
    %c0_i32_0 = arith.constant 0 : i32
    %c0_i32_1 = arith.constant 0 : i32
    return %c0_i32, %c0_i32_0 : i32, i32
  }
  func.func @transform_2(%arg0: i32) -> (i32, i32) {
    %c0_i32 = arith.constant 0 : i32
    %c0_i32_0 = arith.constant 0 : i32
    %c0_i32_1 = arith.constant 0 : i32
    return %c0_i32, %c0_i32_0 : i32, i32
  }
  func.func @transform_3(%arg0: i32) -> (i32, i32) {
    %c0_i32 = arith.constant 0 : i32
    %c0_i32_0 = arith.constant 0 : i32
    %c0_i32_1 = arith.constant 0 : i32
    return %c0_i32, %c0_i32_0 : i32, i32
  }
  func.func @transform_4(%arg0: i32) -> (i32, i32) {
    %c0_i32 = arith.constant 0 : i32
    %c0_i32_0 = arith.constant 0 : i32
    return %arg0, %c0_i32 : i32, i32
  }
}

module attributes {stable_mosaic.version = 11 : i64} {
  func.func @_matmul_stats_kernel(%arg0: i32, %arg1: memref<512x128xbf16, #tpu.memory_space<vmem>>, %arg2: memref<128x128xbf16, #tpu.memory_space<vmem>>, %arg3: memref<512x128xf32, #tpu.memory_space<vmem>>, %arg4: memref<1x2x128xf32, #tpu.memory_space<vmem>>) attributes {dimension_semantics = [#tpu.dimension_semantics<parallel>], iteration_bounds = array<i64: 1>, scalar_prefetch = 0 : i64, scratch_operands = 0 : i64, tpu.core_type = #tpu.core_type<tc>, window_params = [{transform_indices = @transform_0, window_bounds = array<i64: 512, 128>}, {pipeline_mode = #tpu.pipeline_mode<synchronous>, transform_indices = @transform_1, window_bounds = array<i64: 128, 128>}, {transform_indices = @transform_2, window_bounds = array<i64: 512, 128>}, {transform_indices = @transform_3, window_bounds = array<i64: 1, 2, 128>}]} {
    %c0 = arith.constant 0 : index
    %c0_0 = arith.constant 0 : index
    %0 = vector.load %arg1[%c0, %c0_0] : memref<512x128xbf16, #tpu.memory_space<vmem>>, vector<512x128xbf16>
    %c0_1 = arith.constant 0 : index
    %c0_2 = arith.constant 0 : index
    %1 = vector.load %arg2[%c0_1, %c0_2] : memref<128x128xbf16, #tpu.memory_space<vmem>>, vector<128x128xbf16>
    %cst = arith.constant dense<0.000000e+00> : vector<512x128xf32>
    %2 = tpu.matmul %0, %1, %cst {dimension_numbers = #tpu.dot_dimension_numbers<[1], [0], [0], [1], [0, 0, 1, 1], [], []>} : vector<512x128xbf16>, vector<128x128xbf16>, vector<512x128xf32> -> vector<512x128xf32>
    %c0_3 = arith.constant 0 : index
    %c0_4 = arith.constant 0 : index
    %3 = vector.load %arg3[%c0_3, %c0_4] : memref<512x128xf32, #tpu.memory_space<vmem>>, vector<512x128xf32>
    tpu.vector_store %arg3[%c0_3, %c0_4], %2 {strides = array<i32>} : memref<512x128xf32, #tpu.memory_space<vmem>>, vector<512x128xf32>,
    %cst_5 = arith.constant dense<0.000000e+00> : vector<128xf32>
    %4 = vector.multi_reduction <add>, %2, %cst_5 [0] : vector<512x128xf32> to vector<128xf32>
    %5 = vector.shape_cast %4 : vector<128xf32> to vector<1x128xf32>
    %6 = arith.mulf %2, %2 : vector<512x128xf32>
    %cst_6 = arith.constant dense<0.000000e+00> : vector<128xf32>
    %7 = vector.multi_reduction <add>, %6, %cst_6 [0] : vector<512x128xf32> to vector<128xf32>
    %8 = vector.shape_cast %7 : vector<128xf32> to vector<1x128xf32>
    %9 = tpu.concatenate %5, %8 in 0 : vector<1x128xf32>, vector<1x128xf32> -> vector<2x128xf32>
    %10 = vector.shape_cast %9 : vector<2x128xf32> to vector<1x2x128xf32>
    %c0_7 = arith.constant 0 : index
    %c0_8 = arith.constant 0 : index
    %c0_9 = arith.constant 0 : index
    %11 = vector.load %arg4[%c0_7, %c0_8, %c0_9] : memref<1x2x128xf32, #tpu.memory_space<vmem>>, vector<1x2x128xf32>
    tpu.vector_store %arg4[%c0_7, %c0_8, %c0_9], %10 {strides = array<i32>} : memref<1x2x128xf32, #tpu.memory_space<vmem>>, vector<1x2x128xf32>,
    return
  }
  func.func @transform_0(%arg0: i32) -> (i32, i32) {
    %c0_i32 = arith.constant 0 : i32
    %c0_i32_0 = arith.constant 0 : i32
    return %arg0, %c0_i32 : i32, i32
  }
  func.func @transform_1(%arg0: i32) -> (i32, i32) {
    %c0_i32 = arith.constant 0 : i32
    %c0_i32_0 = arith.constant 0 : i32
    %c0_i32_1 = arith.constant 0 : i32
    return %c0_i32, %c0_i32_0 : i32, i32
  }
  func.func @transform_2(%arg0: i32) -> (i32, i32) {
    %c0_i32 = arith.constant 0 : i32
    %c0_i32_0 = arith.constant 0 : i32
    return %arg0, %c0_i32 : i32, i32
  }
  func.func @transform_3(%arg0: i32) -> (i32, i32, i32) {
    %c0_i32 = arith.constant 0 : i32
    %c0_i32_0 = arith.constant 0 : i32
    %c0_i32_1 = arith.constant 0 : i32
    return %arg0, %c0_i32, %c0_i32_0 : i32, i32, i32
  }
}

module attributes {stable_mosaic.version = 11 : i64} {
  func.func @_bn_add_pact_kernel(%arg0: i32, %arg1: memref<512x128xf32, #tpu.memory_space<vmem>>, %arg2: memref<512x128xf32, #tpu.memory_space<vmem>>, %arg3: memref<1x128xf32, #tpu.memory_space<vmem>>, %arg4: memref<1x128xf32, #tpu.memory_space<vmem>>, %arg5: memref<1x128xf32, #tpu.memory_space<vmem>>, %arg6: memref<1x128xf32, #tpu.memory_space<vmem>>, %arg7: memref<1x1xf32, #tpu.memory_space<smem>>, %arg8: memref<512x128xf32, #tpu.memory_space<vmem>>) attributes {dimension_semantics = [#tpu.dimension_semantics<parallel>], iteration_bounds = array<i64: 1>, scalar_prefetch = 0 : i64, scratch_operands = 0 : i64, tpu.core_type = #tpu.core_type<tc>, window_params = [{transform_indices = @transform_0, window_bounds = array<i64: 512, 128>}, {transform_indices = @transform_1, window_bounds = array<i64: 512, 128>}, {pipeline_mode = #tpu.pipeline_mode<synchronous>, transform_indices = @transform_2, window_bounds = array<i64: 1, 128>}, {pipeline_mode = #tpu.pipeline_mode<synchronous>, transform_indices = @transform_3, window_bounds = array<i64: 1, 128>}, {pipeline_mode = #tpu.pipeline_mode<synchronous>, transform_indices = @transform_4, window_bounds = array<i64: 1, 128>}, {pipeline_mode = #tpu.pipeline_mode<synchronous>, transform_indices = @transform_5, window_bounds = array<i64: 1, 128>}, {transform_indices = @transform_6, window_bounds = array<i64: 1, 1>}, {transform_indices = @transform_7, window_bounds = array<i64: 512, 128>}]} {
    %c0 = arith.constant 0 : index
    %c0_0 = arith.constant 0 : index
    %0 = vector.load %arg1[%c0, %c0_0] : memref<512x128xf32, #tpu.memory_space<vmem>>, vector<512x128xf32>
    %c0_1 = arith.constant 0 : index
    %c0_2 = arith.constant 0 : index
    %1 = vector.load %arg3[%c0_1, %c0_2] : memref<1x128xf32, #tpu.memory_space<vmem>>, vector<1x128xf32>
    %2 = vector.broadcast %1 : vector<1x128xf32> to vector<512x128xf32>
    %3 = arith.mulf %0, %2 : vector<512x128xf32>
    %c0_3 = arith.constant 0 : index
    %c0_4 = arith.constant 0 : index
    %4 = vector.load %arg4[%c0_3, %c0_4] : memref<1x128xf32, #tpu.memory_space<vmem>>, vector<1x128xf32>
    %5 = vector.broadcast %4 : vector<1x128xf32> to vector<512x128xf32>
    %6 = arith.addf %3, %5 : vector<512x128xf32>
    %c0_5 = arith.constant 0 : index
    %c0_6 = arith.constant 0 : index
    %7 = vector.load %arg2[%c0_5, %c0_6] : memref<512x128xf32, #tpu.memory_space<vmem>>, vector<512x128xf32>
    %c0_7 = arith.constant 0 : index
    %c0_8 = arith.constant 0 : index
    %8 = vector.load %arg5[%c0_7, %c0_8] : memref<1x128xf32, #tpu.memory_space<vmem>>, vector<1x128xf32>
    %9 = vector.broadcast %8 : vector<1x128xf32> to vector<512x128xf32>
    %10 = arith.mulf %7, %9 : vector<512x128xf32>
    %11 = arith.addf %6, %10 : vector<512x128xf32>
    %c0_9 = arith.constant 0 : index
    %c0_10 = arith.constant 0 : index
    %12 = vector.load %arg6[%c0_9, %c0_10] : memref<1x128xf32, #tpu.memory_space<vmem>>, vector<1x128xf32>
    %13 = vector.broadcast %12 : vector<1x128xf32> to vector<512x128xf32>
    %14 = arith.addf %11, %13 : vector<512x128xf32>
    %c0_11 = arith.constant 0 : index
    %c0_12 = arith.constant 0 : index
    %15 = memref.load %arg7[%c0_11, %c0_12] : memref<1x1xf32, #tpu.memory_space<smem>>
    %16 = math.absf %14 : vector<512x128xf32>
    %17 = vector.broadcast %15 : f32 to vector<512x128xf32>
    %18 = arith.subf %14, %17 : vector<512x128xf32>
    %19 = math.absf %18 : vector<512x128xf32>
    %20 = arith.subf %16, %19 : vector<512x128xf32>
    %21 = vector.broadcast %15 : f32 to vector<512x128xf32>
    %22 = arith.addf %20, %21 : vector<512x128xf32>
    %cst = arith.constant 5.000000e-01 : f32
    %23 = vector.broadcast %cst : f32 to vector<512x128xf32>
    %24 = arith.mulf %23, %22 : vector<512x128xf32>
    %cst_13 = arith.constant 0.000000e+00 : f32
    %25 = vector.broadcast %cst_13 : f32 to vector<512x128xf32>
    %26 = arith.maximumf %24, %25 : vector<512x128xf32>
    %c0_14 = arith.constant 0 : index
    %c0_15 = arith.constant 0 : index
    %27 = vector.load %arg8[%c0_14, %c0_15] : memref<512x128xf32, #tpu.memory_space<vmem>>, vector<512x128xf32>
    tpu.vector_store %arg8[%c0_14, %c0_15], %26 {strides = array<i32>} : memref<512x128xf32, #tpu.memory_space<vmem>>, vector<512x128xf32>,
    return
  }
  func.func @transform_0(%arg0: i32) -> (i32, i32) {
    %c0_i32 = arith.constant 0 : i32
    %c0_i32_0 = arith.constant 0 : i32
    return %arg0, %c0_i32 : i32, i32
  }
  func.func @transform_1(%arg0: i32) -> (i32, i32) {
    %c0_i32 = arith.constant 0 : i32
    %c0_i32_0 = arith.constant 0 : i32
    return %arg0, %c0_i32 : i32, i32
  }
  func.func @transform_2(%arg0: i32) -> (i32, i32) {
    %c0_i32 = arith.constant 0 : i32
    %c0_i32_0 = arith.constant 0 : i32
    %c0_i32_1 = arith.constant 0 : i32
    return %c0_i32, %c0_i32_0 : i32, i32
  }
  func.func @transform_3(%arg0: i32) -> (i32, i32) {
    %c0_i32 = arith.constant 0 : i32
    %c0_i32_0 = arith.constant 0 : i32
    %c0_i32_1 = arith.constant 0 : i32
    return %c0_i32, %c0_i32_0 : i32, i32
  }
  func.func @transform_4(%arg0: i32) -> (i32, i32) {
    %c0_i32 = arith.constant 0 : i32
    %c0_i32_0 = arith.constant 0 : i32
    %c0_i32_1 = arith.constant 0 : i32
    return %c0_i32, %c0_i32_0 : i32, i32
  }
  func.func @transform_5(%arg0: i32) -> (i32, i32) {
    %c0_i32 = arith.constant 0 : i32
    %c0_i32_0 = arith.constant 0 : i32
    %c0_i32_1 = arith.constant 0 : i32
    return %c0_i32, %c0_i32_0 : i32, i32
  }
  func.func @transform_6(%arg0: i32) -> (i32, i32) {
    %c0_i32 = arith.constant 0 : i32
    %c0_i32_0 = arith.constant 0 : i32
    %c0_i32_1 = arith.constant 0 : i32
    return %c0_i32, %c0_i32_0 : i32, i32
  }
  func.func @transform_7(%arg0: i32) -> (i32, i32) {
    %c0_i32 = arith.constant 0 : i32
    %c0_i32_0 = arith.constant 0 : i32
    return %arg0, %c0_i32 : i32, i32
  }
}

</mosaic_0001>

<llo_original>
// kernel: basic_block_forward.6
$region0: #{basic_block_forward.6}
  #allocation0 [shape = 'u32[]', space=smem, size = 0x4, offset = 0x4, fixed_abs, tag = 'smem constant byte address 0x4 - core index']
  #allocation1 [shape = 'u32[144,128]{1,0:T(1,128)}', space=vmem, size = 0x12000, scoped, tag = 'internal scratch']
  #allocation2 [shape = 'f32[1,1]{1,0:T(1,128)S(6)}', space=smem, size = 0x200, scoped, tag = 'scoped memory for basic_block_forward.6']
  %s0 = inlined_call_operand.vmem [shape: f32[512,128], index: 0, kind: input, shape index: {}]
  %s1 = inlined_call_operand.vmem [shape: f32[1,128], index: 1, kind: input, shape index: {}]
  %s2 = inlined_call_operand.vmem [shape: f32[1,128], index: 2, kind: input, shape index: {}]
  %s3 = inlined_call_operand.<no memory space> [shape: f32[1,1], index: 3, kind: input, shape index: {}]
  %s4 = inlined_call_operand.vmem [shape: bf16[512,128], index: 4, kind: output, shape index: {}]
  %s5 = sld [smem:[#allocation0]]
  $region26: #{basic_block_forward.6} parent=0
    _
  %s7 = ssub.s32 1, %s5
  %s8 = scalar_select 0, %s7, %s5
  %9 = sst [smem:[#allocation2]] %s3
  // Predicated region
  $region2: #{basic_block_forward.6} parent=0 // pred_check
    _
  $region3: #{basic_block_forward.6} parent=0 // pred_check_branch
    %11 = sbr.rel (0) target = $region5
  $region4: #{basic_block_forward.6} parent=0 // pred_region
    _
  $region5: #{basic_block_forward.6} parent=0 // pred_fallthru
    _
  // Predicated region
  $region6: #{basic_block_forward.6} parent=0 // pred_check
    _
  $region7: #{basic_block_forward.6} parent=0 // pred_check_branch
    %13 = sbr.rel (0) target = $region9
  $region8: #{basic_block_forward.6} parent=0 // pred_region
    _
  $region9: #{basic_block_forward.6} parent=0 // pred_fallthru
    _
  // Predicated region
  $region10: #{basic_block_forward.6} parent=0 // pred_check
    _
  $region11: #{basic_block_forward.6} parent=0 // pred_check_branch
    %15 = sbr.rel (0) target = $region13
  $region12: #{basic_block_forward.6} parent=0 // pred_region
    _
  $region13: #{basic_block_forward.6} parent=0 // pred_fallthru
    _
  // Predicated region
  $region14: #{basic_block_forward.6} parent=0 // pred_check
    _
  $region15: #{basic_block_forward.6} parent=0 // pred_check_branch
    %17 = sbr.rel (0) target = $region17
  $region16: #{basic_block_forward.6} parent=0 // pred_region
    _
  $region17: #{basic_block_forward.6} parent=0 // pred_fallthru
    _
  %v18 = vld [vmem:[%s0] sm:$0xff]
  %v19 = vld [vmem:[%s0 + $0x8] sm:$0xff]
  %v20 = vld [vmem:[%s0 + $0x10] sm:$0xff]
  %v21 = vld [vmem:[%s0 + $0x18] sm:$0xff]
  %v22 = vld [vmem:[%s0 + $0x20] sm:$0xff]
  %v23 = vld [vmem:[%s0 + $0x28] sm:$0xff]
  %v24 = vld [vmem:[%s0 + $0x30] sm:$0xff]
  %v25 = vld [vmem:[%s0 + $0x38] sm:$0xff]
  %v26 = vld [vmem:[%s0 + $0x40] sm:$0xff]
  %v27 = vld [vmem:[%s0 + $0x48] sm:$0xff]
  %v28 = vld [vmem:[%s0 + $0x50] sm:$0xff]
  %v29 = vld [vmem:[%s0 + $0x58] sm:$0xff]
  %v30 = vld [vmem:[%s0 + $0x60] sm:$0xff]
  %v31 = vld [vmem:[%s0 + $0x68] sm:$0xff]
  %v32 = vld [vmem:[%s0 + $0x70] sm:$0xff]
  %v33 = vld [vmem:[%s0 + $0x78] sm:$0xff]
  %v34 = vld [vmem:[%s0 + $0x80] sm:$0xff]
  %v35 = vld [vmem:[%s0 + $0x88] sm:$0xff]
  %v36 = vld [vmem:[%s0 + $0x90] sm:$0xff]
  %v37 = vld [vmem:[%s0 + $0x98] sm:$0xff]
  %v38 = vld [vmem:[%s0 + $0xa0] sm:$0xff]
  %v39 = vld [vmem:[%s0 + $0xa8] sm:$0xff]
  %v40 = vld [vmem:[%s0 + $0xb0] sm:$0xff]
  %v41 = vld [vmem:[%s0 + $0xb8] sm:$0xff]
  %v42 = vld [vmem:[%s0 + $0xc0] sm:$0xff]
  %v43 = vld [vmem:[%s0 + $0xc8] sm:$0xff]
  %v44 = vld [vmem:[%s0 + $0xd0] sm:$0xff]
  %v45 = vld [vmem:[%s0 + $0xd8] sm:$0xff]
  %v46 = vld [vmem:[%s0 + $0xe0] sm:$0xff]
  %v47 = vld [vmem:[%s0 + $0xe8] sm:$0xff]
  %v48 = vld [vmem:[%s0 + $0xf0] sm:$0xff]
  %v49 = vld [vmem:[%s0 + $0xf8] sm:$0xff]
  %v50 = vld [vmem:[%s0 + $0x100] sm:$0xff]
  %v51 = vld [vmem:[%s0 + $0x108] sm:$0xff]
  %v52 = vld [vmem:[%s0 + $0x110] sm:$0xff]
  %v53 = vld [vmem:[%s0 + $0x118] sm:$0xff]
  %v54 = vld [vmem:[%s0 + $0x120] sm:$0xff]
  %v55 = vld [vmem:[%s0 + $0x128] sm:$0xff]
  %v56 = vld [vmem:[%s0 + $0x130] sm:$0xff]
  %v57 = vld [vmem:[%s0 + $0x138] sm:$0xff]
  %v58 = vld [vmem:[%s0 + $0x140] sm:$0xff]
  %v59 = vld [vmem:[%s0 + $0x148] sm:$0xff]
  %v60 = vld [vmem:[%s0 + $0x150] sm:$0xff]
  %v61 = vld [vmem:[%s0 + $0x158] sm:$0xff]
  %v62 = vld [vmem:[%s0 + $0x160] sm:$0xff]
  %v63 = vld [vmem:[%s0 + $0x168] sm:$0xff]
  %v64 = vld [vmem:[%s0 + $0x170] sm:$0xff]
  %v65 = vld [vmem:[%s0 + $0x178] sm:$0xff]
  %v66 = vld [vmem:[%s0 + $0x180] sm:$0xff]
  %v67 = vld [vmem:[%s0 + $0x188] sm:$0xff]
  %v68 = vld [vmem:[%s0 + $0x190] sm:$0xff]
  %v69 = vld [vmem:[%s0 + $0x198] sm:$0xff]
  %v70 = vld [vmem:[%s0 + $0x1a0] sm:$0xff]
  %v71 = vld [vmem:[%s0 + $0x1a8] sm:$0xff]
  %v72 = vld [vmem:[%s0 + $0x1b0] sm:$0xff]
  %v73 = vld [vmem:[%s0 + $0x1b8] sm:$0xff]
  %v74 = vld [vmem:[%s0 + $0x1c0] sm:$0xff]
  %v75 = vld [vmem:[%s0 + $0x1c8] sm:$0xff]
  %v76 = vld [vmem:[%s0 + $0x1d0] sm:$0xff]
  %v77 = vld [vmem:[%s0 + $0x1d8] sm:$0xff]
  %v78 = vld [vmem:[%s0 + $0x1e0] sm:$0xff]
  %v79 = vld [vmem:[%s0 + $0x1e8] sm:$0xff]
  %v80 = vld [vmem:[%s0 + $0x1f0] sm:$0xff]
  %v81 = vld [vmem:[%s0 + $0x1f8] sm:$0xff]
  %v82 = vld [vmem:[%s1] sm:$0x1]
  %v84 = vlaneseq
  %v85 = vshrl.u32 %v84, 7
  %v86 = vsub.s32 0, %v85
  %v87 = vrot.slane %v82, %v86
  %v89 = vmul.f32 %v18, %v87
  %v90 = vmul.f32 %v19, %v87
  %v91 = vmul.f32 %v20, %v87
  %v92 = vmul.f32 %v21, %v87
  %v93 = vmul.f32 %v22, %v87
  %v94 = vmul.f32 %v23, %v87
  %v95 = vmul.f32 %v24, %v87
  %v96 = vmul.f32 %v25, %v87
  %v97 = vmul.f32 %v26, %v87
  %v98 = vmul.f32 %v27, %v87
  %v99 = vmul.f32 %v28, %v87
  %v100 = vmul.f32 %v29, %v87
  %v101 = vmul.f32 %v30, %v87
  %v102 = vmul.f32 %v31, %v87
  %v103 = vmul.f32 %v32, %v87
  %v104 = vmul.f32 %v33, %v87
  %v105 = vmul.f32 %v34, %v87
  %v106 = vmul.f32 %v35, %v87
  %v107 = vmul.f32 %v36, %v87
  %v108 = vmul.f32 %v37, %v87
  %v109 = vmul.f32 %v38, %v87
  %v110 = vmul.f32 %v39, %v87
  %v111 = vmul.f32 %v40, %v87
  %v112 = vmul.f32 %v41, %v87
  %v113 = vmul.f32 %v42, %v87
  %v114 = vmul.f32 %v43, %v87
  %v115 = vmul.f32 %v44, %v87
  %v116 = vmul.f32 %v45, %v87
  %v117 = vmul.f32 %v46, %v87
  %v118 = vmul.f32 %v47, %v87
  %v119 = vmul.f32 %v48, %v87
  %v120 = vmul.f32 %v49, %v87
  %v121 = vmul.f32 %v50, %v87
  %v122 = vmul.f32 %v51, %v87
  %v123 = vmul.f32 %v52, %v87
  %v124 = vmul.f32 %v53, %v87
  %v125 = vmul.f32 %v54, %v87
  %v126 = vmul.f32 %v55, %v87
  %v127 = vmul.f32 %v56, %v87
  %v128 = vmul.f32 %v57, %v87
  %v129 = vmul.f32 %v58, %v87
  %v130 = vmul.f32 %v59, %v87
  %v131 = vmul.f32 %v60, %v87
  %v132 = vmul.f32 %v61, %v87
  %v133 = vmul.f32 %v62, %v87
  %v134 = vmul.f32 %v63, %v87
  %v135 = vmul.f32 %v64, %v87
  %v136 = vmul.f32 %v65, %v87
  %v137 = vmul.f32 %v66, %v87
  %v138 = vmul.f32 %v67, %v87
  %v139 = vmul.f32 %v68, %v87
  %v140 = vmul.f32 %v69, %v87
  %v141 = vmul.f32 %v70, %v87
  %v142 = vmul.f32 %v71, %v87
  %v143 = vmul.f32 %v72, %v87
  %v144 = vmul.f32 %v73, %v87
  %v145 = vmul.f32 %v74, %v87
  %v146 = vmul.f32 %v75, %v87
  %v147 = vmul.f32 %v76, %v87
  %v148 = vmul.f32 %v77, %v87
  %v149 = vmul.f32 %v78, %v87
  %v150 = vmul.f32 %v79, %v87
  %v151 = vmul.f32 %v80, %v87
  %v152 = vmul.f32 %v81, %v87
  %v153 = vld [vmem:[%s2] sm:$0x1]
  %v155 = vlaneseq
  %v156 = vshrl.u32 %v155, 7
  %v157 = vsub.s32 0, %v156
  %v158 = vrot.slane %v153, %v157
  %v160 = vadd.f32 %v89, %v158
  %v161 = vadd.f32 %v90, %v158
  %v162 = vadd.f32 %v91, %v158
  %v163 = vadd.f32 %v92, %v158
  %v164 = vadd.f32 %v93, %v158
  %v165 = vadd.f32 %v94, %v158
  %v166 = vadd.f32 %v95, %v158
  %v167 = vadd.f32 %v96, %v158
  %v168 = vadd.f32 %v97, %v158
  %v169 = vadd.f32 %v98, %v158
  %v170 = vadd.f32 %v99, %v158
  %v171 = vadd.f32 %v100, %v158
  %v172 = vadd.f32 %v101, %v158
  %v173 = vadd.f32 %v102, %v158
  %v174 = vadd.f32 %v103, %v158
  %v175 = vadd.f32 %v104, %v158
  %v176 = vadd.f32 %v105, %v158
  %v177 = vadd.f32 %v106, %v158
  %v178 = vadd.f32 %v107, %v158
  %v179 = vadd.f32 %v108, %v158
  %v180 = vadd.f32 %v109, %v158
  %v181 = vadd.f32 %v110, %v158
  %v182 = vadd.f32 %v111, %v158
  %v183 = vadd.f32 %v112, %v158
  %v184 = vadd.f32 %v113, %v158
  %v185 = vadd.f32 %v114, %v158
  %v186 = vadd.f32 %v115, %v158
  %v187 = vadd.f32 %v116, %v158
  %v188 = vadd.f32 %v117, %v158
  %v189 = vadd.f32 %v118, %v158
  %v190 = vadd.f32 %v119, %v158
  %v191 = vadd.f32 %v120, %v158
  %v192 = vadd.f32 %v121, %v158
  %v193 = vadd.f32 %v122, %v158
  %v194 = vadd.f32 %v123, %v158
  %v195 = vadd.f32 %v124, %v158
  %v196 = vadd.f32 %v125, %v158
  %v197 = vadd.f32 %v126, %v158
  %v198 = vadd.f32 %v127, %v158
  %v199 = vadd.f32 %v128, %v158
  %v200 = vadd.f32 %v129, %v158
  %v201 = vadd.f32 %v130, %v158
  %v202 = vadd.f32 %v131, %v158
  %v203 = vadd.f32 %v132, %v158
  %v204 = vadd.f32 %v133, %v158
  %v205 = vadd.f32 %v134, %v158
  %v206 = vadd.f32 %v135, %v158
  %v207 = vadd.f32 %v136, %v158
  %v208 = vadd.f32 %v137, %v158
  %v209 = vadd.f32 %v138, %v158
  %v210 = vadd.f32 %v139, %v158
  %v211 = vadd.f32 %v140, %v158
  %v212 = vadd.f32 %v141, %v158
  %v213 = vadd.f32 %v142, %v158
  %v214 = vadd.f32 %v143, %v158
  %v215 = vadd.f32 %v144, %v158
  %v216 = vadd.f32 %v145, %v158
  %v217 = vadd.f32 %v146, %v158
  %v218 = vadd.f32 %v147, %v158
  %v219 = vadd.f32 %v148, %v158
  %v220 = vadd.f32 %v149, %v158
  %v221 = vadd.f32 %v150, %v158
  %v222 = vadd.f32 %v151, %v158
  %v223 = vadd.f32 %v152, %v158
  %s224 = sld [smem:[#allocation2]]
  %v225 = vand.u32 2147483647, %v160
  %v226 = vand.u32 2147483647, %v161
  %v227 = vand.u32 2147483647, %v162
  %v228 = vand.u32 2147483647, %v163
  %v229 = vand.u32 2147483647, %v164
  %v230 = vand.u32 2147483647, %v165
  %v231 = vand.u32 2147483647, %v166
  %v232 = vand.u32 2147483647, %v167
  %v233 = vand.u32 2147483647, %v168
  %v234 = vand.u32 2147483647, %v169
  %v235 = vand.u32 2147483647, %v170
  %v236 = vand.u32 2147483647, %v171
  %v237 = vand.u32 2147483647, %v172
  %v238 = vand.u32 2147483647, %v173
  %v239 = vand.u32 2147483647, %v174
  %v240 = vand.u32 2147483647, %v175
  %v241 = vand.u32 2147483647, %v176
  %v242 = vand.u32 2147483647, %v177
  %v243 = vand.u32 2147483647, %v178
  %v244 = vand.u32 2147483647, %v179
  %v245 = vand.u32 2147483647, %v180
  %v246 = vand.u32 2147483647, %v181
  %v247 = vand.u32 2147483647, %v182
  %v248 = vand.u32 2147483647, %v183
  %v249 = vand.u32 2147483647, %v184
  %v250 = vand.u32 2147483647, %v185
  %v251 = vand.u32 2147483647, %v186
  %v252 = vand.u32 2147483647, %v187
  %v253 = vand.u32 2147483647, %v188
  %v254 = vand.u32 2147483647, %v189
  %v255 = vand.u32 2147483647, %v190
  %v256 = vand.u32 2147483647, %v191
  %v257 = vand.u32 2147483647, %v192
  %v258 = vand.u32 2147483647, %v193
  %v259 = vand.u32 2147483647, %v194
  %v260 = vand.u32 2147483647, %v195
  %v261 = vand.u32 2147483647, %v196
  %v262 = vand.u32 2147483647, %v197
  %v263 = vand.u32 2147483647, %v198
  %v264 = vand.u32 2147483647, %v199
  %v265 = vand.u32 2147483647, %v200
  %v266 = vand.u32 2147483647, %v201
  %v267 = vand.u32 2147483647, %v202
  %v268 = vand.u32 2147483647, %v203
  %v269 = vand.u32 2147483647, %v204
  %v270 = vand.u32 2147483647, %v205
  %v271 = vand.u32 2147483647, %v206
  %v272 = vand.u32 2147483647, %v207
  %v273 = vand.u32 2147483647, %v208
  %v274 = vand.u32 2147483647, %v209
  %v275 = vand.u32 2147483647, %v210
  %v276 = vand.u32 2147483647, %v211
  %v277 = vand.u32 2147483647, %v212
  %v278 = vand.u32 2147483647, %v213
  %v279 = vand.u32 2147483647, %v214
  %v280 = vand.u32 2147483647, %v215
  %v281 = vand.u32 2147483647, %v216
  %v282 = vand.u32 2147483647, %v217
  %v283 = vand.u32 2147483647, %v218
  %v284 = vand.u32 2147483647, %v219
  %v285 = vand.u32 2147483647, %v220
  %v286 = vand.u32 2147483647, %v221
  %v287 = vand.u32 2147483647, %v222
  %v288 = vand.u32 2147483647, %v223
  %v289 = vstv %s224
  %v290 = vsub.f32 %v160, %v289
  %v291 = vsub.f32 %v161, %v289
  %v292 = vsub.f32 %v162, %v289
  %v293 = vsub.f32 %v163, %v289
  %v294 = vsub.f32 %v164, %v289
  %v295 = vsub.f32 %v165, %v289
  %v296 = vsub.f32 %v166, %v289
  %v297 = vsub.f32 %v167, %v289
  %v298 = vsub.f32 %v168, %v289
  %v299 = vsub.f32 %v169, %v289
  %v300 = vsub.f32 %v170, %v289
  %v301 = vsub.f32 %v171, %v289
  %v302 = vsub.f32 %v172, %v289
  %v303 = vsub.f32 %v173, %v289
  %v304 = vsub.f32 %v174, %v289
  %v305 = vsub.f32 %v175, %v289
  %v306 = vsub.f32 %v176, %v289
  %v307 = vsub.f32 %v177, %v289
  %v308 = vsub.f32 %v178, %v289
  %v309 = vsub.f32 %v179, %v289
  %v310 = vsub.f32 %v180, %v289
  %v311 = vsub.f32 %v181, %v289
  %v312 = vsub.f32 %v182, %v289
  %v313 = vsub.f32 %v183, %v289
  %v314 = vsub.f32 %v184, %v289
  %v315 = vsub.f32 %v185, %v289
  %v316 = vsub.f32 %v186, %v289
  %v317 = vsub.f32 %v187, %v289
  %v318 = vsub.f32 %v188, %v289
  %v319 = vsub.f32 %v189, %v289
  %v320 = vsub.f32 %v190, %v289
  %v321 = vsub.f32 %v191, %v289
  %v322 = vsub.f32 %v192, %v289
  %v323 = vsub.f32 %v193, %v289
  %v324 = vsub.f32 %v194, %v289
  %v325 = vsub.f32 %v195, %v289
  %v326 = vsub.f32 %v196, %v289
  %v327 = vsub.f32 %v197, %v289
  %v328 = vsub.f32 %v198, %v289
  %v329 = vsub.f32 %v199, %v289
  %v330 = vsub.f32 %v200, %v289
  %v331 = vsub.f32 %v201, %v289
  %v332 = vsub.f32 %v202, %v289
  %v333 = vsub.f32 %v203, %v289
  %v334 = vsub.f32 %v204, %v289
  %v335 = vsub.f32 %v205, %v289
  %v336 = vsub.f32 %v206, %v289
  %v337 = vsub.f32 %v207, %v289
  %v338 = vsub.f32 %v208, %v289
  %v339 = vsub.f32 %v209, %v289
  %v340 = vsub.f32 %v210, %v289
  %v341 = vsub.f32 %v211, %v289
  %v342 = vsub.f32 %v212, %v289
  %v343 = vsub.f32 %v213, %v289
  %v344 = vsub.f32 %v214, %v289
  %v345 = vsub.f32 %v215, %v289
  %v346 = vsub.f32 %v216, %v289
  %v347 = vsub.f32 %v217, %v289
  %v348 = vsub.f32 %v218, %v289
  %v349 = vsub.f32 %v219, %v289
  %v350 = vsub.f32 %v220, %v289
  %v351 = vsub.f32 %v221, %v289
  %v352 = vsub.f32 %v222, %v289
  %v353 = vsub.f32 %v223, %v289
  %v354 = vand.u32 2147483647, %v290
  %v355 = vand.u32 2147483647, %v291
  %v356 = vand.u32 2147483647, %v292
  %v357 = vand.u32 2147483647, %v293
  %v358 = vand.u32 2147483647, %v294
  %v359 = vand.u32 2147483647, %v295
  %v360 = vand.u32 2147483647, %v296
  %v361 = vand.u32 2147483647, %v297
  %v362 = vand.u32 2147483647, %v298
  %v363 = vand.u32 2147483647, %v299
  %v364 = vand.u32 2147483647, %v300
  %v365 = vand.u32 2147483647, %v301
  %v366 = vand.u32 2147483647, %v302
  %v367 = vand.u32 2147483647, %v303
  %v368 = vand.u32 2147483647, %v304
  %v369 = vand.u32 2147483647, %v305
  %v370 = vand.u32 2147483647, %v306
  %v371 = vand.u32 2147483647, %v307
  %v372 = vand.u32 2147483647, %v308
  %v373 = vand.u32 2147483647, %v309
  %v374 = vand.u32 2147483647, %v310
  %v375 = vand.u32 2147483647, %v311
  %v376 = vand.u32 2147483647, %v312
  %v377 = vand.u32 2147483647, %v313
  %v378 = vand.u32 2147483647, %v314
  %v379 = vand.u32 2147483647, %v315
  %v380 = vand.u32 2147483647, %v316
  %v381 = vand.u32 2147483647, %v317
  %v382 = vand.u32 2147483647, %v318
  %v383 = vand.u32 2147483647, %v319
  %v384 = vand.u32 2147483647, %v320
  %v385 = vand.u32 2147483647, %v321
  %v386 = vand.u32 2147483647, %v322
  %v387 = vand.u32 2147483647, %v323
  %v388 = vand.u32 2147483647, %v324
  %v389 = vand.u32 2147483647, %v325
  %v390 = vand.u32 2147483647, %v326
  %v391 = vand.u32 2147483647, %v327
  %v392 = vand.u32 2147483647, %v328
  %v393 = vand.u32 2147483647, %v329
  %v394 = vand.u32 2147483647, %v330
  %v395 = vand.u32 2147483647, %v331
  %v396 = vand.u32 2147483647, %v332
  %v397 = vand.u32 2147483647, %v333
  %v398 = vand.u32 2147483647, %v334
  %v399 = vand.u32 2147483647, %v335
  %v400 = vand.u32 2147483647, %v336
  %v401 = vand.u32 2147483647, %v337
  %v402 = vand.u32 2147483647, %v338
  %v403 = vand.u32 2147483647, %v339
  %v404 = vand.u32 2147483647, %v340
  %v405 = vand.u32 2147483647, %v341
  %v406 = vand.u32 2147483647, %v342
  %v407 = vand.u32 2147483647, %v343
  %v408 = vand.u32 2147483647, %v344
  %v409 = vand.u32 2147483647, %v345
  %v410 = vand.u32 2147483647, %v346
  %v411 = vand.u32 2147483647, %v347
  %v412 = vand.u32 2147483647, %v348
  %v413 = vand.u32 2147483647, %v349
  %v414 = vand.u32 2147483647, %v350
  %v415 = vand.u32 2147483647, %v351
  %v416 = vand.u32 2147483647, %v352
  %v417 = vand.u32 2147483647, %v353
  %v418 = vsub.f32 %v225, %v354
  %v419 = vsub.f32 %v226, %v355
  %v420 = vsub.f32 %v227, %v356
  %v421 = vsub.f32 %v228, %v357
  %v422 = vsub.f32 %v229, %v358
  %v423 = vsub.f32 %v230, %v359
  %v424 = vsub.f32 %v231, %v360
  %v425 = vsub.f32 %v232, %v361
  %v426 = vsub.f32 %v233, %v362
  %v427 = vsub.f32 %v234, %v363
  %v428 = vsub.f32 %v235, %v364
  %v429 = vsub.f32 %v236, %v365
  %v430 = vsub.f32 %v237, %v366
  %v431 = vsub.f32 %v238, %v367
  %v432 = vsub.f32 %v239, %v368
  %v433 = vsub.f32 %v240, %v369
  %v434 = vsub.f32 %v241, %v370
  %v435 = vsub.f32 %v242, %v371
  %v436 = vsub.f32 %v243, %v372
  %v437 = vsub.f32 %v244, %v373
  %v438 = vsub.f32 %v245, %v374
  %v439 = vsub.f32 %v246, %v375
  %v440 = vsub.f32 %v247, %v376
  %v441 = vsub.f32 %v248, %v377
  %v442 = vsub.f32 %v249, %v378
  %v443 = vsub.f32 %v250, %v379
  %v444 = vsub.f32 %v251, %v380
  %v445 = vsub.f32 %v252, %v381
  %v446 = vsub.f32 %v253, %v382
  %v447 = vsub.f32 %v254, %v383
  %v448 = vsub.f32 %v255, %v384
  %v449 = vsub.f32 %v256, %v385
  %v450 = vsub.f32 %v257, %v386
  %v451 = vsub.f32 %v258, %v387
  %v452 = vsub.f32 %v259, %v388
  %v453 = vsub.f32 %v260, %v389
  %v454 = vsub.f32 %v261, %v390
  %v455 = vsub.f32 %v262, %v391
  %v456 = vsub.f32 %v263, %v392
  %v457 = vsub.f32 %v264, %v393
  %v458 = vsub.f32 %v265, %v394
  %v459 = vsub.f32 %v266, %v395
  %v460 = vsub.f32 %v267, %v396
  %v461 = vsub.f32 %v268, %v397
  %v462 = vsub.f32 %v269, %v398
  %v463 = vsub.f32 %v270, %v399
  %v464 = vsub.f32 %v271, %v400
  %v465 = vsub.f32 %v272, %v401
  %v466 = vsub.f32 %v273, %v402
  %v467 = vsub.f32 %v274, %v403
  %v468 = vsub.f32 %v275, %v404
  %v469 = vsub.f32 %v276, %v405
  %v470 = vsub.f32 %v277, %v406
  %v471 = vsub.f32 %v278, %v407
  %v472 = vsub.f32 %v279, %v408
  %v473 = vsub.f32 %v280, %v409
  %v474 = vsub.f32 %v281, %v410
  %v475 = vsub.f32 %v282, %v411
  %v476 = vsub.f32 %v283, %v412
  %v477 = vsub.f32 %v284, %v413
  %v478 = vsub.f32 %v285, %v414
  %v479 = vsub.f32 %v286, %v415
  %v480 = vsub.f32 %v287, %v416
  %v481 = vsub.f32 %v288, %v417
  %v482 = vadd.f32 %v418, %v289
  %v483 = vadd.f32 %v419, %v289
  %v484 = vadd.f32 %v420, %v289
  %v485 = vadd.f32 %v421, %v289
  %v486 = vadd.f32 %v422, %v289
  %v487 = vadd.f32 %v423, %v289
  %v488 = vadd.f32 %v424, %v289
  %v489 = vadd.f32 %v425, %v289
  %v490 = vadd.f32 %v426, %v289
  %v491 = vadd.f32 %v427, %v289
  %v492 = vadd.f32 %v428, %v289
  %v493 = vadd.f32 %v429, %v289
  %v494 = vadd.f32 %v430, %v289
  %v495 = vadd.f32 %v431, %v289
  %v496 = vadd.f32 %v432, %v289
  %v497 = vadd.f32 %v433, %v289
  %v498 = vadd.f32 %v434, %v289
  %v499 = vadd.f32 %v435, %v289
  %v500 = vadd.f32 %v436, %v289
  %v501 = vadd.f32 %v437, %v289
  %v502 = vadd.f32 %v438, %v289
  %v503 = vadd.f32 %v439, %v289
  %v504 = vadd.f32 %v440, %v289
  %v505 = vadd.f32 %v441, %v289
  %v506 = vadd.f32 %v442, %v289
  %v507 = vadd.f32 %v443, %v289
  %v508 = vadd.f32 %v444, %v289
  %v509 = vadd.f32 %v445, %v289
  %v510 = vadd.f32 %v446, %v289
  %v511 = vadd.f32 %v447, %v289
  %v512 = vadd.f32 %v448, %v289
  %v513 = vadd.f32 %v449, %v289
  %v514 = vadd.f32 %v450, %v289
  %v515 = vadd.f32 %v451, %v289
  %v516 = vadd.f32 %v452, %v289
  %v517 = vadd.f32 %v453, %v289
  %v518 = vadd.f32 %v454, %v289
  %v519 = vadd.f32 %v455, %v289
  %v520 = vadd.f32 %v456, %v289
  %v521 = vadd.f32 %v457, %v289
  %v522 = vadd.f32 %v458, %v289
  %v523 = vadd.f32 %v459, %v289
  %v524 = vadd.f32 %v460, %v289
  %v525 = vadd.f32 %v461, %v289
  %v526 = vadd.f32 %v462, %v289
  %v527 = vadd.f32 %v463, %v289
  %v528 = vadd.f32 %v464, %v289
  %v529 = vadd.f32 %v465, %v289
  %v530 = vadd.f32 %v466, %v289
  %v531 = vadd.f32 %v467, %v289
  %v532 = vadd.f32 %v468, %v289
  %v533 = vadd.f32 %v469, %v289
  %v534 = vadd.f32 %v470, %v289
  %v535 = vadd.f32 %v471, %v289
  %v536 = vadd.f32 %v472, %v289
  %v537 = vadd.f32 %v473, %v289
  %v538 = vadd.f32 %v474, %v289
  %v539 = vadd.f32 %v475, %v289
  %v540 = vadd.f32 %v476, %v289
  %v541 = vadd.f32 %v477, %v289
  %v542 = vadd.f32 %v478, %v289
  %v543 = vadd.f32 %v479, %v289
  %v544 = vadd.f32 %v480, %v289
  %v545 = vadd.f32 %v481, %v289
  %v546 = vmul.f32 %v482, 0.5
  %v547 = vmul.f32 %v483, 0.5
  %v548 = vmul.f32 %v484, 0.5
  %v549 = vmul.f32 %v485, 0.5
  %v550 = vmul.f32 %v486, 0.5
  %v551 = vmul.f32 %v487, 0.5
  %v552 = vmul.f32 %v488, 0.5
  %v553 = vmul.f32 %v489, 0.5
  %v554 = vmul.f32 %v490, 0.5
  %v555 = vmul.f32 %v491, 0.5
  %v556 = vmul.f32 %v492, 0.5
  %v557 = vmul.f32 %v493, 0.5
  %v558 = vmul.f32 %v494, 0.5
  %v559 = vmul.f32 %v495, 0.5
  %v560 = vmul.f32 %v496, 0.5
  %v561 = vmul.f32 %v497, 0.5
  %v562 = vmul.f32 %v498, 0.5
  %v563 = vmul.f32 %v499, 0.5
  %v564 = vmul.f32 %v500, 0.5
  %v565 = vmul.f32 %v501, 0.5
  %v566 = vmul.f32 %v502, 0.5
  %v567 = vmul.f32 %v503, 0.5
  %v568 = vmul.f32 %v504, 0.5
  %v569 = vmul.f32 %v505, 0.5
  %v570 = vmul.f32 %v506, 0.5
  %v571 = vmul.f32 %v507, 0.5
  %v572 = vmul.f32 %v508, 0.5
  %v573 = vmul.f32 %v509, 0.5
  %v574 = vmul.f32 %v510, 0.5
  %v575 = vmul.f32 %v511, 0.5
  %v576 = vmul.f32 %v512, 0.5
  %v577 = vmul.f32 %v513, 0.5
  %v578 = vmul.f32 %v514, 0.5
  %v579 = vmul.f32 %v515, 0.5
  %v580 = vmul.f32 %v516, 0.5
  %v581 = vmul.f32 %v517, 0.5
  %v582 = vmul.f32 %v518, 0.5
  %v583 = vmul.f32 %v519, 0.5
  %v584 = vmul.f32 %v520, 0.5
  %v585 = vmul.f32 %v521, 0.5
  %v586 = vmul.f32 %v522, 0.5
  %v587 = vmul.f32 %v523, 0.5
  %v588 = vmul.f32 %v524, 0.5
  %v589 = vmul.f32 %v525, 0.5
  %v590 = vmul.f32 %v526, 0.5
  %v591 = vmul.f32 %v527, 0.5
  %v592 = vmul.f32 %v528, 0.5
  %v593 = vmul.f32 %v529, 0.5
  %v594 = vmul.f32 %v530, 0.5
  %v595 = vmul.f32 %v531, 0.5
  %v596 = vmul.f32 %v532, 0.5
  %v597 = vmul.f32 %v533, 0.5
  %v598 = vmul.f32 %v534, 0.5
  %v599 = vmul.f32 %v535, 0.5
  %v600 = vmul.f32 %v536, 0.5
  %v601 = vmul.f32 %v537, 0.5
  %v602 = vmul.f32 %v538, 0.5
  %v603 = vmul.f32 %v539, 0.5
  %v604 = vmul.f32 %v540, 0.5
  %v605 = vmul.f32 %v541, 0.5
  %v606 = vmul.f32 %v542, 0.5
  %v607 = vmul.f32 %v543, 0.5
  %v608 = vmul.f32 %v544, 0.5
  %v609 = vmul.f32 %v545, 0.5
  %v610 = vmax.f32 %v546, 0.0
  %v611 = vmax.f32 %v547, 0.0
  %v612 = vmax.f32 %v548, 0.0
  %v613 = vmax.f32 %v549, 0.0
  %v614 = vmax.f32 %v550, 0.0
  %v615 = vmax.f32 %v551, 0.0
  %v616 = vmax.f32 %v552, 0.0
  %v617 = vmax.f32 %v553, 0.0
  %v618 = vmax.f32 %v554, 0.0
  %v619 = vmax.f32 %v555, 0.0
  %v620 = vmax.f32 %v556, 0.0
  %v621 = vmax.f32 %v557, 0.0
  %v622 = vmax.f32 %v558, 0.0
  %v623 = vmax.f32 %v559, 0.0
  %v624 = vmax.f32 %v560, 0.0
  %v625 = vmax.f32 %v561, 0.0
  %v626 = vmax.f32 %v562, 0.0
  %v627 = vmax.f32 %v563, 0.0
  %v628 = vmax.f32 %v564, 0.0
  %v629 = vmax.f32 %v565, 0.0
  %v630 = vmax.f32 %v566, 0.0
  %v631 = vmax.f32 %v567, 0.0
  %v632 = vmax.f32 %v568, 0.0
  %v633 = vmax.f32 %v569, 0.0
  %v634 = vmax.f32 %v570, 0.0
  %v635 = vmax.f32 %v571, 0.0
  %v636 = vmax.f32 %v572, 0.0
  %v637 = vmax.f32 %v573, 0.0
  %v638 = vmax.f32 %v574, 0.0
  %v639 = vmax.f32 %v575, 0.0
  %v640 = vmax.f32 %v576, 0.0
  %v641 = vmax.f32 %v577, 0.0
  %v642 = vmax.f32 %v578, 0.0
  %v643 = vmax.f32 %v579, 0.0
  %v644 = vmax.f32 %v580, 0.0
  %v645 = vmax.f32 %v581, 0.0
  %v646 = vmax.f32 %v582, 0.0
  %v647 = vmax.f32 %v583, 0.0
  %v648 = vmax.f32 %v584, 0.0
  %v649 = vmax.f32 %v585, 0.0
  %v650 = vmax.f32 %v586, 0.0
  %v651 = vmax.f32 %v587, 0.0
  %v652 = vmax.f32 %v588, 0.0
  %v653 = vmax.f32 %v589, 0.0
  %v654 = vmax.f32 %v590, 0.0
  %v655 = vmax.f32 %v591, 0.0
  %v656 = vmax.f32 %v592, 0.0
  %v657 = vmax.f32 %v593, 0.0
  %v658 = vmax.f32 %v594, 0.0
  %v659 = vmax.f32 %v595, 0.0
  %v660 = vmax.f32 %v596, 0.0
  %v661 = vmax.f32 %v597, 0.0
  %v662 = vmax.f32 %v598, 0.0
  %v663 = vmax.f32 %v599, 0.0
  %v664 = vmax.f32 %v600, 0.0
  %v665 = vmax.f32 %v601, 0.0
  %v666 = vmax.f32 %v602, 0.0
  %v667 = vmax.f32 %v603, 0.0
  %v668 = vmax.f32 %v604, 0.0
  %v669 = vmax.f32 %v605, 0.0
  %v670 = vmax.f32 %v606, 0.0
  %v671 = vmax.f32 %v607, 0.0
  %v672 = vmax.f32 %v608, 0.0
  %v673 = vmax.f32 %v609, 0.0
  %v674 = vpack.c.bf16 %v611, %v610
  %v675 = vpack.c.bf16 %v613, %v612
  %v676 = vpack.c.bf16 %v615, %v614
  %v677 = vpack.c.bf16 %v617, %v616
  %v678 = vpack.c.bf16 %v619, %v618
  %v679 = vpack.c.bf16 %v621, %v620
  %v680 = vpack.c.bf16 %v623, %v622
  %v681 = vpack.c.bf16 %v625, %v624
  %v682 = vpack.c.bf16 %v627, %v626
  %v683 = vpack.c.bf16 %v629, %v628
  %v684 = vpack.c.bf16 %v631, %v630
  %v685 = vpack.c.bf16 %v633, %v632
  %v686 = vpack.c.bf16 %v635, %v634
  %v687 = vpack.c.bf16 %v637, %v636
  %v688 = vpack.c.bf16 %v639, %v638
  %v689 = vpack.c.bf16 %v641, %v640
  %v690 = vpack.c.bf16 %v643, %v642
  %v691 = vpack.c.bf16 %v645, %v644
  %v692 = vpack.c.bf16 %v647, %v646
  %v693 = vpack.c.bf16 %v649, %v648
  %v694 = vpack.c.bf16 %v651, %v650
  %v695 = vpack.c.bf16 %v653, %v652
  %v696 = vpack.c.bf16 %v655, %v654
  %v697 = vpack.c.bf16 %v657, %v656
  %v698 = vpack.c.bf16 %v659, %v658
  %v699 = vpack.c.bf16 %v661, %v660
  %v700 = vpack.c.bf16 %v663, %v662
  %v701 = vpack.c.bf16 %v665, %v664
  %v702 = vpack.c.bf16 %v667, %v666
  %v703 = vpack.c.bf16 %v669, %v668
  %v704 = vpack.c.bf16 %v671, %v670
  %v705 = vpack.c.bf16 %v673, %v672
  %v738 = vunpack.c.l.b16 %v674
  %v739 = vunpack.c.h.b16 %v674
  %v740 = vunpack.c.l.b16 %v675
  %v741 = vunpack.c.h.b16 %v675
  %v742 = vunpack.c.l.b16 %v676
  %v743 = vunpack.c.h.b16 %v676
  %v744 = vunpack.c.l.b16 %v677
  %v745 = vunpack.c.h.b16 %v677
  %v746 = vunpack.c.l.b16 %v678
  %v747 = vunpack.c.h.b16 %v678
  %v748 = vunpack.c.l.b16 %v679
  %v749 = vunpack.c.h.b16 %v679
  %v750 = vunpack.c.l.b16 %v680
  %v751 = vunpack.c.h.b16 %v680
  %v752 = vunpack.c.l.b16 %v681
  %v753 = vunpack.c.h.b16 %v681
  %v754 = vunpack.c.l.b16 %v682
  %v755 = vunpack.c.h.b16 %v682
  %v756 = vunpack.c.l.b16 %v683
  %v757 = vunpack.c.h.b16 %v683
  %v758 = vunpack.c.l.b16 %v684
  %v759 = vunpack.c.h.b16 %v684
  %v760 = vunpack.c.l.b16 %v685
  %v761 = vunpack.c.h.b16 %v685
  %v762 = vunpack.c.l.b16 %v686
  %v763 = vunpack.c.h.b16 %v686
  %v764 = vunpack.c.l.b16 %v687
  %v765 = vunpack.c.h.b16 %v687
  %v766 = vunpack.c.l.b16 %v688
  %v767 = vunpack.c.h.b16 %v688
  %v768 = vunpack.c.l.b16 %v689
  %v769 = vunpack.c.h.b16 %v689
  %v770 = vunpack.c.l.b16 %v690
  %v771 = vunpack.c.h.b16 %v690
  %v772 = vunpack.c.l.b16 %v691
  %v773 = vunpack.c.h.b16 %v691
  %v774 = vunpack.c.l.b16 %v692
  %v775 = vunpack.c.h.b16 %v692
  %v776 = vunpack.c.l.b16 %v693
  %v777 = vunpack.c.h.b16 %v693
  %v778 = vunpack.c.l.b16 %v694
  %v779 = vunpack.c.h.b16 %v694
  %v780 = vunpack.c.l.b16 %v695
  %v781 = vunpack.c.h.b16 %v695
  %v782 = vunpack.c.l.b16 %v696
  %v783 = vunpack.c.h.b16 %v696
  %v784 = vunpack.c.l.b16 %v697
  %v785 = vunpack.c.h.b16 %v697
  %v786 = vunpack.c.l.b16 %v698
  %v787 = vunpack.c.h.b16 %v698
  %v788 = vunpack.c.l.b16 %v699
  %v789 = vunpack.c.h.b16 %v699
  %v790 = vunpack.c.l.b16 %v700
  %v791 = vunpack.c.h.b16 %v700
  %v792 = vunpack.c.l.b16 %v701
  %v793 = vunpack.c.h.b16 %v701
  %v794 = vunpack.c.l.b16 %v702
  %v795 = vunpack.c.h.b16 %v702
  %v796 = vunpack.c.l.b16 %v703
  %v797 = vunpack.c.h.b16 %v703
  %v798 = vunpack.c.l.b16 %v704
  %v799 = vunpack.c.h.b16 %v704
  %v800 = vunpack.c.l.b16 %v705
  %v801 = vunpack.c.h.b16 %v705
  %v802 = vpack.c.b16 %v738, %v738
  %v803 = vpack.c.b16 %v739, %v739
  %v804 = vpack.c.b16 %v740, %v740
  %v805 = vpack.c.b16 %v741, %v741
  %v806 = vpack.c.b16 %v742, %v742
  %v807 = vpack.c.b16 %v743, %v743
  %v808 = vpack.c.b16 %v744, %v744
  %v809 = vpack.c.b16 %v745, %v745
  %v810 = vpack.c.b16 %v746, %v746
  %v811 = vpack.c.b16 %v747, %v747
  %v812 = vpack.c.b16 %v748, %v748
  %v813 = vpack.c.b16 %v749, %v749
  %v814 = vpack.c.b16 %v750, %v750
  %v815 = vpack.c.b16 %v751, %v751
  %v816 = vpack.c.b16 %v752, %v752
  %v817 = vpack.c.b16 %v753, %v753
  %v818 = vpack.c.b16 %v754, %v754
  %v819 = vpack.c.b16 %v755, %v755
  %v820 = vpack.c.b16 %v756, %v756
  %v821 = vpack.c.b16 %v757, %v757
  %v822 = vpack.c.b16 %v758, %v758
  %v823 = vpack.c.b16 %v759, %v759
  %v824 = vpack.c.b16 %v760, %v760
  %v825 = vpack.c.b16 %v761, %v761
  %v826 = vpack.c.b16 %v762, %v762
  %v827 = vpack.c.b16 %v763, %v763
  %v828 = vpack.c.b16 %v764, %v764
  %v829 = vpack.c.b16 %v765, %v765
  %v830 = vpack.c.b16 %v766, %v766
  %v831 = vpack.c.b16 %v767, %v767
  %v832 = vpack.c.b16 %v768, %v768
  %v833 = vpack.c.b16 %v769, %v769
  %v834 = vpack.c.b16 %v770, %v770
  %v835 = vpack.c.b16 %v771, %v771
  %v836 = vpack.c.b16 %v772, %v772
  %v837 = vpack.c.b16 %v773, %v773
  %v838 = vpack.c.b16 %v774, %v774
  %v839 = vpack.c.b16 %v775, %v775
  %v840 = vpack.c.b16 %v776, %v776
  %v841 = vpack.c.b16 %v777, %v777
  %v842 = vpack.c.b16 %v778, %v778
  %v843 = vpack.c.b16 %v779, %v779
  %v844 = vpack.c.b16 %v780, %v780
  %v845 = vpack.c.b16 %v781, %v781
  %v846 = vpack.c.b16 %v782, %v782
  %v847 = vpack.c.b16 %v783, %v783
  %v848 = vpack.c.b16 %v784, %v784
  %v849 = vpack.c.b16 %v785, %v785
  %v850 = vpack.c.b16 %v786, %v786
  %v851 = vpack.c.b16 %v787, %v787
  %v852 = vpack.c.b16 %v788, %v788
  %v853 = vpack.c.b16 %v789, %v789
  %v854 = vpack.c.b16 %v790, %v790
  %v855 = vpack.c.b16 %v791, %v791
  %v856 = vpack.c.b16 %v792, %v792
  %v857 = vpack.c.b16 %v793, %v793
  %v858 = vpack.c.b16 %v794, %v794
  %v859 = vpack.c.b16 %v795, %v795
  %v860 = vpack.c.b16 %v796, %v796
  %v861 = vpack.c.b16 %v797, %v797
  %v862 = vpack.c.b16 %v798, %v798
  %v863 = vpack.c.b16 %v799, %v799
  %v864 = vpack.c.b16 %v800, %v800
  %v865 = vpack.c.b16 %v801, %v801
  %930 = vst [vmem:[%s4] sm:$0xf] %v802
  %931 = vst [vmem:[%s4 + $0x4] sm:$0xf] %v803
  %932 = vst [vmem:[%s4 + $0x8] sm:$0xf] %v804
  %933 = vst [vmem:[%s4 + $0xc] sm:$0xf] %v805
  %934 = vst [vmem:[%s4 + $0x10] sm:$0xf] %v806
  %935 = vst [vmem:[%s4 + $0x14] sm:$0xf] %v807
  %936 = vst [vmem:[%s4 + $0x18] sm:$0xf] %v808
  %937 = vst [vmem:[%s4 + $0x1c] sm:$0xf] %v809
  %938 = vst [vmem:[%s4 + $0x20] sm:$0xf] %v810
  %939 = vst [vmem:[%s4 + $0x24] sm:$0xf] %v811
  %940 = vst [vmem:[%s4 + $0x28] sm:$0xf] %v812
  %941 = vst [vmem:[%s4 + $0x2c] sm:$0xf] %v813
  %942 = vst [vmem:[%s4 + $0x30] sm:$0xf] %v814
  %943 = vst [vmem:[%s4 + $0x34] sm:$0xf] %v815
  %944 = vst [vmem:[%s4 + $0x38] sm:$0xf] %v816
  %945 = vst [vmem:[%s4 + $0x3c] sm:$0xf] %v817
  %946 = vst [vmem:[%s4 + $0x40] sm:$0xf] %v818
  %947 = vst [vmem:[%s4 + $0x44] sm:$0xf] %v819
  %948 = vst [vmem:[%s4 + $0x48] sm:$0xf] %v820
  %949 = vst [vmem:[%s4 + $0x4c] sm:$0xf] %v821
  %950 = vst [vmem:[%s4 + $0x50] sm:$0xf] %v822
  %951 = vst [vmem:[%s4 + $0x54] sm:$0xf] %v823
  %952 = vst [vmem:[%s4 + $0x58] sm:$0xf] %v824
  %953 = vst [vmem:[%s4 + $0x5c] sm:$0xf] %v825
  %954 = vst [vmem:[%s4 + $0x60] sm:$0xf] %v826
  %955 = vst [vmem:[%s4 + $0x64] sm:$0xf] %v827
  %956 = vst [vmem:[%s4 + $0x68] sm:$0xf] %v828
  %957 = vst [vmem:[%s4 + $0x6c] sm:$0xf] %v829
  %958 = vst [vmem:[%s4 + $0x70] sm:$0xf] %v830
  %959 = vst [vmem:[%s4 + $0x74] sm:$0xf] %v831
  %960 = vst [vmem:[%s4 + $0x78] sm:$0xf] %v832
  %961 = vst [vmem:[%s4 + $0x7c] sm:$0xf] %v833
  %962 = vst [vmem:[%s4 + $0x80] sm:$0xf] %v834
  %963 = vst [vmem:[%s4 + $0x84] sm:$0xf] %v835
  %964 = vst [vmem:[%s4 + $0x88] sm:$0xf] %v836
  %965 = vst [vmem:[%s4 + $0x8c] sm:$0xf] %v837
  %966 = vst [vmem:[%s4 + $0x90] sm:$0xf] %v838
  %967 = vst [vmem:[%s4 + $0x94] sm:$0xf] %v839
  %968 = vst [vmem:[%s4 + $0x98] sm:$0xf] %v840
  %969 = vst [vmem:[%s4 + $0x9c] sm:$0xf] %v841
  %970 = vst [vmem:[%s4 + $0xa0] sm:$0xf] %v842
  %971 = vst [vmem:[%s4 + $0xa4] sm:$0xf] %v843
  %972 = vst [vmem:[%s4 + $0xa8] sm:$0xf] %v844
  %973 = vst [vmem:[%s4 + $0xac] sm:$0xf] %v845
  %974 = vst [vmem:[%s4 + $0xb0] sm:$0xf] %v846
  %975 = vst [vmem:[%s4 + $0xb4] sm:$0xf] %v847
  %976 = vst [vmem:[%s4 + $0xb8] sm:$0xf] %v848
  %977 = vst [vmem:[%s4 + $0xbc] sm:$0xf] %v849
  %978 = vst [vmem:[%s4 + $0xc0] sm:$0xf] %v850
  %979 = vst [vmem:[%s4 + $0xc4] sm:$0xf] %v851
  %980 = vst [vmem:[%s4 + $0xc8] sm:$0xf] %v852
  %981 = vst [vmem:[%s4 + $0xcc] sm:$0xf] %v853
  %982 = vst [vmem:[%s4 + $0xd0] sm:$0xf] %v854
  %983 = vst [vmem:[%s4 + $0xd4] sm:$0xf] %v855
  %984 = vst [vmem:[%s4 + $0xd8] sm:$0xf] %v856
  %985 = vst [vmem:[%s4 + $0xdc] sm:$0xf] %v857
  %986 = vst [vmem:[%s4 + $0xe0] sm:$0xf] %v858
  %987 = vst [vmem:[%s4 + $0xe4] sm:$0xf] %v859
  %988 = vst [vmem:[%s4 + $0xe8] sm:$0xf] %v860
  %989 = vst [vmem:[%s4 + $0xec] sm:$0xf] %v861
  %990 = vst [vmem:[%s4 + $0xf0] sm:$0xf] %v862
  %991 = vst [vmem:[%s4 + $0xf4] sm:$0xf] %v863
  %992 = vst [vmem:[%s4 + $0xf8] sm:$0xf] %v864
  %993 = vst [vmem:[%s4 + $0xfc] sm:$0xf] %v865
  // Predicated region
  $region18: #{basic_block_forward.6} parent=0 // pred_check
    _
  $region19: #{basic_block_forward.6} parent=0 // pred_check_branch
    %995 = sbr.rel (0) target = $region21
  $region20: #{basic_block_forward.6} parent=0 // pred_region
    _
  $region21: #{basic_block_forward.6} parent=0 // pred_fallthru
    _
  // Predicated region
  $region22: #{basic_block_forward.6} parent=0 // pred_check
    _
  $region23: #{basic_block_forward.6} parent=0 // pred_check_branch
    %997 = sbr.rel (0) target = $region25
  $region24: #{basic_block_forward.6} parent=0 // pred_region
    _
  $region25: #{basic_block_forward.6} parent=0 // pred_fallthru
    _

// kernel: basic_block_forward.5
$region0: #{basic_block_forward.5}
  #allocation0 [shape = 'u32[]', space=smem, size = 0x4, offset = 0x4, fixed_abs, tag = 'smem constant byte address 0x4 - core index']
  #allocation1 [shape = 'u32[144,128]{1,0:T(1,128)}', space=vmem, size = 0x12000, scoped, tag = 'internal scratch']
  %s0 = inlined_call_operand.vmem [shape: bf16[2,18,18,128], index: 0, kind: input, shape index: {}, may-alias: {0,1,2}]
  %s1 = inlined_call_operand.vmem [shape: bf16[2,18,18,128], index: 1, kind: input, shape index: {}, may-alias: {0,1,2}]
  %s2 = inlined_call_operand.vmem [shape: bf16[2,18,18,128], index: 2, kind: input, shape index: {}, may-alias: {0,1,2}]
  %s3 = inlined_call_operand.vmem [shape: bf16[9,128,128], index: 3, kind: input, shape index: {}]
  %s4 = inlined_call_operand.vmem [shape: f32[2,16,16,128], index: 4, kind: output, shape index: {0}]
  %s5 = inlined_call_operand.vmem [shape: f32[16,2,128], index: 5, kind: output, shape index: {1}]
  %6 = xla_tuple %s4, %s5
  %s7 = sld [smem:[#allocation0]]
  $region214: #{basic_block_forward.5} parent=0
    _
  %s9 = ssub.s32 1, %s7
  %s10 = scalar_select 0, %s9, %s7
  $region1: #{basic_block_forward.5} parent=0
    #allocation2 [shape = 'u8[24576]{0}', space=vmem, size = 0x6000, scoped, tag = 'input window, operand 0']
    #allocation3 [shape = 'u8[24576]{0}', space=vmem, size = 0x6000, scoped, tag = 'input window, operand 1']
    #allocation4 [shape = 'u8[24576]{0}', space=vmem, size = 0x6000, scoped, tag = 'input window, operand 2']
    #allocation5 [shape = 'u8[32768]{0}', space=vmem, size = 0x8000, scoped, tag = 'output window, operand 0']
    loop: start=0, step=1, limit=18
    $region2: #{basic_block_forward.5} parent=1 // loop_pre_header
      _
    $region3: #{basic_block_forward.5} parent=1 // loop_header
      %s12 = sphi 0, %s16
      %p13 = scmp.ge.s32.totalorder %s12, 18
      %s22 = sphi 0, %s24
      %s25 = sphi 0, %s22
      %s26 = sphi 0, %s25
      %s42 = sphi 0, %s26
      %s50 = sphi 0, %s52
      %s53 = sphi 0, %s50
      %s54 = sphi 0, %s53
      %s70 = sphi 0, %s54
      %s78 = sphi 0, %s80
      %s81 = sphi 0, %s78
      %s82 = sphi 0, %s81
      %s98 = sphi 0, %s82
      %s102 = sphi 0, %s102
      %s104 = sphi 0, %s102
      %s105 = sphi 0, %s104
      %s119 = sphi 0, %s105
      %s125 = sphi 0, %s127
      %s128 = sphi 0, %s125
      %s129 = sphi 0, %s128
      %s145 = sphi 0, %s129
      %s151 = sphi 0, %s153
      %s154 = sphi 0, %s151
      %s155 = sphi 0, %s154
      %s171 = sphi 0, %s155
    $region4: #{basic_block_forward.5} parent=1 // loop_header_branch
      %15 = sbr.rel (%p13) target = $region8
    $region5: #{basic_block_forward.5} parent=1 // loop_body
      %s17 = ssub.s32 %s12, 1
      %s18 = ssub.s32 %s12, 2
      %s19 = sadd.s32 %s12, 1
      %s20 = ssub.s32 %s12, %s19
      %p21 = scmp.eq.s32.totalorder %s20, 0
      %s23 = sadd.s32 %s22, 1
      %s24 = scalar_select %p21, %s22, %s23
      %p27 = pneg %p21
      %p28 = scmp.eq.s32.totalorder %s12, 15
      %p29 = por %p27, %p28
      %p30 = scmp.ne.s32.totalorder %s22, %s25
      %p31 = scmp.eq.s32.totalorder %s12, 0
      %p32 = por %p30, %p31
      %p33 = scmp.ne.s32.totalorder %s22, %s25
      %p34 = scmp.eq.s32.totalorder %s17, 15
      %p35 = por %p33, %p34
      %p36 = scmp.ne.s32.totalorder %s25, %s26
      %p37 = scmp.eq.s32.totalorder %s17, 0
      %p38 = por %p36, %p37
      %p39 = scmp.ne.s32.totalorder %s25, %s26
      %p40 = scmp.eq.s32.totalorder %s18, 15
      %p41 = por %p39, %p40
      %p43 = scmp.ne.s32.totalorder %s26, %s42
      %p44 = scmp.eq.s32.totalorder %s18, 0
      %p45 = por %p43, %p44
      %s46 = sadd.s32 %s12, 1
      %s47 = sadd.s32 %s19, 1
      %s48 = ssub.s32 %s46, %s47
      %p49 = scmp.eq.s32.totalorder %s48, 0
      %s51 = sadd.s32 %s50, 1
      %s52 = scalar_select %p49, %s50, %s51
      %p55 = pneg %p49
      %p56 = scmp.eq.s32.totalorder %s12, 15
      %p57 = por %p55, %p56
      %p58 = scmp.ne.s32.totalorder %s50, %s53
      %p59 = scmp.eq.s32.totalorder %s12, 0
      %p60 = por %p58, %p59
      %p61 = scmp.ne.s32.totalorder %s50, %s53
      %p62 = scmp.eq.s32.totalorder %s17, 15
      %p63 = por %p61, %p62
      %p64 = scmp.ne.s32.totalorder %s53, %s54
      %p65 = scmp.eq.s32.totalorder %s17, 0
      %p66 = por %p64, %p65
      %p67 = scmp.ne.s32.totalorder %s53, %s54
      %p68 = scmp.eq.s32.totalorder %s18, 15
      %p69 = por %p67, %p68
      %p71 = scmp.ne.s32.totalorder %s54, %s70
      %p72 = scmp.eq.s32.totalorder %s18, 0
      %p73 = por %p71, %p72
      %s74 = sadd.s32 %s12, 2
      %s75 = sadd.s32 %s19, 2
      %s76 = ssub.s32 %s74, %s75
      %p77 = scmp.eq.s32.totalorder %s76, 0
      %s79 = sadd.s32 %s78, 1
      %s80 = scalar_select %p77, %s78, %s79
      %p83 = pneg %p77
      %p84 = scmp.eq.s32.totalorder %s12, 15
      %p85 = por %p83, %p84
      %p86 = scmp.ne.s32.totalorder %s78, %s81
      %p87 = scmp.eq.s32.totalorder %s12, 0
      %p88 = por %p86, %p87
      %p89 = scmp.ne.s32.totalorder %s78, %s81
      %p90 = scmp.eq.s32.totalorder %s17, 15
      %p91 = por %p89, %p90
      %p92 = scmp.ne.s32.totalorder %s81, %s82
      %p93 = scmp.eq.s32.totalorder %s17, 0
      %p94 = por %p92, %p93
      %p95 = scmp.ne.s32.totalorder %s81, %s82
      %p96 = scmp.eq.s32.totalorder %s18, 15
      %p97 = por %p95, %p96
      %p99 = scmp.ne.s32.totalorder %s82, %s98
      %p100 = scmp.eq.s32.totalorder %s18, 0
      %p101 = por %p99, %p100
      %s103 = sadd.s32 %s102, 1
      %p106 = scmp.eq.s32.totalorder %s12, 15
      %p107 = scmp.ne.s32.totalorder %s102, %s104
      %p108 = scmp.eq.s32.totalorder %s12, 0
      %p109 = por %p107, %p108
      %p110 = scmp.ne.s32.totalorder %s102, %s104
      %p111 = scmp.eq.s32.totalorder %s17, 15
      %p112 = por %p110, %p111
      %p113 = scmp.ne.s32.totalorder %s104, %s105
      %p114 = scmp.eq.s32.totalorder %s17, 0
      %p115 = por %p113, %p114
      %p116 = scmp.ne.s32.totalorder %s104, %s105
      %p117 = scmp.eq.s32.totalorder %s18, 15
      %p118 = por %p116, %p117
      %p120 = scmp.ne.s32.totalorder %s105, %s119
      %p121 = scmp.eq.s32.totalorder %s18, 0
      %p122 = por %p120, %p121
      %s123 = ssub.s32 %s12, %s19
      %p124 = scmp.eq.s32.totalorder %s123, 0
      %s126 = sadd.s32 %s125, 1
      %s127 = scalar_select %p124, %s125, %s126
      %p130 = pneg %p124
      %p131 = scmp.eq.s32.totalorder %s12, 15
      %p132 = por %p130, %p131
      %p133 = scmp.ne.s32.totalorder %s125, %s128
      %p134 = scmp.eq.s32.totalorder %s12, 0
      %p135 = por %p133, %p134
      %p136 = scmp.ne.s32.totalorder %s125, %s128
      %p137 = scmp.eq.s32.totalorder %s17, 15
      %p138 = por %p136, %p137
      %p139 = scmp.ne.s32.totalorder %s128, %s129
      %p140 = scmp.eq.s32.totalorder %s17, 0
      %p141 = por %p139, %p140
      %p142 = scmp.ne.s32.totalorder %s128, %s129
      %p143 = scmp.eq.s32.totalorder %s18, 15
      %p144 = por %p142, %p143
      %p146 = scmp.ne.s32.totalorder %s129, %s145
      %p147 = scmp.eq.s32.totalorder %s18, 0
      %p148 = por %p146, %p147
      %s149 = ssub.s32 %s12, %s19
      %p150 = scmp.eq.s32.totalorder %s149, 0
      %s152 = sadd.s32 %s151, 1
      %s153 = scalar_select %p150, %s151, %s152
      %p156 = pneg %p150
      %p157 = scmp.eq.s32.totalorder %s12, 15
      %p158 = por %p156, %p157
      %p159 = scmp.ne.s32.totalorder %s151, %s154
      %p160 = scmp.eq.s32.totalorder %s12, 0
      %p161 = por %p159, %p160
      %p162 = scmp.ne.s32.totalorder %s151, %s154
      %p163 = scmp.eq.s32.totalorder %s17, 15
      %p164 = por %p162, %p163
      %p165 = scmp.ne.s32.totalorder %s154, %s155
      %p166 = scmp.eq.s32.totalorder %s17, 0
      %p167 = por %p165, %p166
      %p168 = scmp.ne.s32.totalorder %s154, %s155
      %p169 = scmp.eq.s32.totalorder %s18, 15
      %p170 = por %p168, %p169
      %p172 = scmp.ne.s32.totalorder %s155, %s171
      %p173 = scmp.eq.s32.totalorder %s18, 0
      %p174 = por %p172, %p173
      %p175 = scmp.le.s32.totalorder 1, %s12
      %p176 = scmp.lt.s32.totalorder %s12, 17
      %p177 = pnand %p175, %p176
      %p178 = pneg %p177
      // Predicated region
      $region9: #{basic_block_forward.5} parent=5 // pred_check
        _
      $region10: #{basic_block_forward.5} parent=5 // pred_check_branch
        %180 = sbr.rel (%p177) target = $region12
      $region11: #{basic_block_forward.5} parent=5 // pred_region
        %s181 = ssub.s32 %s12, 1
        // Predicated region
        $region13: #{basic_block_forward.5} parent=11 // pred_check
          %p182 = pneg %p115
        $region14: #{basic_block_forward.5} parent=11 // pred_check_branch
          %184 = sbr.rel (%p182) target = $region16
        $region15: #{basic_block_forward.5} parent=11 // pred_region
          _
        $region16: #{basic_block_forward.5} parent=11 // pred_fallthru
          _
      $region12: #{basic_block_forward.5} parent=5 // pred_fallthru
        _
      %p185 = scmp.lt.s32.totalorder %s12, 16
      // Predicated region
      $region17: #{basic_block_forward.5} parent=5 // pred_check
        %p186 = pneg %p185
      $region18: #{basic_block_forward.5} parent=5 // pred_check_branch
        %188 = sbr.rel (%p186) target = $region20
      $region19: #{basic_block_forward.5} parent=5 // pred_region
        // Predicated region
        $region21: #{basic_block_forward.5} parent=19 // pred_check
          %p189 = pneg %p32
        $region22: #{basic_block_forward.5} parent=19 // pred_check_branch
          %191 = sbr.rel (%p189) target = $region24
        $region23: #{basic_block_forward.5} parent=19 // pred_region
          %s192 = sand.u32 %s22, 1
          %s193 = sand.u32 %s22, 1
          %s194 = smul.addr %s193, 24
          %s195 = scalar_lea.vmem [#allocation2], %s194
          %s196 = smul.addr %s12, 3
          %s197 = smul.addr %s196, 4
          %s198 = scalar_lea.vmem %s0, %s197
          // Predicated region
          $region25: #{basic_block_forward.5} parent=23 // pred_check
            _
          $region26: #{basic_block_forward.5} parent=23 // pred_check_branch
            %200 = sbr.rel (0) target = $region28
          $region27: #{basic_block_forward.5} parent=23 // pred_region
            // Predicated region
            $region29: #{basic_block_forward.5} parent=27 // pred_check
              _
            $region30: #{basic_block_forward.5} parent=27 // pred_check_branch
              %202 = sbr.rel target = $region32
            $region31: #{basic_block_forward.5} parent=27 // pred_region
              // Predicated region
              $region44: #{basic_block_forward.5} parent=31 // pred_check
                _
              $region45: #{basic_block_forward.5} parent=31 // pred_check_branch
                %227 = sbr.rel (0) target = $region47
              $region46: #{basic_block_forward.5} parent=31 // pred_region
                loop: start=0, step=1, limit=1
                $region48: #{basic_block_forward.5} parent=46 // loop_pre_header
                  _
                $region49: #{basic_block_forward.5} parent=46 // loop_header
                  %s229 = sphi 0, %s233
                  %p230 = scmp.ge.s32.totalorder %s229, 1
                  %s234 = sphi %s198, %s198
                  %s235 = sphi %s195, %s195
                $region50: #{basic_block_forward.5} parent=46 // loop_header_branch
                  %232 = sbr.rel (%p230) target = $region54
                $region51: #{basic_block_forward.5} parent=46 // loop_body
                  _
                $region52: #{basic_block_forward.5} parent=46 // loop_footer
                  %s233 = sadd.s32 1, %s229
                $region53: #{basic_block_forward.5} parent=46 // loop_footer_branch
                  %228 = sbr.rel target = $region49
                $region54: #{basic_block_forward.5} parent=46 // loop_exit
                  _
                loop: start=0, step=1, limit=1
                $region55: #{basic_block_forward.5} parent=46 // loop_pre_header
                  _
                $region56: #{basic_block_forward.5} parent=46 // loop_header
                  %s238 = sphi 0, %s242
                  %p239 = scmp.ge.s32.totalorder %s238, 1
                  %s243 = sphi %s198, %s198
                  %s244 = sphi %s195, %s195
                $region57: #{basic_block_forward.5} parent=46 // loop_header_branch
                  %241 = sbr.rel (%p239) target = $region61
                $region58: #{basic_block_forward.5} parent=46 // loop_body
                  %v245 = vld [vmem:[%s243] sm:$0xf]
                  %246 = vst [vmem:[%s244] sm:$0xf] %v245
                  %v247 = vld [vmem:[%s243 + $0x4] sm:$0xf]
                  %248 = vst [vmem:[%s244 + $0x4] sm:$0xf] %v247
                  %v249 = vld [vmem:[%s243 + $0x8] sm:$0xf]
                  %250 = vst [vmem:[%s244 + $0x8] sm:$0xf] %v249
                  %v251 = vld [vmem:[%s243 + $0xd8] sm:$0xf]
                  %252 = vst [vmem:[%s244 + $0xc] sm:$0xf] %v251
                  %v253 = vld [vmem:[%s243 + $0xdc] sm:$0xf]
                  %254 = vst [vmem:[%s244 + $0x10] sm:$0xf] %v253
                  %v255 = vld [vmem:[%s243 + $0xe0] sm:$0xf]
                  %256 = vst [vmem:[%s244 + $0x14] sm:$0xf] %v255
                $region59: #{basic_block_forward.5} parent=46 // loop_footer
                  %s242 = sadd.s32 1, %s238
                $region60: #{basic_block_forward.5} parent=46 // loop_footer_branch
                  %237 = sbr.rel target = $region56
                $region61: #{basic_block_forward.5} parent=46 // loop_exit
                  _
              $region47: #{basic_block_forward.5} parent=31 // pred_fallthru
                _
            $region32: #{basic_block_forward.5} parent=27 // pred_fallthru
              _
            // Predicated region
            $region33: #{basic_block_forward.5} parent=27 // pred_check
              _
            $region34: #{basic_block_forward.5} parent=27 // pred_check_branch
              %204 = sbr.rel (0) target = $region36
            $region35: #{basic_block_forward.5} parent=27 // pred_region
              loop: start=0, step=1, limit=1
              $region37: #{basic_block_forward.5} parent=35 // loop_pre_header
                _
              $region38: #{basic_block_forward.5} parent=35 // loop_header
                %s207 = sphi 0, %s211
                %p208 = scmp.ge.s32.totalorder %s207, 1
                %s212 = sphi %s198, %s198
                %s213 = sphi %s195, %s195
              $region39: #{basic_block_forward.5} parent=35 // loop_header_branch
                %210 = sbr.rel (%p208) target = $region43
              $region40: #{basic_block_forward.5} parent=35 // loop_body
                %v214 = vld [vmem:[%s212] sm:$0xf]
                %215 = vst [vmem:[%s213] sm:$0xf] %v214
                %v216 = vld [vmem:[%s212 + $0x4] sm:$0xf]
                %217 = vst [vmem:[%s213 + $0x4] sm:$0xf] %v216
                %v218 = vld [vmem:[%s212 + $0x8] sm:$0xf]
                %219 = vst [vmem:[%s213 + $0x8] sm:$0xf] %v218
                %v220 = vld [vmem:[%s212 + $0xd8] sm:$0xf]
                %221 = vst [vmem:[%s213 + $0xc] sm:$0xf] %v220
                %v222 = vld [vmem:[%s212 + $0xdc] sm:$0xf]
                %223 = vst [vmem:[%s213 + $0x10] sm:$0xf] %v222
                %v224 = vld [vmem:[%s212 + $0xe0] sm:$0xf]
                %225 = vst [vmem:[%s213 + $0x14] sm:$0xf] %v224
              $region41: #{basic_block_forward.5} parent=35 // loop_footer
                %s211 = sadd.s32 1, %s207
              $region42: #{basic_block_forward.5} parent=35 // loop_footer_branch
                %206 = sbr.rel target = $region38
              $region43: #{basic_block_forward.5} parent=35 // loop_exit
                _
            $region36: #{basic_block_forward.5} parent=27 // pred_fallthru
              _
          $region28: #{basic_block_forward.5} parent=23 // pred_fallthru
            _
          %257 = vnop
        $region24: #{basic_block_forward.5} parent=19 // pred_fallthru
          _
        // Predicated region
        $region62: #{basic_block_forward.5} parent=19 // pred_check
          %p258 = pneg %p60
        $region63: #{basic_block_forward.5} parent=19 // pred_check_branch
          %260 = sbr.rel (%p258) target = $region65
        $region64: #{basic_block_forward.5} parent=19 // pred_region
          %s261 = sand.u32 %s50, 1
          %s262 = sand.u32 %s50, 1
          %s263 = smul.addr %s262, 24
          %s264 = scalar_lea.vmem [#allocation3], %s263
          %s265 = sadd.s32 %s12, 1
          %s266 = smul.addr %s265, 3
          %s267 = smul.addr %s266, 4
          %s268 = scalar_lea.vmem %s1, %s267
          // Predicated region
          $region66: #{basic_block_forward.5} parent=64 // pred_check
            _
          $region67: #{basic_block_forward.5} parent=64 // pred_check_branch
            %270 = sbr.rel (0) target = $region69
          $region68: #{basic_block_forward.5} parent=64 // pred_region
            // Predicated region
            $region70: #{basic_block_forward.5} parent=68 // pred_check
              _
            $region71: #{basic_block_forward.5} parent=68 // pred_check_branch
              %272 = sbr.rel target = $region73
            $region72: #{basic_block_forward.5} parent=68 // pred_region
              // Predicated region
              $region85: #{basic_block_forward.5} parent=72 // pred_check
                _
              $region86: #{basic_block_forward.5} parent=72 // pred_check_branch
                %297 = sbr.rel (0) target = $region88
              $region87: #{basic_block_forward.5} parent=72 // pred_region
                loop: start=0, step=1, limit=1
                $region89: #{basic_block_forward.5} parent=87 // loop_pre_header
                  _
                $region90: #{basic_block_forward.5} parent=87 // loop_header
                  %s299 = sphi 0, %s303
                  %p300 = scmp.ge.s32.totalorder %s299, 1
                  %s304 = sphi %s268, %s268
                  %s305 = sphi %s264, %s264
                $region91: #{basic_block_forward.5} parent=87 // loop_header_branch
                  %302 = sbr.rel (%p300) target = $region95
                $region92: #{basic_block_forward.5} parent=87 // loop_body
                  _
                $region93: #{basic_block_forward.5} parent=87 // loop_footer
                  %s303 = sadd.s32 1, %s299
                $region94: #{basic_block_forward.5} parent=87 // loop_footer_branch
                  %298 = sbr.rel target = $region90
                $region95: #{basic_block_forward.5} parent=87 // loop_exit
                  _
                loop: start=0, step=1, limit=1
                $region96: #{basic_block_forward.5} parent=87 // loop_pre_header
                  _
                $region97: #{basic_block_forward.5} parent=87 // loop_header
                  %s308 = sphi 0, %s312
                  %p309 = scmp.ge.s32.totalorder %s308, 1
                  %s313 = sphi %s268, %s268
                  %s314 = sphi %s264, %s264
                $region98: #{basic_block_forward.5} parent=87 // loop_header_branch
                  %311 = sbr.rel (%p309) target = $region102
                $region99: #{basic_block_forward.5} parent=87 // loop_body
                  %v315 = vld [vmem:[%s313] sm:$0xf]
                  %316 = vst [vmem:[%s314] sm:$0xf] %v315
                  %v317 = vld [vmem:[%s313 + $0x4] sm:$0xf]
                  %318 = vst [vmem:[%s314 + $0x4] sm:$0xf] %v317
                  %v319 = vld [vmem:[%s313 + $0x8] sm:$0xf]
                  %320 = vst [vmem:[%s314 + $0x8] sm:$0xf] %v319
                  %v321 = vld [vmem:[%s313 + $0xd8] sm:$0xf]
                  %322 = vst [vmem:[%s314 + $0xc] sm:$0xf] %v321
                  %v323 = vld [vmem:[%s313 + $0xdc] sm:$0xf]
                  %324 = vst [vmem:[%s314 + $0x10] sm:$0xf] %v323
                  %v325 = vld [vmem:[%s313 + $0xe0] sm:$0xf]
                  %326 = vst [vmem:[%s314 + $0x14] sm:$0xf] %v325
                $region100: #{basic_block_forward.5} parent=87 // loop_footer
                  %s312 = sadd.s32 1, %s308
                $region101: #{basic_block_forward.5} parent=87 // loop_footer_branch
                  %307 = sbr.rel target = $region97
                $region102: #{basic_block_forward.5} parent=87 // loop_exit
                  _
              $region88: #{basic_block_forward.5} parent=72 // pred_fallthru
                _
            $region73: #{basic_block_forward.5} parent=68 // pred_fallthru
              _
            // Predicated region
            $region74: #{basic_block_forward.5} parent=68 // pred_check
              _
            $region75: #{basic_block_forward.5} parent=68 // pred_check_branch
              %274 = sbr.rel (0) target = $region77
            $region76: #{basic_block_forward.5} parent=68 // pred_region
              loop: start=0, step=1, limit=1
              $region78: #{basic_block_forward.5} parent=76 // loop_pre_header
                _
              $region79: #{basic_block_forward.5} parent=76 // loop_header
                %s277 = sphi 0, %s281
                %p278 = scmp.ge.s32.totalorder %s277, 1
                %s282 = sphi %s268, %s268
                %s283 = sphi %s264, %s264
              $region80: #{basic_block_forward.5} parent=76 // loop_header_branch
                %280 = sbr.rel (%p278) target = $region84
              $region81: #{basic_block_forward.5} parent=76 // loop_body
                %v284 = vld [vmem:[%s282] sm:$0xf]
                %285 = vst [vmem:[%s283] sm:$0xf] %v284
                %v286 = vld [vmem:[%s282 + $0x4] sm:$0xf]
                %287 = vst [vmem:[%s283 + $0x4] sm:$0xf] %v286
                %v288 = vld [vmem:[%s282 + $0x8] sm:$0xf]
                %289 = vst [vmem:[%s283 + $0x8] sm:$0xf] %v288
                %v290 = vld [vmem:[%s282 + $0xd8] sm:$0xf]
                %291 = vst [vmem:[%s283 + $0xc] sm:$0xf] %v290
                %v292 = vld [vmem:[%s282 + $0xdc] sm:$0xf]
                %293 = vst [vmem:[%s283 + $0x10] sm:$0xf] %v292
                %v294 = vld [vmem:[%s282 + $0xe0] sm:$0xf]
                %295 = vst [vmem:[%s283 + $0x14] sm:$0xf] %v294
              $region82: #{basic_block_forward.5} parent=76 // loop_footer
                %s281 = sadd.s32 1, %s277
              $region83: #{basic_block_forward.5} parent=76 // loop_footer_branch
                %276 = sbr.rel target = $region79
              $region84: #{basic_block_forward.5} parent=76 // loop_exit
                _
            $region77: #{basic_block_forward.5} parent=68 // pred_fallthru
              _
          $region69: #{basic_block_forward.5} parent=64 // pred_fallthru
            _
          %327 = vnop
        $region65: #{basic_block_forward.5} parent=19 // pred_fallthru
          _
        // Predicated region
        $region103: #{basic_block_forward.5} parent=19 // pred_check
          %p328 = pneg %p88
        $region104: #{basic_block_forward.5} parent=19 // pred_check_branch
          %330 = sbr.rel (%p328) target = $region106
        $region105: #{basic_block_forward.5} parent=19 // pred_region
          %s331 = sand.u32 %s78, 1
          %s332 = sand.u32 %s78, 1
          %s333 = smul.addr %s332, 24
          %s334 = scalar_lea.vmem [#allocation4], %s333
          %s335 = sadd.s32 %s12, 2
          %s336 = smul.addr %s335, 3
          %s337 = smul.addr %s336, 4
          %s338 = scalar_lea.vmem %s2, %s337
          // Predicated region
          $region107: #{basic_block_forward.5} parent=105 // pred_check
            _
          $region108: #{basic_block_forward.5} parent=105 // pred_check_branch
            %340 = sbr.rel (0) target = $region110
          $region109: #{basic_block_forward.5} parent=105 // pred_region
            // Predicated region
            $region111: #{basic_block_forward.5} parent=109 // pred_check
              _
            $region112: #{basic_block_forward.5} parent=109 // pred_check_branch
              %342 = sbr.rel target = $region114
            $region113: #{basic_block_forward.5} parent=109 // pred_region
              // Predicated region
              $region126: #{basic_block_forward.5} parent=113 // pred_check
                _
              $region127: #{basic_block_forward.5} parent=113 // pred_check_branch
                %367 = sbr.rel (0) target = $region129
              $region128: #{basic_block_forward.5} parent=113 // pred_region
                loop: start=0, step=1, limit=1
                $region130: #{basic_block_forward.5} parent=128 // loop_pre_header
                  _
                $region131: #{basic_block_forward.5} parent=128 // loop_header
                  %s369 = sphi 0, %s373
                  %p370 = scmp.ge.s32.totalorder %s369, 1
                  %s374 = sphi %s338, %s338
                  %s375 = sphi %s334, %s334
                $region132: #{basic_block_forward.5} parent=128 // loop_header_branch
                  %372 = sbr.rel (%p370) target = $region136
                $region133: #{basic_block_forward.5} parent=128 // loop_body
                  _
                $region134: #{basic_block_forward.5} parent=128 // loop_footer
                  %s373 = sadd.s32 1, %s369
                $region135: #{basic_block_forward.5} parent=128 // loop_footer_branch
                  %368 = sbr.rel target = $region131
                $region136: #{basic_block_forward.5} parent=128 // loop_exit
                  _
                loop: start=0, step=1, limit=1
                $region137: #{basic_block_forward.5} parent=128 // loop_pre_header
                  _
                $region138: #{basic_block_forward.5} parent=128 // loop_header
                  %s378 = sphi 0, %s382
                  %p379 = scmp.ge.s32.totalorder %s378, 1
                  %s383 = sphi %s338, %s338
                  %s384 = sphi %s334, %s334
                $region139: #{basic_block_forward.5} parent=128 // loop_header_branch
                  %381 = sbr.rel (%p379) target = $region143
                $region140: #{basic_block_forward.5} parent=128 // loop_body
                  %v385 = vld [vmem:[%s383] sm:$0xf]
                  %386 = vst [vmem:[%s384] sm:$0xf] %v385
                  %v387 = vld [vmem:[%s383 + $0x4] sm:$0xf]
                  %388 = vst [vmem:[%s384 + $0x4] sm:$0xf] %v387
                  %v389 = vld [vmem:[%s383 + $0x8] sm:$0xf]
                  %390 = vst [vmem:[%s384 + $0x8] sm:$0xf] %v389
                  %v391 = vld [vmem:[%s383 + $0xd8] sm:$0xf]
                  %392 = vst [vmem:[%s384 + $0xc] sm:$0xf] %v391
                  %v393 = vld [vmem:[%s383 + $0xdc] sm:$0xf]
                  %394 = vst [vmem:[%s384 + $0x10] sm:$0xf] %v393
                  %v395 = vld [vmem:[%s383 + $0xe0] sm:$0xf]
                  %396 = vst [vmem:[%s384 + $0x14] sm:$0xf] %v395
                $region141: #{basic_block_forward.5} parent=128 // loop_footer
                  %s382 = sadd.s32 1, %s378
                $region142: #{basic_block_forward.5} parent=128 // loop_footer_branch
                  %377 = sbr.rel target = $region138
                $region143: #{basic_block_forward.5} parent=128 // loop_exit
                  _
              $region129: #{basic_block_forward.5} parent=113 // pred_fallthru
                _
            $region114: #{basic_block_forward.5} parent=109 // pred_fallthru
              _
            // Predicated region
            $region115: #{basic_block_forward.5} parent=109 // pred_check
              _
            $region116: #{basic_block_forward.5} parent=109 // pred_check_branch
              %344 = sbr.rel (0) target = $region118
            $region117: #{basic_block_forward.5} parent=109 // pred_region
              loop: start=0, step=1, limit=1
              $region119: #{basic_block_forward.5} parent=117 // loop_pre_header
                _
              $region120: #{basic_block_forward.5} parent=117 // loop_header
                %s347 = sphi 0, %s351
                %p348 = scmp.ge.s32.totalorder %s347, 1
                %s352 = sphi %s338, %s338
                %s353 = sphi %s334, %s334
              $region121: #{basic_block_forward.5} parent=117 // loop_header_branch
                %350 = sbr.rel (%p348) target = $region125
              $region122: #{basic_block_forward.5} parent=117 // loop_body
                %v354 = vld [vmem:[%s352] sm:$0xf]
                %355 = vst [vmem:[%s353] sm:$0xf] %v354
                %v356 = vld [vmem:[%s352 + $0x4] sm:$0xf]
                %357 = vst [vmem:[%s353 + $0x4] sm:$0xf] %v356
                %v358 = vld [vmem:[%s352 + $0x8] sm:$0xf]
                %359 = vst [vmem:[%s353 + $0x8] sm:$0xf] %v358
                %v360 = vld [vmem:[%s352 + $0xd8] sm:$0xf]
                %361 = vst [vmem:[%s353 + $0xc] sm:$0xf] %v360
                %v362 = vld [vmem:[%s352 + $0xdc] sm:$0xf]
                %363 = vst [vmem:[%s353 + $0x10] sm:$0xf] %v362
                %v364 = vld [vmem:[%s352 + $0xe0] sm:$0xf]
                %365 = vst [vmem:[%s353 + $0x14] sm:$0xf] %v364
              $region123: #{basic_block_forward.5} parent=117 // loop_footer
                %s351 = sadd.s32 1, %s347
              $region124: #{basic_block_forward.5} parent=117 // loop_footer_branch
                %346 = sbr.rel target = $region120
              $region125: #{basic_block_forward.5} parent=117 // loop_exit
                _
            $region118: #{basic_block_forward.5} parent=109 // pred_fallthru
              _
          $region110: #{basic_block_forward.5} parent=105 // pred_fallthru
            _
          %397 = vnop
        $region106: #{basic_block_forward.5} parent=19 // pred_fallthru
          _
      $region20: #{basic_block_forward.5} parent=5 // pred_fallthru
        _
      %p398 = scmp.le.s32.totalorder 1, %s12
      %p399 = scmp.lt.s32.totalorder %s12, 17
      %p400 = pnand %p398, %p399
      %p401 = pneg %p400
      // Predicated region
      $region144: #{basic_block_forward.5} parent=5 // pred_check
        _
      $region145: #{basic_block_forward.5} parent=5 // pred_check_branch
        %403 = sbr.rel (%p400) target = $region147
      $region146: #{basic_block_forward.5} parent=5 // pred_region
        %s404 = ssub.s32 %s12, 1
        %s405 = sand.u32 %s25, 1
        %s406 = sand.u32 %s25, 1
        %s407 = smul.addr %s406, 24
        %s408 = scalar_lea.vmem [#allocation2], %s407
        // Predicated region
        $region148: #{basic_block_forward.5} parent=146 // pred_check
          %p409 = pneg %p38
        $region149: #{basic_block_forward.5} parent=146 // pred_check_branch
          %411 = sbr.rel (%p409) target = $region151
        $region150: #{basic_block_forward.5} parent=146 // pred_region
          _
        $region151: #{basic_block_forward.5} parent=146 // pred_fallthru
          _
        %s412 = sand.u32 %s53, 1
        %s413 = sand.u32 %s53, 1
        %s414 = smul.addr %s413, 24
        %s415 = scalar_lea.vmem [#allocation3], %s414
        // Predicated region
        $region152: #{basic_block_forward.5} parent=146 // pred_check
          %p416 = pneg %p66
        $region153: #{basic_block_forward.5} parent=146 // pred_check_branch
          %418 = sbr.rel (%p416) target = $region155
        $region154: #{basic_block_forward.5} parent=146 // pred_region
          _
        $region155: #{basic_block_forward.5} parent=146 // pred_fallthru
          _
        %s419 = sand.u32 %s81, 1
        %s420 = sand.u32 %s81, 1
        %s421 = smul.addr %s420, 24
        %s422 = scalar_lea.vmem [#allocation4], %s421
        // Predicated region
        $region156: #{basic_block_forward.5} parent=146 // pred_check
          %p423 = pneg %p94
        $region157: #{basic_block_forward.5} parent=146 // pred_check_branch
          %425 = sbr.rel (%p423) target = $region159
        $region158: #{basic_block_forward.5} parent=146 // pred_region
          _
        $region159: #{basic_block_forward.5} parent=146 // pred_fallthru
          _
        %s426 = sand.u32 %s25, 1
        %s427 = sand.u32 %s25, 1
        %s428 = smul.addr %s427, 24
        %s429 = scalar_lea.vmem [#allocation2], %s428
        %p430 = pneg %p38
        %p431 = pneg %p35
        %s432 = sand.u32 %s53, 1
        %s433 = sand.u32 %s53, 1
        %s434 = smul.addr %s433, 24
        %s435 = scalar_lea.vmem [#allocation3], %s434
        %p436 = pneg %p66
        %p437 = pneg %p63
        %s438 = sand.u32 %s81, 1
        %s439 = sand.u32 %s81, 1
        %s440 = smul.addr %s439, 24
        %s441 = scalar_lea.vmem [#allocation4], %s440
        %p442 = pneg %p94
        %p443 = pneg %p91
        %p444 = pneg %p115
        %p445 = pneg %p112
        %p446 = pneg %p141
        %p447 = pneg %p138
        %s448 = sand.u32 %s128, 1
        %s449 = sand.u32 %s128, 1
        %s450 = smul.addr %s449, 32
        %s451 = scalar_lea.vmem [#allocation5], %s450
        %p452 = pneg %p167
        %p453 = pneg %p164
        %p454 = scmp.lt.s32.totalorder %s17, 15
        %s455 = scalar_select %p454, %s17, 15
        %s456 = smul.addr %s455, 2
        %s457 = scalar_lea.vmem %s5, %s456
        %s458 = sadd.s32 %s17, 1
        %s459 = sadd.s32 %s17, 2
        %p460 = scmp.lt.s32.totalorder %s17, 15
        %s461 = scalar_select %p460, %s17, 15
        %s462 = smul.addr %s461, 2
        %s463 = scalar_lea.vmem %s5, %s462
        %v465 = vld [vmem:[%s408] sm:$0xf]
        %v466 = vld [vmem:[%s408 + $0x4] sm:$0xf]
        %v467 = vld [vmem:[%s408 + $0x8] sm:$0x1]
        %v468 = vld [vmem:[%s408 + $0xc] sm:$0xf]
        %v469 = vld [vmem:[%s408 + $0x10] sm:$0xf]
        %v470 = vld [vmem:[%s408 + $0x14] sm:$0x1]
        %v471 = vld [vmem:[%s3] sm:$0xf]
        %v472 = vld [vmem:[%s3 + $0x4] sm:$0xf]
        %v473 = vld [vmem:[%s3 + $0x8] sm:$0xf]
        %v474 = vld [vmem:[%s3 + $0xc] sm:$0xf]
        %v475 = vld [vmem:[%s3 + $0x10] sm:$0xf]
        %v476 = vld [vmem:[%s3 + $0x14] sm:$0xf]
        %v477 = vld [vmem:[%s3 + $0x18] sm:$0xf]
        %v478 = vld [vmem:[%s3 + $0x1c] sm:$0xf]
        %v479 = vld [vmem:[%s3 + $0x20] sm:$0xf]
        %v480 = vld [vmem:[%s3 + $0x24] sm:$0xf]
        %v481 = vld [vmem:[%s3 + $0x28] sm:$0xf]
        %v482 = vld [vmem:[%s3 + $0x2c] sm:$0xf]
        %v483 = vld [vmem:[%s3 + $0x30] sm:$0xf]
        %v484 = vld [vmem:[%s3 + $0x34] sm:$0xf]
        %v485 = vld [vmem:[%s3 + $0x38] sm:$0xf]
        %v486 = vld [vmem:[%s3 + $0x3c] sm:$0xf]
        %vm487 = vsmask.f32 3328
        %vm488 = vsmask.f32 7440
        %vm489 = vmor %vm487, %vm488
        %v491 = vshrl.u32 %v465, 16
        %v493 = vrot.slane %v491, 4
        %v494 = vshll.u32 %v465, 16
        %v496 = vrot.slane %v494, 5
        %v497 = vor.u32 %v493, %v496
        %v498 = vrot.slane %v497, 4
        %v500 = vshll.u32 %v466, 16
        %v502 = vrot.slane %v500, 5
        %v503 = vsel %vm489, %v498, %v502
        %v504 = vshrl.u32 %v466, 16
        %v506 = vrot.slane %v504, 4
        %v507 = vor.u32 %v506, %v502
        %v508 = vrot.slane %v507, 4
        %v510 = vshll.u32 %v467, 16
        %v512 = vrot.slane %v510, 5
        %v513 = vsel %vm489, %v508, %v512
        %v515 = vshrl.u32 %v468, 16
        %v517 = vrot.slane %v515, 4
        %v518 = vshll.u32 %v468, 16
        %v520 = vrot.slane %v518, 5
        %v521 = vor.u32 %v517, %v520
        %v522 = vrot.slane %v521, 4
        %v524 = vshll.u32 %v469, 16
        %v526 = vrot.slane %v524, 5
        %v527 = vsel %vm489, %v522, %v526
        %v528 = vshrl.u32 %v469, 16
        %v530 = vrot.slane %v528, 4
        %v531 = vor.u32 %v530, %v526
        %v532 = vrot.slane %v531, 4
        %v534 = vshll.u32 %v470, 16
        %v536 = vrot.slane %v534, 5
        %v537 = vsel %vm489, %v532, %v536
        %s538 = scalar_lea.vmem %s3, 64
        %v539 = vld [vmem:[%s538] sm:$0xf]
        %v540 = vld [vmem:[%s538 + $0x4] sm:$0xf]
        %v541 = vld [vmem:[%s538 + $0x8] sm:$0xf]
        %v542 = vld [vmem:[%s538 + $0xc] sm:$0xf]
        %v543 = vld [vmem:[%s538 + $0x10] sm:$0xf]
        %v544 = vld [vmem:[%s538 + $0x14] sm:$0xf]
        %v545 = vld [vmem:[%s538 + $0x18] sm:$0xf]
        %v546 = vld [vmem:[%s538 + $0x1c] sm:$0xf]
        %v547 = vld [vmem:[%s538 + $0x20] sm:$0xf]
        %v548 = vld [vmem:[%s538 + $0x24] sm:$0xf]
        %v549 = vld [vmem:[%s538 + $0x28] sm:$0xf]
        %v550 = vld [vmem:[%s538 + $0x2c] sm:$0xf]
        %v551 = vld [vmem:[%s538 + $0x30] sm:$0xf]
        %v552 = vld [vmem:[%s538 + $0x34] sm:$0xf]
        %v553 = vld [vmem:[%s538 + $0x38] sm:$0xf]
        %v554 = vld [vmem:[%s538 + $0x3c] sm:$0xf]
        %v555 = vunpack.c.l.b16 %v503
        %v556 = vunpack.c.l.b16 %v513
        %v557 = vunpack.c.l.b16 %v527
        %v558 = vunpack.c.l.b16 %v537
        %v559 = vpack.c.b16 %v556, %v555
        %v560 = vpack.c.b16 %v558, %v557
        %v579 = vunpack.c.l.b16 %v539
        %v580 = vunpack.c.l.b16 %v540
        %v581 = vunpack.c.l.b16 %v541
        %v582 = vunpack.c.l.b16 %v542
        %v583 = vunpack.c.l.b16 %v543
        %v584 = vunpack.c.l.b16 %v544
        %v585 = vunpack.c.l.b16 %v545
        %v586 = vunpack.c.l.b16 %v546
        %v587 = vunpack.c.l.b16 %v547
        %v588 = vunpack.c.l.b16 %v548
        %v589 = vunpack.c.l.b16 %v549
        %v590 = vunpack.c.l.b16 %v550
        %v591 = vunpack.c.l.b16 %v551
        %v592 = vunpack.c.l.b16 %v552
        %v593 = vunpack.c.l.b16 %v553
        %v594 = vunpack.c.l.b16 %v554
        %v595 = vpack.c.b16 %v580, %v579
        %v596 = vpack.c.b16 %v582, %v581
        %v597 = vpack.c.b16 %v584, %v583
        %v598 = vpack.c.b16 %v586, %v585
        %v599 = vpack.c.b16 %v588, %v587
        %v600 = vpack.c.b16 %v590, %v589
        %v601 = vpack.c.b16 %v592, %v591
        %v602 = vpack.c.b16 %v594, %v593
        %611 = vmatprep.subr.bf16.mxu0 0
        %612 = vmatpush1.bf16.msra.mxu0 %v595
        %613 = vmatprep.subr.bf16.mxu0 0
        %614 = vmatpush1.bf16.msra.mxu0 %v596
        %615 = vmatprep.subr.bf16.mxu0 0
        %616 = vmatpush1.bf16.msra.mxu0 %v597
        %617 = vmatprep.subr.bf16.mxu0 0
        %618 = vmatpush1.bf16.msra.mxu0 %v598
        %619 = vmatprep.subr.bf16.mxu0 0
        %620 = vmatpush1.bf16.msra.mxu0 %v599
        %621 = vmatprep.subr.bf16.mxu0 0
        %622 = vmatpush1.bf16.msra.mxu0 %v600
        %623 = vmatprep.subr.bf16.mxu0 0
        %624 = vmatpush1.bf16.msra.mxu0 %v601
        %625 = vmatprep.subr.bf16.mxu0 0
        %626 = vmatpush1.bf16.msra.mxu0 %v602
        %627 = vmatprep.subr.bf16.mxu0 0
        %628 = vmatpush1.bf16.msra.mxu0 0
        %629 = vmatprep.subr.bf16.mxu0 0
        %630 = vmatpush1.bf16.msra.mxu0 0
        %631 = vmatprep.subr.bf16.mxu0 0
        %632 = vmatpush1.bf16.msra.mxu0 0
        %633 = vmatprep.subr.bf16.mxu0 0
        %634 = vmatpush1.bf16.msra.mxu0 0
        %635 = vmatprep.subr.bf16.mxu0 0
        %636 = vmatpush1.bf16.msra.mxu0 0
        %637 = vmatprep.subr.bf16.mxu0 0
        %638 = vmatpush1.bf16.msra.mxu0 0
        %639 = vmatprep.subr.bf16.mxu0 0
        %640 = vmatpush1.bf16.msra.mxu0 0
        %641 = vmatprep.subr.bf16.mxu0 0
        %642 = vmatpush1.bf16.msra.mxu0 0
        %643 = vmatprep.mubr.bf16.mxu0 0
        %644 = vmatmul.mubr.bf16.gmra.mrb[0].mxu0 %v559
        %v645 = vpop.f32.mrb[0].mxu0
        %v646 = vadd.f32 0.0, %v645
        %v647 = vpop.f32.mrb[0].mxu0
        %v648 = vpop.f32.mrb[0].mxu0
        %v649 = vadd.f32 0.0, %v648
        %v650 = vpop.f32.mrb[0].mxu0
        %651 = vmatprep.mubr.bf16.mxu0 0
        %652 = vmatmul.mubr.bf16.gmra.mrb[0].mxu0 %v560
        %v653 = vpop.f32.mrb[0].mxu0
        %v654 = vadd.f32 0.0, %v653
        %v655 = vpop.f32.mrb[0].mxu0
        %v656 = vpop.f32.mrb[0].mxu0
        %v657 = vadd.f32 0.0, %v656
        %v658 = vpop.f32.mrb[0].mxu0
        %659 = vdwg.mxu0
        %v664 = vunpack.c.l.b16 %v465
        %v665 = vunpack.c.l.b16 %v466
        %v666 = vunpack.c.l.b16 %v468
        %v667 = vunpack.c.l.b16 %v469
        %v668 = vpack.c.b16 %v665, %v664
        %v669 = vpack.c.b16 %v667, %v666
        %v688 = vunpack.c.l.b16 %v471
        %v689 = vunpack.c.l.b16 %v472
        %v690 = vunpack.c.l.b16 %v473
        %v691 = vunpack.c.l.b16 %v474
        %v692 = vunpack.c.l.b16 %v475
        %v693 = vunpack.c.l.b16 %v476
        %v694 = vunpack.c.l.b16 %v477
        %v695 = vunpack.c.l.b16 %v478
        %v696 = vunpack.c.l.b16 %v479
        %v697 = vunpack.c.l.b16 %v480
        %v698 = vunpack.c.l.b16 %v481
        %v699 = vunpack.c.l.b16 %v482
        %v700 = vunpack.c.l.b16 %v483
        %v701 = vunpack.c.l.b16 %v484
        %v702 = vunpack.c.l.b16 %v485
        %v703 = vunpack.c.l.b16 %v486
        %v704 = vpack.c.b16 %v689, %v688
        %v705 = vpack.c.b16 %v691, %v690
        %v706 = vpack.c.b16 %v693, %v692
        %v707 = vpack.c.b16 %v695, %v694
        %v708 = vpack.c.b16 %v697, %v696
        %v709 = vpack.c.b16 %v699, %v698
        %v710 = vpack.c.b16 %v701, %v700
        %v711 = vpack.c.b16 %v703, %v702
        %720 = vmatprep.subr.bf16.mxu0 0
        %721 = vmatpush1.bf16.msra.mxu0 %v704
        %722 = vmatprep.subr.bf16.mxu0 0
        %723 = vmatpush1.bf16.msra.mxu0 %v705
        %724 = vmatprep.subr.bf16.mxu0 0
        %725 = vmatpush1.bf16.msra.mxu0 %v706
        %726 = vmatprep.subr.bf16.mxu0 0
        %727 = vmatpush1.bf16.msra.mxu0 %v707
        %728 = vmatprep.subr.bf16.mxu0 0
        %729 = vmatpush1.bf16.msra.mxu0 %v708
        %730 = vmatprep.subr.bf16.mxu0 0
        %731 = vmatpush1.bf16.msra.mxu0 %v709
        %732 = vmatprep.subr.bf16.mxu0 0
        %733 = vmatpush1.bf16.msra.mxu0 %v710
        %734 = vmatprep.subr.bf16.mxu0 0
        %735 = vmatpush1.bf16.msra.mxu0 %v711
        %736 = vmatprep.subr.bf16.mxu0 0
        %737 = vmatpush1.bf16.msra.mxu0 0
        %738 = vmatprep.subr.bf16.mxu0 0
        %739 = vmatpush1.bf16.msra.mxu0 0
        %740 = vmatprep.subr.bf16.mxu0 0
        %741 = vmatpush1.bf16.msra.mxu0 0
        %742 = vmatprep.subr.bf16.mxu0 0
        %743 = vmatpush1.bf16.msra.mxu0 0
        %744 = vmatprep.subr.bf16.mxu0 0
        %745 = vmatpush1.bf16.msra.mxu0 0
        %746 = vmatprep.subr.bf16.mxu0 0
        %747 = vmatpush1.bf16.msra.mxu0 0
        %748 = vmatprep.subr.bf16.mxu0 0
        %749 = vmatpush1.bf16.msra.mxu0 0
        %750 = vmatprep.subr.bf16.mxu0 0
        %751 = vmatpush1.bf16.msra.mxu0 0
        %752 = vmatprep.mubr.bf16.mxu0 0
        %753 = vmatmul.mubr.bf16.gmra.mrb[0].mxu0 %v668
        %v754 = vpop.f32.mrb[0].mxu0
        %v755 = vadd.f32 %v646, %v754
        %v756 = vpop.f32.mrb[0].mxu0
        %v757 = vpop.f32.mrb[0].mxu0
        %v758 = vadd.f32 %v649, %v757
        %v759 = vpop.f32.mrb[0].mxu0
        %760 = vmatprep.mubr.bf16.mxu0 0
        %761 = vmatmul.mubr.bf16.gmra.mrb[0].mxu0 %v669
        %v762 = vpop.f32.mrb[0].mxu0
        %v763 = vadd.f32 %v654, %v762
        %v764 = vpop.f32.mrb[0].mxu0
        %v765 = vpop.f32.mrb[0].mxu0
        %v766 = vadd.f32 %v657, %v765
        %v767 = vpop.f32.mrb[0].mxu0
        %768 = vdwg.mxu0
        %vm771 = vcmask 1042432
        %vm772 = vcmask 1046532
        %vm773 = vmor %vm771, %vm772
        %v774 = vrot.slane %v465, 5
        %v775 = vrot.slane %v774, 4
        %v776 = vrot.slane %v466, 5
        %v777 = vsel %vm773, %v775, %v776
        %v778 = vrot.slane %v776, 4
        %v779 = vrot.slane %v467, 5
        %v780 = vsel %vm773, %v778, %v779
        %v781 = vrot.slane %v468, 5
        %v782 = vrot.slane %v781, 4
        %v783 = vrot.slane %v469, 5
        %v784 = vsel %vm773, %v782, %v783
        %v785 = vrot.slane %v783, 4
        %v786 = vrot.slane %v470, 5
        %v787 = vsel %vm773, %v785, %v786
        %s788 = scalar_lea.vmem %s3, 128
        %v789 = vld [vmem:[%s788] sm:$0xf]
        %v790 = vld [vmem:[%s788 + $0x4] sm:$0xf]
        %v791 = vld [vmem:[%s788 + $0x8] sm:$0xf]
        %v792 = vld [vmem:[%s788 + $0xc] sm:$0xf]
        %v793 = vld [vmem:[%s788 + $0x10] sm:$0xf]
        %v794 = vld [vmem:[%s788 + $0x14] sm:$0xf]
        %v795 = vld [vmem:[%s788 + $0x18] sm:$0xf]
        %v796 = vld [vmem:[%s788 + $0x1c] sm:$0xf]
        %v797 = vld [vmem:[%s788 + $0x20] sm:$0xf]
        %v798 = vld [vmem:[%s788 + $0x24] sm:$0xf]
        %v799 = vld [vmem:[%s788 + $0x28] sm:$0xf]
        %v800 = vld [vmem:[%s788 + $0x2c] sm:$0xf]
        %v801 = vld [vmem:[%s788 + $0x30] sm:$0xf]
        %v802 = vld [vmem:[%s788 + $0x34] sm:$0xf]
        %v803 = vld [vmem:[%s788 + $0x38] sm:$0xf]
        %v804 = vld [vmem:[%s788 + $0x3c] sm:$0xf]
        %v805 = vunpack.c.l.b16 %v777
        %v806 = vunpack.c.l.b16 %v780
        %v807 = vunpack.c.l.b16 %v784
        %v808 = vunpack.c.l.b16 %v787
        %v809 = vpack.c.b16 %v806, %v805
        %v810 = vpack.c.b16 %v808, %v807
        %v829 = vunpack.c.l.b16 %v789
        %v830 = vunpack.c.l.b16 %v790
        %v831 = vunpack.c.l.b16 %v791
        %v832 = vunpack.c.l.b16 %v792
        %v833 = vunpack.c.l.b16 %v793
        %v834 = vunpack.c.l.b16 %v794
        %v835 = vunpack.c.l.b16 %v795
        %v836 = vunpack.c.l.b16 %v796
        %v837 = vunpack.c.l.b16 %v797
        %v838 = vunpack.c.l.b16 %v798
        %v839 = vunpack.c.l.b16 %v799
        %v840 = vunpack.c.l.b16 %v800
        %v841 = vunpack.c.l.b16 %v801
        %v842 = vunpack.c.l.b16 %v802
        %v843 = vunpack.c.l.b16 %v803
        %v844 = vunpack.c.l.b16 %v804
        %v845 = vpack.c.b16 %v830, %v829
        %v846 = vpack.c.b16 %v832, %v831
        %v847 = vpack.c.b16 %v834, %v833
        %v848 = vpack.c.b16 %v836, %v835
        %v849 = vpack.c.b16 %v838, %v837
        %v850 = vpack.c.b16 %v840, %v839
        %v851 = vpack.c.b16 %v842, %v841
        %v852 = vpack.c.b16 %v844, %v843
        %861 = vmatprep.subr.bf16.mxu0 0
        %862 = vmatpush1.bf16.msra.mxu0 %v845
        %863 = vmatprep.subr.bf16.mxu0 0
        %864 = vmatpush1.bf16.msra.mxu0 %v846
        %865 = vmatprep.subr.bf16.mxu0 0
        %866 = vmatpush1.bf16.msra.mxu0 %v847
        %867 = vmatprep.subr.bf16.mxu0 0
        %868 = vmatpush1.bf16.msra.mxu0 %v848
        %869 = vmatprep.subr.bf16.mxu0 0
        %870 = vmatpush1.bf16.msra.mxu0 %v849
        %871 = vmatprep.subr.bf16.mxu0 0
        %872 = vmatpush1.bf16.msra.mxu0 %v850
        %873 = vmatprep.subr.bf16.mxu0 0
        %874 = vmatpush1.bf16.msra.mxu0 %v851
        %875 = vmatprep.subr.bf16.mxu0 0
        %876 = vmatpush1.bf16.msra.mxu0 %v852
        %877 = vmatprep.subr.bf16.mxu0 0
        %878 = vmatpush1.bf16.msra.mxu0 0
        %879 = vmatprep.subr.bf16.mxu0 0
        %880 = vmatpush1.bf16.msra.mxu0 0
        %881 = vmatprep.subr.bf16.mxu0 0
        %882 = vmatpush1.bf16.msra.mxu0 0
        %883 = vmatprep.subr.bf16.mxu0 0
        %884 = vmatpush1.bf16.msra.mxu0 0
        %885 = vmatprep.subr.bf16.mxu0 0
        %886 = vmatpush1.bf16.msra.mxu0 0
        %887 = vmatprep.subr.bf16.mxu0 0
        %888 = vmatpush1.bf16.msra.mxu0 0
        %889 = vmatprep.subr.bf16.mxu0 0
        %890 = vmatpush1.bf16.msra.mxu0 0
        %891 = vmatprep.subr.bf16.mxu0 0
        %892 = vmatpush1.bf16.msra.mxu0 0
        %893 = vmatprep.mubr.bf16.mxu0 0
        %894 = vmatmul.mubr.bf16.gmra.mrb[0].mxu0 %v809
        %v895 = vpop.f32.mrb[0].mxu0
        %v896 = vadd.f32 0.0, %v895
        %v897 = vpop.f32.mrb[0].mxu0
        %v898 = vpop.f32.mrb[0].mxu0
        %v899 = vadd.f32 0.0, %v898
        %v900 = vpop.f32.mrb[0].mxu0
        %901 = vmatprep.mubr.bf16.mxu0 0
        %902 = vmatmul.mubr.bf16.gmra.mrb[0].mxu0 %v810
        %v903 = vpop.f32.mrb[0].mxu0
        %v904 = vadd.f32 0.0, %v903
        %v905 = vpop.f32.mrb[0].mxu0
        %v906 = vpop.f32.mrb[0].mxu0
        %v907 = vadd.f32 0.0, %v906
        %v908 = vpop.f32.mrb[0].mxu0
        %909 = vdwg.mxu0
        %v910 = vadd.f32 %v755, %v896
        %v911 = vadd.f32 %v758, %v899
        %v912 = vadd.f32 %v763, %v904
        %v913 = vadd.f32 %v766, %v907
        %v914 = vld [vmem:[%s415] sm:$0xf]
        %v915 = vld [vmem:[%s415 + $0x4] sm:$0xf]
        %v916 = vld [vmem:[%s415 + $0x8] sm:$0x1]
        %v917 = vld [vmem:[%s415 + $0xc] sm:$0xf]
        %v918 = vld [vmem:[%s415 + $0x10] sm:$0xf]
        %v919 = vld [vmem:[%s415 + $0x14] sm:$0x1]
        %s920 = scalar_lea.vmem %s3, 192
        %v921 = vld [vmem:[%s920] sm:$0xf]
        %v922 = vld [vmem:[%s920 + $0x4] sm:$0xf]
        %v923 = vld [vmem:[%s920 + $0x8] sm:$0xf]
        %v924 = vld [vmem:[%s920 + $0xc] sm:$0xf]
        %v925 = vld [vmem:[%s920 + $0x10] sm:$0xf]
        %v926 = vld [vmem:[%s920 + $0x14] sm:$0xf]
        %v927 = vld [vmem:[%s920 + $0x18] sm:$0xf]
        %v928 = vld [vmem:[%s920 + $0x1c] sm:$0xf]
        %v929 = vld [vmem:[%s920 + $0x20] sm:$0xf]
        %v930 = vld [vmem:[%s920 + $0x24] sm:$0xf]
        %v931 = vld [vmem:[%s920 + $0x28] sm:$0xf]
        %v932 = vld [vmem:[%s920 + $0x2c] sm:$0xf]
        %v933 = vld [vmem:[%s920 + $0x30] sm:$0xf]
        %v934 = vld [vmem:[%s920 + $0x34] sm:$0xf]
        %v935 = vld [vmem:[%s920 + $0x38] sm:$0xf]
        %v936 = vld [vmem:[%s920 + $0x3c] sm:$0xf]
        %v941 = vunpack.c.l.b16 %v914
        %v942 = vunpack.c.l.b16 %v915
        %v943 = vunpack.c.l.b16 %v917
        %v944 = vunpack.c.l.b16 %v918
        %v945 = vpack.c.b16 %v942, %v941
        %v946 = vpack.c.b16 %v944, %v943
        %v965 = vunpack.c.l.b16 %v921
        %v966 = vunpack.c.l.b16 %v922
        %v967 = vunpack.c.l.b16 %v923
        %v968 = vunpack.c.l.b16 %v924
        %v969 = vunpack.c.l.b16 %v925
        %v970 = vunpack.c.l.b16 %v926
        %v971 = vunpack.c.l.b16 %v927
        %v972 = vunpack.c.l.b16 %v928
        %v973 = vunpack.c.l.b16 %v929
        %v974 = vunpack.c.l.b16 %v930
        %v975 = vunpack.c.l.b16 %v931
        %v976 = vunpack.c.l.b16 %v932
        %v977 = vunpack.c.l.b16 %v933
        %v978 = vunpack.c.l.b16 %v934
        %v979 = vunpack.c.l.b16 %v935
        %v980 = vunpack.c.l.b16 %v936
        %v981 = vpack.c.b16 %v966, %v965
        %v982 = vpack.c.b16 %v968, %v967
        %v983 = vpack.c.b16 %v970, %v969
        %v984 = vpack.c.b16 %v972, %v971
        %v985 = vpack.c.b16 %v974, %v973
        %v986 = vpack.c.b16 %v976, %v975
        %v987 = vpack.c.b16 %v978, %v977
        %v988 = vpack.c.b16 %v980, %v979
        %997 = vmatprep.subr.bf16.mxu0 0
        %998 = vmatpush1.bf16.msra.mxu0 %v981
        %999 = vmatprep.subr.bf16.mxu0 0
        %1000 = vmatpush1.bf16.msra.mxu0 %v982
        %1001 = vmatprep.subr.bf16.mxu0 0
        %1002 = vmatpush1.bf16.msra.mxu0 %v983
        %1003 = vmatprep.subr.bf16.mxu0 0
        %1004 = vmatpush1.bf16.msra.mxu0 %v984
        %1005 = vmatprep.subr.bf16.mxu0 0
        %1006 = vmatpush1.bf16.msra.mxu0 %v985
        %1007 = vmatprep.subr.bf16.mxu0 0
        %1008 = vmatpush1.bf16.msra.mxu0 %v986
        %1009 = vmatprep.subr.bf16.mxu0 0
        %1010 = vmatpush1.bf16.msra.mxu0 %v987
        %1011 = vmatprep.subr.bf16.mxu0 0
        %1012 = vmatpush1.bf16.msra.mxu0 %v988
        %1013 = vmatprep.subr.bf16.mxu0 0
        %1014 = vmatpush1.bf16.msra.mxu0 0
        %1015 = vmatprep.subr.bf16.mxu0 0
        %1016 = vmatpush1.bf16.msra.mxu0 0
        %1017 = vmatprep.subr.bf16.mxu0 0
        %1018 = vmatpush1.bf16.msra.mxu0 0
        %1019 = vmatprep.subr.bf16.mxu0 0
        %1020 = vmatpush1.bf16.msra.mxu0 0
        %1021 = vmatprep.subr.bf16.mxu0 0
        %1022 = vmatpush1.bf16.msra.mxu0 0
        %1023 = vmatprep.subr.bf16.mxu0 0
        %1024 = vmatpush1.bf16.msra.mxu0 0
        %1025 = vmatprep.subr.bf16.mxu0 0
        %1026 = vmatpush1.bf16.msra.mxu0 0
        %1027 = vmatprep.subr.bf16.mxu0 0
        %1028 = vmatpush1.bf16.msra.mxu0 0
        %1029 = vmatprep.mubr.bf16.mxu0 0
        %1030 = vmatmul.mubr.bf16.gmra.mrb[0].mxu0 %v945
        %v1031 = vpop.f32.mrb[0].mxu0
        %v1032 = vadd.f32 0.0, %v1031
        %v1033 = vpop.f32.mrb[0].mxu0
        %v1034 = vpop.f32.mrb[0].mxu0
        %v1035 = vadd.f32 0.0, %v1034
        %v1036 = vpop.f32.mrb[0].mxu0
        %1037 = vmatprep.mubr.bf16.mxu0 0
        %1038 = vmatmul.mubr.bf16.gmra.mrb[0].mxu0 %v946
        %v1039 = vpop.f32.mrb[0].mxu0
        %v1040 = vadd.f32 0.0, %v1039
        %v1041 = vpop.f32.mrb[0].mxu0
        %v1042 = vpop.f32.mrb[0].mxu0
        %v1043 = vadd.f32 0.0, %v1042
        %v1044 = vpop.f32.mrb[0].mxu0
        %1045 = vdwg.mxu0
        %v1046 = vadd.f32 %v910, %v1032
        %v1047 = vadd.f32 %v911, %v1035
        %v1048 = vadd.f32 %v912, %v1040
        %v1049 = vadd.f32 %v913, %v1043
        %v1051 = vshrl.u32 %v914, 16
        %v1053 = vrot.slane %v1051, 4
        %v1054 = vshll.u32 %v914, 16
        %v1056 = vrot.slane %v1054, 5
        %v1057 = vor.u32 %v1053, %v1056
        %v1058 = vrot.slane %v1057, 4
        %v1060 = vshll.u32 %v915, 16
        %v1062 = vrot.slane %v1060, 5
        %v1063 = vsel %vm489, %v1058, %v1062
        %v1064 = vshrl.u32 %v915, 16
        %v1066 = vrot.slane %v1064, 4
        %v1067 = vor.u32 %v1066, %v1062
        %v1068 = vrot.slane %v1067, 4
        %v1070 = vshll.u32 %v916, 16
        %v1072 = vrot.slane %v1070, 5
        %v1073 = vsel %vm489, %v1068, %v1072
        %v1075 = vshrl.u32 %v917, 16
        %v1077 = vrot.slane %v1075, 4
        %v1078 = vshll.u32 %v917, 16
        %v1080 = vrot.slane %v1078, 5
        %v1081 = vor.u32 %v1077, %v1080
        %v1082 = vrot.slane %v1081, 4
        %v1084 = vshll.u32 %v918, 16
        %v1086 = vrot.slane %v1084, 5
        %v1087 = vsel %vm489, %v1082, %v1086
        %v1088 = vshrl.u32 %v918, 16
        %v1090 = vrot.slane %v1088, 4
        %v1091 = vor.u32 %v1090, %v1086
        %v1092 = vrot.slane %v1091, 4
        %v1094 = vshll.u32 %v919, 16
        %v1096 = vrot.slane %v1094, 5
        %v1097 = vsel %vm489, %v1092, %v1096
        %s1098 = scalar_lea.vmem %s3, 256
        %v1099 = vld [vmem:[%s1098] sm:$0xf]
        %v1100 = vld [vmem:[%s1098 + $0x4] sm:$0xf]
        %v1101 = vld [vmem:[%s1098 + $0x8] sm:$0xf]
        %v1102 = vld [vmem:[%s1098 + $0xc] sm:$0xf]
        %v1103 = vld [vmem:[%s1098 + $0x10] sm:$0xf]
        %v1104 = vld [vmem:[%s1098 + $0x14] sm:$0xf]
        %v1105 = vld [vmem:[%s1098 + $0x18] sm:$0xf]
        %v1106 = vld [vmem:[%s1098 + $0x1c] sm:$0xf]
        %v1107 = vld [vmem:[%s1098 + $0x20] sm:$0xf]
        %v1108 = vld [vmem:[%s1098 + $0x24] sm:$0xf]
        %v1109 = vld [vmem:[%s1098 + $0x28] sm:$0xf]
        %v1110 = vld [vmem:[%s1098 + $0x2c] sm:$0xf]
        %v1111 = vld [vmem:[%s1098 + $0x30] sm:$0xf]
        %v1112 = vld [vmem:[%s1098 + $0x34] sm:$0xf]
        %v1113 = vld [vmem:[%s1098 + $0x38] sm:$0xf]
        %v1114 = vld [vmem:[%s1098 + $0x3c] sm:$0xf]
        %v1115 = vunpack.c.l.b16 %v1063
        %v1116 = vunpack.c.l.b16 %v1073
        %v1117 = vunpack.c.l.b16 %v1087
        %v1118 = vunpack.c.l.b16 %v1097
        %v1119 = vpack.c.b16 %v1116, %v1115
        %v1120 = vpack.c.b16 %v1118, %v1117
        %v1139 = vunpack.c.l.b16 %v1099
        %v1140 = vunpack.c.l.b16 %v1100
        %v1141 = vunpack.c.l.b16 %v1101
        %v1142 = vunpack.c.l.b16 %v1102
        %v1143 = vunpack.c.l.b16 %v1103
        %v1144 = vunpack.c.l.b16 %v1104
        %v1145 = vunpack.c.l.b16 %v1105
        %v1146 = vunpack.c.l.b16 %v1106
        %v1147 = vunpack.c.l.b16 %v1107
        %v1148 = vunpack.c.l.b16 %v1108
        %v1149 = vunpack.c.l.b16 %v1109
        %v1150 = vunpack.c.l.b16 %v1110
        %v1151 = vunpack.c.l.b16 %v1111
        %v1152 = vunpack.c.l.b16 %v1112
        %v1153 = vunpack.c.l.b16 %v1113
        %v1154 = vunpack.c.l.b16 %v1114
        %v1155 = vpack.c.b16 %v1140, %v1139
        %v1156 = vpack.c.b16 %v1142, %v1141
        %v1157 = vpack.c.b16 %v1144, %v1143
        %v1158 = vpack.c.b16 %v1146, %v1145
        %v1159 = vpack.c.b16 %v1148, %v1147
        %v1160 = vpack.c.b16 %v1150, %v1149
        %v1161 = vpack.c.b16 %v1152, %v1151
        %v1162 = vpack.c.b16 %v1154, %v1153
        %1171 = vmatprep.subr.bf16.mxu0 0
        %1172 = vmatpush1.bf16.msra.mxu0 %v1155
        %1173 = vmatprep.subr.bf16.mxu0 0
        %1174 = vmatpush1.bf16.msra.mxu0 %v1156
        %1175 = vmatprep.subr.bf16.mxu0 0
        %1176 = vmatpush1.bf16.msra.mxu0 %v1157
        %1177 = vmatprep.subr.bf16.mxu0 0
        %1178 = vmatpush1.bf16.msra.mxu0 %v1158
        %1179 = vmatprep.subr.bf16.mxu0 0
        %1180 = vmatpush1.bf16.msra.mxu0 %v1159
        %1181 = vmatprep.subr.bf16.mxu0 0
        %1182 = vmatpush1.bf16.msra.mxu0 %v1160
        %1183 = vmatprep.subr.bf16.mxu0 0
        %1184 = vmatpush1.bf16.msra.mxu0 %v1161
        %1185 = vmatprep.subr.bf16.mxu0 0
        %1186 = vmatpush1.bf16.msra.mxu0 %v1162
        %1187 = vmatprep.subr.bf16.mxu0 0
        %1188 = vmatpush1.bf16.msra.mxu0 0
        %1189 = vmatprep.subr.bf16.mxu0 0
        %1190 = vmatpush1.bf16.msra.mxu0 0
        %1191 = vmatprep.subr.bf16.mxu0 0
        %1192 = vmatpush1.bf16.msra.mxu0 0
        %1193 = vmatprep.subr.bf16.mxu0 0
        %1194 = vmatpush1.bf16.msra.mxu0 0
        %1195 = vmatprep.subr.bf16.mxu0 0
        %1196 = vmatpush1.bf16.msra.mxu0 0
        %1197 = vmatprep.subr.bf16.mxu0 0
        %1198 = vmatpush1.bf16.msra.mxu0 0
        %1199 = vmatprep.subr.bf16.mxu0 0
        %1200 = vmatpush1.bf16.msra.mxu0 0
        %1201 = vmatprep.subr.bf16.mxu0 0
        %1202 = vmatpush1.bf16.msra.mxu0 0
        %1203 = vmatprep.mubr.bf16.mxu0 0
        %1204 = vmatmul.mubr.bf16.gmra.mrb[0].mxu0 %v1119
        %v1205 = vpop.f32.mrb[0].mxu0
        %v1206 = vadd.f32 0.0, %v1205
        %v1207 = vpop.f32.mrb[0].mxu0
        %v1208 = vpop.f32.mrb[0].mxu0
        %v1209 = vadd.f32 0.0, %v1208
        %v1210 = vpop.f32.mrb[0].mxu0
        %1211 = vmatprep.mubr.bf16.mxu0 0
        %1212 = vmatmul.mubr.bf16.gmra.mrb[0].mxu0 %v1120
        %v1213 = vpop.f32.mrb[0].mxu0
        %v1214 = vadd.f32 0.0, %v1213
        %v1215 = vpop.f32.mrb[0].mxu0
        %v1216 = vpop.f32.mrb[0].mxu0
        %v1217 = vadd.f32 0.0, %v1216
        %v1218 = vpop.f32.mrb[0].mxu0
        %1219 = vdwg.mxu0
        %v1220 = vadd.f32 %v1046, %v1206
        %v1221 = vadd.f32 %v1047, %v1209
        %v1222 = vadd.f32 %v1048, %v1214
        %v1223 = vadd.f32 %v1049, %v1217
        %v1226 = vrot.slane %v914, 5
        %v1227 = vrot.slane %v1226, 4
        %v1228 = vrot.slane %v915, 5
        %v1229 = vsel %vm773, %v1227, %v1228
        %v1230 = vrot.slane %v1228, 4
        %v1231 = vrot.slane %v916, 5
        %v1232 = vsel %vm773, %v1230, %v1231
        %v1233 = vrot.slane %v917, 5
        %v1234 = vrot.slane %v1233, 4
        %v1235 = vrot.slane %v918, 5
        %v1236 = vsel %vm773, %v1234, %v1235
        %v1237 = vrot.slane %v1235, 4
        %v1238 = vrot.slane %v919, 5
        %v1239 = vsel %vm773, %v1237, %v1238
        %s1240 = scalar_lea.vmem %s3, 320
        %v1241 = vld [vmem:[%s1240] sm:$0xf]
        %v1242 = vld [vmem:[%s1240 + $0x4] sm:$0xf]
        %v1243 = vld [vmem:[%s1240 + $0x8] sm:$0xf]
        %v1244 = vld [vmem:[%s1240 + $0xc] sm:$0xf]
        %v1245 = vld [vmem:[%s1240 + $0x10] sm:$0xf]
        %v1246 = vld [vmem:[%s1240 + $0x14] sm:$0xf]
        %v1247 = vld [vmem:[%s1240 + $0x18] sm:$0xf]
        %v1248 = vld [vmem:[%s1240 + $0x1c] sm:$0xf]
        %v1249 = vld [vmem:[%s1240 + $0x20] sm:$0xf]
        %v1250 = vld [vmem:[%s1240 + $0x24] sm:$0xf]
        %v1251 = vld [vmem:[%s1240 + $0x28] sm:$0xf]
        %v1252 = vld [vmem:[%s1240 + $0x2c] sm:$0xf]
        %v1253 = vld [vmem:[%s1240 + $0x30] sm:$0xf]
        %v1254 = vld [vmem:[%s1240 + $0x34] sm:$0xf]
        %v1255 = vld [vmem:[%s1240 + $0x38] sm:$0xf]
        %v1256 = vld [vmem:[%s1240 + $0x3c] sm:$0xf]
        %v1257 = vunpack.c.l.b16 %v1229
        %v1258 = vunpack.c.l.b16 %v1232
        %v1259 = vunpack.c.l.b16 %v1236
        %v1260 = vunpack.c.l.b16 %v1239
        %v1261 = vpack.c.b16 %v1258, %v1257
        %v1262 = vpack.c.b16 %v1260, %v1259
        %v1281 = vunpack.c.l.b16 %v1241
        %v1282 = vunpack.c.l.b16 %v1242
        %v1283 = vunpack.c.l.b16 %v1243
        %v1284 = vunpack.c.l.b16 %v1244
        %v1285 = vunpack.c.l.b16 %v1245
        %v1286 = vunpack.c.l.b16 %v1246
        %v1287 = vunpack.c.l.b16 %v1247
        %v1288 = vunpack.c.l.b16 %v1248
        %v1289 = vunpack.c.l.b16 %v1249
        %v1290 = vunpack.c.l.b16 %v1250
        %v1291 = vunpack.c.l.b16 %v1251
        %v1292 = vunpack.c.l.b16 %v1252
        %v1293 = vunpack.c.l.b16 %v1253
        %v1294 = vunpack.c.l.b16 %v1254
        %v1295 = vunpack.c.l.b16 %v1255
        %v1296 = vunpack.c.l.b16 %v1256
        %v1297 = vpack.c.b16 %v1282, %v1281
        %v1298 = vpack.c.b16 %v1284, %v1283
        %v1299 = vpack.c.b16 %v1286, %v1285
        %v1300 = vpack.c.b16 %v1288, %v1287
        %v1301 = vpack.c.b16 %v1290, %v1289
        %v1302 = vpack.c.b16 %v1292, %v1291
        %v1303 = vpack.c.b16 %v1294, %v1293
        %v1304 = vpack.c.b16 %v1296, %v1295
        %1313 = vmatprep.subr.bf16.mxu0 0
        %1314 = vmatpush1.bf16.msra.mxu0 %v1297
        %1315 = vmatprep.subr.bf16.mxu0 0
        %1316 = vmatpush1.bf16.msra.mxu0 %v1298
        %1317 = vmatprep.subr.bf16.mxu0 0
        %1318 = vmatpush1.bf16.msra.mxu0 %v1299
        %1319 = vmatprep.subr.bf16.mxu0 0
        %1320 = vmatpush1.bf16.msra.mxu0 %v1300
        %1321 = vmatprep.subr.bf16.mxu0 0
        %1322 = vmatpush1.bf16.msra.mxu0 %v1301
        %1323 = vmatprep.subr.bf16.mxu0 0
        %1324 = vmatpush1.bf16.msra.mxu0 %v1302
        %1325 = vmatprep.subr.bf16.mxu0 0
        %1326 = vmatpush1.bf16.msra.mxu0 %v1303
        %1327 = vmatprep.subr.bf16.mxu0 0
        %1328 = vmatpush1.bf16.msra.mxu0 %v1304
        %1329 = vmatprep.subr.bf16.mxu0 0
        %1330 = vmatpush1.bf16.msra.mxu0 0
        %1331 = vmatprep.subr.bf16.mxu0 0
        %1332 = vmatpush1.bf16.msra.mxu0 0
        %1333 = vmatprep.subr.bf16.mxu0 0
        %1334 = vmatpush1.bf16.msra.mxu0 0
        %1335 = vmatprep.subr.bf16.mxu0 0
        %1336 = vmatpush1.bf16.msra.mxu0 0
        %1337 = vmatprep.subr.bf16.mxu0 0
        %1338 = vmatpush1.bf16.msra.mxu0 0
        %1339 = vmatprep.subr.bf16.mxu0 0
        %1340 = vmatpush1.bf16.msra.mxu0 0
        %1341 = vmatprep.subr.bf16.mxu0 0
        %1342 = vmatpush1.bf16.msra.mxu0 0
        %1343 = vmatprep.subr.bf16.mxu0 0
        %1344 = vmatpush1.bf16.msra.mxu0 0
        %1345 = vmatprep.mubr.bf16.mxu0 0
        %1346 = vmatmul.mubr.bf16.gmra.mrb[0].mxu0 %v1261
        %v1347 = vpop.f32.mrb[0].mxu0
        %v1348 = vadd.f32 0.0, %v1347
        %v1349 = vpop.f32.mrb[0].mxu0
        %v1350 = vpop.f32.mrb[0].mxu0
        %v1351 = vadd.f32 0.0, %v1350
        %v1352 = vpop.f32.mrb[0].mxu0
        %1353 = vmatprep.mubr.bf16.mxu0 0
        %1354 = vmatmul.mubr.bf16.gmra.mrb[0].mxu0 %v1262
        %v1355 = vpop.f32.mrb[0].mxu0
        %v1356 = vadd.f32 0.0, %v1355
        %v1357 = vpop.f32.mrb[0].mxu0
        %v1358 = vpop.f32.mrb[0].mxu0
        %v1359 = vadd.f32 0.0, %v1358
        %v1360 = vpop.f32.mrb[0].mxu0
        %1361 = vdwg.mxu0
        %v1362 = vadd.f32 %v1220, %v1348
        %v1363 = vadd.f32 %v1221, %v1351
        %v1364 = vadd.f32 %v1222, %v1356
        %v1365 = vadd.f32 %v1223, %v1359
        %v1366 = vld [vmem:[%s422] sm:$0xf]
        %v1367 = vld [vmem:[%s422 + $0x4] sm:$0xf]
        %v1368 = vld [vmem:[%s422 + $0x8] sm:$0x1]
        %v1369 = vld [vmem:[%s422 + $0xc] sm:$0xf]
        %v1370 = vld [vmem:[%s422 + $0x10] sm:$0xf]
        %v1371 = vld [vmem:[%s422 + $0x14] sm:$0x1]
        %s1372 = scalar_lea.vmem %s3, 384
        %v1373 = vld [vmem:[%s1372] sm:$0xf]
        %v1374 = vld [vmem:[%s1372 + $0x4] sm:$0xf]
        %v1375 = vld [vmem:[%s1372 + $0x8] sm:$0xf]
        %v1376 = vld [vmem:[%s1372 + $0xc] sm:$0xf]
        %v1377 = vld [vmem:[%s1372 + $0x10] sm:$0xf]
        %v1378 = vld [vmem:[%s1372 + $0x14] sm:$0xf]
        %v1379 = vld [vmem:[%s1372 + $0x18] sm:$0xf]
        %v1380 = vld [vmem:[%s1372 + $0x1c] sm:$0xf]
        %v1381 = vld [vmem:[%s1372 + $0x20] sm:$0xf]
        %v1382 = vld [vmem:[%s1372 + $0x24] sm:$0xf]
        %v1383 = vld [vmem:[%s1372 + $0x28] sm:$0xf]
        %v1384 = vld [vmem:[%s1372 + $0x2c] sm:$0xf]
        %v1385 = vld [vmem:[%s1372 + $0x30] sm:$0xf]
        %v1386 = vld [vmem:[%s1372 + $0x34] sm:$0xf]
        %v1387 = vld [vmem:[%s1372 + $0x38] sm:$0xf]
        %v1388 = vld [vmem:[%s1372 + $0x3c] sm:$0xf]
        %v1393 = vunpack.c.l.b16 %v1366
        %v1394 = vunpack.c.l.b16 %v1367
        %v1395 = vunpack.c.l.b16 %v1369
        %v1396 = vunpack.c.l.b16 %v1370
        %v1397 = vpack.c.b16 %v1394, %v1393
        %v1398 = vpack.c.b16 %v1396, %v1395
        %v1417 = vunpack.c.l.b16 %v1373
        %v1418 = vunpack.c.l.b16 %v1374
        %v1419 = vunpack.c.l.b16 %v1375
        %v1420 = vunpack.c.l.b16 %v1376
        %v1421 = vunpack.c.l.b16 %v1377
        %v1422 = vunpack.c.l.b16 %v1378
        %v1423 = vunpack.c.l.b16 %v1379
        %v1424 = vunpack.c.l.b16 %v1380
        %v1425 = vunpack.c.l.b16 %v1381
        %v1426 = vunpack.c.l.b16 %v1382
        %v1427 = vunpack.c.l.b16 %v1383
        %v1428 = vunpack.c.l.b16 %v1384
        %v1429 = vunpack.c.l.b16 %v1385
        %v1430 = vunpack.c.l.b16 %v1386
        %v1431 = vunpack.c.l.b16 %v1387
        %v1432 = vunpack.c.l.b16 %v1388
        %v1433 = vpack.c.b16 %v1418, %v1417
        %v1434 = vpack.c.b16 %v1420, %v1419
        %v1435 = vpack.c.b16 %v1422, %v1421
        %v1436 = vpack.c.b16 %v1424, %v1423
        %v1437 = vpack.c.b16 %v1426, %v1425
        %v1438 = vpack.c.b16 %v1428, %v1427
        %v1439 = vpack.c.b16 %v1430, %v1429
        %v1440 = vpack.c.b16 %v1432, %v1431
        %1449 = vmatprep.subr.bf16.mxu0 0
        %1450 = vmatpush1.bf16.msra.mxu0 %v1433
        %1451 = vmatprep.subr.bf16.mxu0 0
        %1452 = vmatpush1.bf16.msra.mxu0 %v1434
        %1453 = vmatprep.subr.bf16.mxu0 0
        %1454 = vmatpush1.bf16.msra.mxu0 %v1435
        %1455 = vmatprep.subr.bf16.mxu0 0
        %1456 = vmatpush1.bf16.msra.mxu0 %v1436
        %1457 = vmatprep.subr.bf16.mxu0 0
        %1458 = vmatpush1.bf16.msra.mxu0 %v1437
        %1459 = vmatprep.subr.bf16.mxu0 0
        %1460 = vmatpush1.bf16.msra.mxu0 %v1438
        %1461 = vmatprep.subr.bf16.mxu0 0
        %1462 = vmatpush1.bf16.msra.mxu0 %v1439
        %1463 = vmatprep.subr.bf16.mxu0 0
        %1464 = vmatpush1.bf16.msra.mxu0 %v1440
        %1465 = vmatprep.subr.bf16.mxu0 0
        %1466 = vmatpush1.bf16.msra.mxu0 0
        %1467 = vmatprep.subr.bf16.mxu0 0
        %1468 = vmatpush1.bf16.msra.mxu0 0
        %1469 = vmatprep.subr.bf16.mxu0 0
        %1470 = vmatpush1.bf16.msra.mxu0 0
        %1471 = vmatprep.subr.bf16.mxu0 0
        %1472 = vmatpush1.bf16.msra.mxu0 0
        %1473 = vmatprep.subr.bf16.mxu0 0
        %1474 = vmatpush1.bf16.msra.mxu0 0
        %1475 = vmatprep.subr.bf16.mxu0 0
        %1476 = vmatpush1.bf16.msra.mxu0 0
        %1477 = vmatprep.subr.bf16.mxu0 0
        %1478 = vmatpush1.bf16.msra.mxu0 0
        %1479 = vmatprep.subr.bf16.mxu0 0
        %1480 = vmatpush1.bf16.msra.mxu0 0
        %1481 = vmatprep.mubr.bf16.mxu0 0
        %1482 = vmatmul.mubr.bf16.gmra.mrb[0].mxu0 %v1397
        %v1483 = vpop.f32.mrb[0].mxu0
        %v1484 = vadd.f32 0.0, %v1483
        %v1485 = vpop.f32.mrb[0].mxu0
        %v1486 = vpop.f32.mrb[0].mxu0
        %v1487 = vadd.f32 0.0, %v1486
        %v1488 = vpop.f32.mrb[0].mxu0
        %1489 = vmatprep.mubr.bf16.mxu0 0
        %1490 = vmatmul.mubr.bf16.gmra.mrb[0].mxu0 %v1398
        %v1491 = vpop.f32.mrb[0].mxu0
        %v1492 = vadd.f32 0.0, %v1491
        %v1493 = vpop.f32.mrb[0].mxu0
        %v1494 = vpop.f32.mrb[0].mxu0
        %v1495 = vadd.f32 0.0, %v1494
        %v1496 = vpop.f32.mrb[0].mxu0
        %1497 = vdwg.mxu0
        %v1498 = vadd.f32 %v1362, %v1484
        %v1499 = vadd.f32 %v1363, %v1487
        %v1500 = vadd.f32 %v1364, %v1492
        %v1501 = vadd.f32 %v1365, %v1495
        %v1503 = vshrl.u32 %v1366, 16
        %v1505 = vrot.slane %v1503, 4
        %v1506 = vshll.u32 %v1366, 16
        %v1508 = vrot.slane %v1506, 5
        %v1509 = vor.u32 %v1505, %v1508
        %v1510 = vrot.slane %v1509, 4
        %v1512 = vshll.u32 %v1367, 16
        %v1514 = vrot.slane %v1512, 5
        %v1515 = vsel %vm489, %v1510, %v1514
        %v1516 = vshrl.u32 %v1367, 16
        %v1518 = vrot.slane %v1516, 4
        %v1519 = vor.u32 %v1518, %v1514
        %v1520 = vrot.slane %v1519, 4
        %v1522 = vshll.u32 %v1368, 16
        %v1524 = vrot.slane %v1522, 5
        %v1525 = vsel %vm489, %v1520, %v1524
        %v1527 = vshrl.u32 %v1369, 16
        %v1529 = vrot.slane %v1527, 4
        %v1530 = vshll.u32 %v1369, 16
        %v1532 = vrot.slane %v1530, 5
        %v1533 = vor.u32 %v1529, %v1532
        %v1534 = vrot.slane %v1533, 4
        %v1536 = vshll.u32 %v1370, 16
        %v1538 = vrot.slane %v1536, 5
        %v1539 = vsel %vm489, %v1534, %v1538
        %v1540 = vshrl.u32 %v1370, 16
        %v1542 = vrot.slane %v1540, 4
        %v1543 = vor.u32 %v1542, %v1538
        %v1544 = vrot.slane %v1543, 4
        %v1546 = vshll.u32 %v1371, 16
        %v1548 = vrot.slane %v1546, 5
        %v1549 = vsel %vm489, %v1544, %v1548
        %s1550 = scalar_lea.vmem %s3, 448
        %v1551 = vld [vmem:[%s1550] sm:$0xf]
        %v1552 = vld [vmem:[%s1550 + $0x4] sm:$0xf]
        %v1553 = vld [vmem:[%s1550 + $0x8] sm:$0xf]
        %v1554 = vld [vmem:[%s1550 + $0xc] sm:$0xf]
        %v1555 = vld [vmem:[%s1550 + $0x10] sm:$0xf]
        %v1556 = vld [vmem:[%s1550 + $0x14] sm:$0xf]
        %v1557 = vld [vmem:[%s1550 + $0x18] sm:$0xf]
        %v1558 = vld [vmem:[%s1550 + $0x1c] sm:$0xf]
        %v1559 = vld [vmem:[%s1550 + $0x20] sm:$0xf]
        %v1560 = vld [vmem:[%s1550 + $0x24] sm:$0xf]
        %v1561 = vld [vmem:[%s1550 + $0x28] sm:$0xf]
        %v1562 = vld [vmem:[%s1550 + $0x2c] sm:$0xf]
        %v1563 = vld [vmem:[%s1550 + $0x30] sm:$0xf]
        %v1564 = vld [vmem:[%s1550 + $0x34] sm:$0xf]
        %v1565 = vld [vmem:[%s1550 + $0x38] sm:$0xf]
        %v1566 = vld [vmem:[%s1550 + $0x3c] sm:$0xf]
        %v1567 = vunpack.c.l.b16 %v1515
        %v1568 = vunpack.c.l.b16 %v1525
        %v1569 = vunpack.c.l.b16 %v1539
        %v1570 = vunpack.c.l.b16 %v1549
        %v1571 = vpack.c.b16 %v1568, %v1567
        %v1572 = vpack.c.b16 %v1570, %v1569
        %v1591 = vunpack.c.l.b16 %v1551
        %v1592 = vunpack.c.l.b16 %v1552
        %v1593 = vunpack.c.l.b16 %v1553
        %v1594 = vunpack.c.l.b16 %v1554
        %v1595 = vunpack.c.l.b16 %v1555
        %v1596 = vunpack.c.l.b16 %v1556
        %v1597 = vunpack.c.l.b16 %v1557
        %v1598 = vunpack.c.l.b16 %v1558
        %v1599 = vunpack.c.l.b16 %v1559
        %v1600 = vunpack.c.l.b16 %v1560
        %v1601 = vunpack.c.l.b16 %v1561
        %v1602 = vunpack.c.l.b16 %v1562
        %v1603 = vunpack.c.l.b16 %v1563
        %v1604 = vunpack.c.l.b16 %v1564
        %v1605 = vunpack.c.l.b16 %v1565
        %v1606 = vunpack.c.l.b16 %v1566
        %v1607 = vpack.c.b16 %v1592, %v1591
        %v1608 = vpack.c.b16 %v1594, %v1593
        %v1609 = vpack.c.b16 %v1596, %v1595
        %v1610 = vpack.c.b16 %v1598, %v1597
        %v1611 = vpack.c.b16 %v1600, %v1599
        %v1612 = vpack.c.b16 %v1602, %v1601
        %v1613 = vpack.c.b16 %v1604, %v1603
        %v1614 = vpack.c.b16 %v1606, %v1605
        %1623 = vmatprep.subr.bf16.mxu0 0
        %1624 = vmatpush1.bf16.msra.mxu0 %v1607
        %1625 = vmatprep.subr.bf16.mxu0 0
        %1626 = vmatpush1.bf16.msra.mxu0 %v1608
        %1627 = vmatprep.subr.bf16.mxu0 0
        %1628 = vmatpush1.bf16.msra.mxu0 %v1609
        %1629 = vmatprep.subr.bf16.mxu0 0
        %1630 = vmatpush1.bf16.msra.mxu0 %v1610
        %1631 = vmatprep.subr.bf16.mxu0 0
        %1632 = vmatpush1.bf16.msra.mxu0 %v1611
        %1633 = vmatprep.subr.bf16.mxu0 0
        %1634 = vmatpush1.bf16.msra.mxu0 %v1612
        %1635 = vmatprep.subr.bf16.mxu0 0
        %1636 = vmatpush1.bf16.msra.mxu0 %v1613
        %1637 = vmatprep.subr.bf16.mxu0 0
        %1638 = vmatpush1.bf16.msra.mxu0 %v1614
        %1639 = vmatprep.subr.bf16.mxu0 0
        %1640 = vmatpush1.bf16.msra.mxu0 0
        %1641 = vmatprep.subr.bf16.mxu0 0
        %1642 = vmatpush1.bf16.msra.mxu0 0
        %1643 = vmatprep.subr.bf16.mxu0 0
        %1644 = vmatpush1.bf16.msra.mxu0 0
        %1645 = vmatprep.subr.bf16.mxu0 0
        %1646 = vmatpush1.bf16.msra.mxu0 0
        %1647 = vmatprep.subr.bf16.mxu0 0
        %1648 = vmatpush1.bf16.msra.mxu0 0
        %1649 = vmatprep.subr.bf16.mxu0 0
        %1650 = vmatpush1.bf16.msra.mxu0 0
        %1651 = vmatprep.subr.bf16.mxu0 0
        %1652 = vmatpush1.bf16.msra.mxu0 0
        %1653 = vmatprep.subr.bf16.mxu0 0
        %1654 = vmatpush1.bf16.msra.mxu0 0
        %1655 = vmatprep.mubr.bf16.mxu0 0
        %1656 = vmatmul.mubr.bf16.gmra.mrb[0].mxu0 %v1571
        %v1657 = vpop.f32.mrb[0].mxu0
        %v1658 = vadd.f32 0.0, %v1657
        %v1659 = vpop.f32.mrb[0].mxu0
        %v1660 = vpop.f32.mrb[0].mxu0
        %v1661 = vadd.f32 0.0, %v1660
        %v1662 = vpop.f32.mrb[0].mxu0
        %1663 = vmatprep.mubr.bf16.mxu0 0
        %1664 = vmatmul.mubr.bf16.gmra.mrb[0].mxu0 %v1572
        %v1665 = vpop.f32.mrb[0].mxu0
        %v1666 = vadd.f32 0.0, %v1665
        %v1667 = vpop.f32.mrb[0].mxu0
        %v1668 = vpop.f32.mrb[0].mxu0
        %v1669 = vadd.f32 0.0, %v1668
        %v1670 = vpop.f32.mrb[0].mxu0
        %1671 = vdwg.mxu0
        %v1672 = vadd.f32 %v1498, %v1658
        %v1673 = vadd.f32 %v1499, %v1661
        %v1674 = vadd.f32 %v1500, %v1666
        %v1675 = vadd.f32 %v1501, %v1669
        %v1678 = vrot.slane %v1366, 5
        %v1679 = vrot.slane %v1678, 4
        %v1680 = vrot.slane %v1367, 5
        %v1681 = vsel %vm773, %v1679, %v1680
        %v1682 = vrot.slane %v1680, 4
        %v1683 = vrot.slane %v1368, 5
        %v1684 = vsel %vm773, %v1682, %v1683
        %v1685 = vrot.slane %v1369, 5
        %v1686 = vrot.slane %v1685, 4
        %v1687 = vrot.slane %v1370, 5
        %v1688 = vsel %vm773, %v1686, %v1687
        %v1689 = vrot.slane %v1687, 4
        %v1690 = vrot.slane %v1371, 5
        %v1691 = vsel %vm773, %v1689, %v1690
        %s1692 = scalar_lea.vmem %s3, 512
        %v1693 = vld [vmem:[%s1692] sm:$0xf]
        %v1694 = vld [vmem:[%s1692 + $0x4] sm:$0xf]
        %v1695 = vld [vmem:[%s1692 + $0x8] sm:$0xf]
        %v1696 = vld [vmem:[%s1692 + $0xc] sm:$0xf]
        %v1697 = vld [vmem:[%s1692 + $0x10] sm:$0xf]
        %v1698 = vld [vmem:[%s1692 + $0x14] sm:$0xf]
        %v1699 = vld [vmem:[%s1692 + $0x18] sm:$0xf]
        %v1700 = vld [vmem:[%s1692 + $0x1c] sm:$0xf]
        %v1701 = vld [vmem:[%s1692 + $0x20] sm:$0xf]
        %v1702 = vld [vmem:[%s1692 + $0x24] sm:$0xf]
        %v1703 = vld [vmem:[%s1692 + $0x28] sm:$0xf]
        %v1704 = vld [vmem:[%s1692 + $0x2c] sm:$0xf]
        %v1705 = vld [vmem:[%s1692 + $0x30] sm:$0xf]
        %v1706 = vld [vmem:[%s1692 + $0x34] sm:$0xf]
        %v1707 = vld [vmem:[%s1692 + $0x38] sm:$0xf]
        %v1708 = vld [vmem:[%s1692 + $0x3c] sm:$0xf]
        %v1709 = vunpack.c.l.b16 %v1681
        %v1710 = vunpack.c.l.b16 %v1684
        %v1711 = vunpack.c.l.b16 %v1688
        %v1712 = vunpack.c.l.b16 %v1691
        %v1713 = vpack.c.b16 %v1710, %v1709
        %v1714 = vpack.c.b16 %v1712, %v1711
        %v1733 = vunpack.c.l.b16 %v1693
        %v1734 = vunpack.c.l.b16 %v1694
        %v1735 = vunpack.c.l.b16 %v1695
        %v1736 = vunpack.c.l.b16 %v1696
        %v1737 = vunpack.c.l.b16 %v1697
        %v1738 = vunpack.c.l.b16 %v1698
        %v1739 = vunpack.c.l.b16 %v1699
        %v1740 = vunpack.c.l.b16 %v1700
        %v1741 = vunpack.c.l.b16 %v1701
        %v1742 = vunpack.c.l.b16 %v1702
        %v1743 = vunpack.c.l.b16 %v1703
        %v1744 = vunpack.c.l.b16 %v1704
        %v1745 = vunpack.c.l.b16 %v1705
        %v1746 = vunpack.c.l.b16 %v1706
        %v1747 = vunpack.c.l.b16 %v1707
        %v1748 = vunpack.c.l.b16 %v1708
        %v1749 = vpack.c.b16 %v1734, %v1733
        %v1750 = vpack.c.b16 %v1736, %v1735
        %v1751 = vpack.c.b16 %v1738, %v1737
        %v1752 = vpack.c.b16 %v1740, %v1739
        %v1753 = vpack.c.b16 %v1742, %v1741
        %v1754 = vpack.c.b16 %v1744, %v1743
        %v1755 = vpack.c.b16 %v1746, %v1745
        %v1756 = vpack.c.b16 %v1748, %v1747
        %1765 = vmatprep.subr.bf16.mxu0 0
        %1766 = vmatpush1.bf16.msra.mxu0 %v1749
        %1767 = vmatprep.subr.bf16.mxu0 0
        %1768 = vmatpush1.bf16.msra.mxu0 %v1750
        %1769 = vmatprep.subr.bf16.mxu0 0
        %1770 = vmatpush1.bf16.msra.mxu0 %v1751
        %1771 = vmatprep.subr.bf16.mxu0 0
        %1772 = vmatpush1.bf16.msra.mxu0 %v1752
        %1773 = vmatprep.subr.bf16.mxu0 0
        %1774 = vmatpush1.bf16.msra.mxu0 %v1753
        %1775 = vmatprep.subr.bf16.mxu0 0
        %1776 = vmatpush1.bf16.msra.mxu0 %v1754
        %1777 = vmatprep.subr.bf16.mxu0 0
        %1778 = vmatpush1.bf16.msra.mxu0 %v1755
        %1779 = vmatprep.subr.bf16.mxu0 0
        %1780 = vmatpush1.bf16.msra.mxu0 %v1756
        %1781 = vmatprep.subr.bf16.mxu0 0
        %1782 = vmatpush1.bf16.msra.mxu0 0
        %1783 = vmatprep.subr.bf16.mxu0 0
        %1784 = vmatpush1.bf16.msra.mxu0 0
        %1785 = vmatprep.subr.bf16.mxu0 0
        %1786 = vmatpush1.bf16.msra.mxu0 0
        %1787 = vmatprep.subr.bf16.mxu0 0
        %1788 = vmatpush1.bf16.msra.mxu0 0
        %1789 = vmatprep.subr.bf16.mxu0 0
        %1790 = vmatpush1.bf16.msra.mxu0 0
        %1791 = vmatprep.subr.bf16.mxu0 0
        %1792 = vmatpush1.bf16.msra.mxu0 0
        %1793 = vmatprep.subr.bf16.mxu0 0
        %1794 = vmatpush1.bf16.msra.mxu0 0
        %1795 = vmatprep.subr.bf16.mxu0 0
        %1796 = vmatpush1.bf16.msra.mxu0 0
        %1797 = vmatprep.mubr.bf16.mxu0 0
        %1798 = vmatmul.mubr.bf16.gmra.mrb[0].mxu0 %v1713
        %v1799 = vpop.f32.mrb[0].mxu0
        %v1800 = vadd.f32 0.0, %v1799
        %v1801 = vpop.f32.mrb[0].mxu0
        %v1802 = vpop.f32.mrb[0].mxu0
        %v1803 = vadd.f32 0.0, %v1802
        %v1804 = vpop.f32.mrb[0].mxu0
        %1805 = vmatprep.mubr.bf16.mxu0 0
        %1806 = vmatmul.mubr.bf16.gmra.mrb[0].mxu0 %v1714
        %v1807 = vpop.f32.mrb[0].mxu0
        %v1808 = vadd.f32 0.0, %v1807
        %v1809 = vpop.f32.mrb[0].mxu0
        %v1810 = vpop.f32.mrb[0].mxu0
        %v1811 = vadd.f32 0.0, %v1810
        %v1812 = vpop.f32.mrb[0].mxu0
        %1813 = vdwg.mxu0
        %v1814 = vadd.f32 %v1672, %v1800
        %v1815 = vadd.f32 %v1673, %v1803
        %v1816 = vadd.f32 %v1674, %v1808
        %v1817 = vadd.f32 %v1675, %v1811
        %1818 = vst [vmem:[%s451] sm:$0xff] %v1814
        %1819 = vst [vmem:[%s451 + $0x8] sm:$0xff] %v1815
        %1820 = vst [vmem:[%s451 + $0x10] sm:$0xff] %v1816
        %1821 = vst [vmem:[%s451 + $0x18] sm:$0xff] %v1817
        %v1822 = vadd.f32 %v1814, %v1815
        %v1823 = vadd.f32 %v1822, %v1816
        %v1824 = vadd.f32 %v1823, %v1817
        %v1825 = vrot.slane %v1824, 4
        %v1826 = vadd.f32 %v1824, %v1825
        %v1827 = vrot.slane %v1826, 2
        %v1828 = vadd.f32 %v1826, %v1827
        %v1829 = vrot.slane %v1828, 1
        %v1830 = vadd.f32 %v1828, %v1829
        %v1831 = vmul.f32 %v1814, %v1814
        %v1832 = vmul.f32 %v1815, %v1815
        %v1833 = vmul.f32 %v1816, %v1816
        %v1834 = vmul.f32 %v1817, %v1817
        %v1835 = vadd.f32 %v1831, %v1832
        %v1836 = vadd.f32 %v1835, %v1833
        %v1837 = vadd.f32 %v1836, %v1834
        %v1838 = vrot.slane %v1837, 4
        %v1839 = vadd.f32 %v1837, %v1838
        %v1840 = vrot.slane %v1839, 2
        %v1841 = vadd.f32 %v1839, %v1840
        %v1842 = vrot.slane %v1841, 1
        %v1843 = vadd.f32 %v1841, %v1842
        %vm1844 = vcmask 1040384
        %v1845 = vsel %vm1844, %v1830, %v1843
        %1846 = vst [vmem:[%s463] sm:$0x3] %v1845
        %s1847 = sand.u32 %s128, 1
        %s1848 = sand.u32 %s128, 1
        %s1849 = smul.addr %s1848, 32
        %s1850 = scalar_lea.vmem [#allocation5], %s1849
        %p1851 = scmp.lt.s32.totalorder %s17, 15
        %s1852 = scalar_select %p1851, %s17, 15
        %s1853 = smul.addr %s1852, 2
        %s1854 = scalar_lea.vmem %s5, %s1853
        // Predicated region
        $region160: #{basic_block_forward.5} parent=146 // pred_check
          %p1855 = pneg %p138
        $region161: #{basic_block_forward.5} parent=146 // pred_check_branch
          %1857 = sbr.rel (%p1855) target = $region163
        $region162: #{basic_block_forward.5} parent=146 // pred_region
          %s1858 = smul.addr %s17, 2
          %s1859 = smul.addr %s1858, 8
          %s1860 = scalar_lea.vmem %s4, %s1859
          // Predicated region
          $region164: #{basic_block_forward.5} parent=162 // pred_check
            _
          $region165: #{basic_block_forward.5} parent=162 // pred_check_branch
            %1862 = sbr.rel (0) target = $region167
          $region166: #{basic_block_forward.5} parent=162 // pred_region
            // Predicated region
            $region168: #{basic_block_forward.5} parent=166 // pred_check
              _
            $region169: #{basic_block_forward.5} parent=166 // pred_check_branch
              %1864 = sbr.rel (0) target = $region171
            $region170: #{basic_block_forward.5} parent=166 // pred_region
              // Predicated region
              $region183: #{basic_block_forward.5} parent=170 // pred_check
                _
              $region184: #{basic_block_forward.5} parent=170 // pred_check_branch
                %1885 = sbr.rel (0) target = $region186
              $region185: #{basic_block_forward.5} parent=170 // pred_region
                loop: start=0, step=1, limit=1
                $region187: #{basic_block_forward.5} parent=185 // loop_pre_header
                  _
                $region188: #{basic_block_forward.5} parent=185 // loop_header
                  %s1887 = sphi 0, %s1891
                  %p1888 = scmp.ge.s32.totalorder %s1887, 1
                  %s1892 = sphi %s1850, %s1850
                  %s1893 = sphi %s1860, %s1860
                $region189: #{basic_block_forward.5} parent=185 // loop_header_branch
                  %1890 = sbr.rel (%p1888) target = $region193
                $region190: #{basic_block_forward.5} parent=185 // loop_body
                  %v1894 = vld [vmem:[%s1892] sm:$0xff]
                  %1895 = vst [vmem:[%s1893] sm:$0xff] %v1894
                  %v1896 = vld [vmem:[%s1892 + $0x8] sm:$0xff]
                  %1897 = vst [vmem:[%s1893 + $0x8] sm:$0xff] %v1896
                  %v1898 = vld [vmem:[%s1892 + $0x10] sm:$0xff]
                  %1899 = vst [vmem:[%s1893 + $0x100] sm:$0xff] %v1898
                  %v1900 = vld [vmem:[%s1892 + $0x18] sm:$0xff]
                  %1901 = vst [vmem:[%s1893 + $0x108] sm:$0xff] %v1900
                $region191: #{basic_block_forward.5} parent=185 // loop_footer
                  %s1891 = sadd.s32 1, %s1887
                $region192: #{basic_block_forward.5} parent=185 // loop_footer_branch
                  %1886 = sbr.rel target = $region188
                $region193: #{basic_block_forward.5} parent=185 // loop_exit
                  _
              $region186: #{basic_block_forward.5} parent=170 // pred_fallthru
                _
              // Predicated region
              $region194: #{basic_block_forward.5} parent=170 // pred_check
                _
              $region195: #{basic_block_forward.5} parent=170 // pred_check_branch
                %1903 = sbr.rel target = $region197
              $region196: #{basic_block_forward.5} parent=170 // pred_region
                _
              $region197: #{basic_block_forward.5} parent=170 // pred_fallthru
                _
            $region171: #{basic_block_forward.5} parent=166 // pred_fallthru
              _
            // Predicated region
            $region172: #{basic_block_forward.5} parent=166 // pred_check
              _
            $region173: #{basic_block_forward.5} parent=166 // pred_check_branch
              %1866 = sbr.rel target = $region175
            $region174: #{basic_block_forward.5} parent=166 // pred_region
              loop: start=0, step=1, limit=1
              $region176: #{basic_block_forward.5} parent=174 // loop_pre_header
                _
              $region177: #{basic_block_forward.5} parent=174 // loop_header
                %s1869 = sphi 0, %s1873
                %p1870 = scmp.ge.s32.totalorder %s1869, 1
                %s1874 = sphi %s1850, %s1850
                %s1875 = sphi %s1860, %s1860
              $region178: #{basic_block_forward.5} parent=174 // loop_header_branch
                %1872 = sbr.rel (%p1870) target = $region182
              $region179: #{basic_block_forward.5} parent=174 // loop_body
                %v1876 = vld [vmem:[%s1874] sm:$0xff]
                %1877 = vst [vmem:[%s1875] sm:$0xff] %v1876
                %v1878 = vld [vmem:[%s1874 + $0x8] sm:$0xff]
                %1879 = vst [vmem:[%s1875 + $0x8] sm:$0xff] %v1878
                %v1880 = vld [vmem:[%s1874 + $0x10] sm:$0xff]
                %1881 = vst [vmem:[%s1875 + $0x100] sm:$0xff] %v1880
                %v1882 = vld [vmem:[%s1874 + $0x18] sm:$0xff]
                %1883 = vst [vmem:[%s1875 + $0x108] sm:$0xff] %v1882
              $region180: #{basic_block_forward.5} parent=174 // loop_footer
                %s1873 = sadd.s32 1, %s1869
              $region181: #{basic_block_forward.5} parent=174 // loop_footer_branch
                %1868 = sbr.rel target = $region177
              $region182: #{basic_block_forward.5} parent=174 // loop_exit
                _
            $region175: #{basic_block_forward.5} parent=166 // pred_fallthru
              _
          $region167: #{basic_block_forward.5} parent=162 // pred_fallthru
            _
          %1904 = vnop
        $region163: #{basic_block_forward.5} parent=146 // pred_fallthru
          _
        // Predicated region
        $region198: #{basic_block_forward.5} parent=146 // pred_check
          %p1905 = pneg %p164
        $region199: #{basic_block_forward.5} parent=146 // pred_check_branch
          %1907 = sbr.rel (%p1905) target = $region201
        $region200: #{basic_block_forward.5} parent=146 // pred_region
          _
        $region201: #{basic_block_forward.5} parent=146 // pred_fallthru
          _
      $region147: #{basic_block_forward.5} parent=5 // pred_fallthru
        _
      %p1908 = scmp.le.s32.totalorder 2, %s12
      // Predicated region
      $region202: #{basic_block_forward.5} parent=5 // pred_check
        %p1909 = pneg %p1908
      $region203: #{basic_block_forward.5} parent=5 // pred_check_branch
        %1911 = sbr.rel (%p1909) target = $region205
      $region204: #{basic_block_forward.5} parent=5 // pred_region
        %s1912 = ssub.s32 %s12, 2
        // Predicated region
        $region206: #{basic_block_forward.5} parent=204 // pred_check
          %p1913 = pneg %p144
        $region207: #{basic_block_forward.5} parent=204 // pred_check_branch
          %1915 = sbr.rel (%p1913) target = $region209
        $region208: #{basic_block_forward.5} parent=204 // pred_region
          %s1916 = sand.u32 %s129, 1
          %s1917 = sand.u32 %s129, 1
          %s1918 = smul.addr %s1917, 32
          %s1919 = scalar_lea.vmem [#allocation5], %s1918
        $region209: #{basic_block_forward.5} parent=204 // pred_fallthru
          _
        // Predicated region
        $region210: #{basic_block_forward.5} parent=204 // pred_check
          %p1920 = pneg %p170
        $region211: #{basic_block_forward.5} parent=204 // pred_check_branch
          %1922 = sbr.rel (%p1920) target = $region213
        $region212: #{basic_block_forward.5} parent=204 // pred_region
          %p1923 = scmp.lt.s32.totalorder %s18, 15
          %s1924 = scalar_select %p1923, %s18, 15
          %s1925 = smul.addr %s1924, 2
          %s1926 = scalar_lea.vmem %s5, %s1925
        $region213: #{basic_block_forward.5} parent=204 // pred_fallthru
          _
      $region205: #{basic_block_forward.5} parent=5 // pred_fallthru
        _
    $region6: #{basic_block_forward.5} parent=1 // loop_footer
      %s16 = sadd.s32 1, %s12
    $region7: #{basic_block_forward.5} parent=1 // loop_footer_branch
      %11 = sbr.rel target = $region3
    $region8: #{basic_block_forward.5} parent=1 // loop_exit
      _

// kernel: basic_block_forward.8
$region0: #{basic_block_forward.8}
  #allocation0 [shape = 'u32[]', space=smem, size = 0x4, offset = 0x4, fixed_abs, tag = 'smem constant byte address 0x4 - core index']
  #allocation1 [shape = 'u32[144,128]{1,0:T(1,128)}', space=vmem, size = 0x12000, scoped, tag = 'internal scratch']
  %s0 = inlined_call_operand.vmem [shape: bf16[512,128], index: 0, kind: input, shape index: {}]
  %s1 = inlined_call_operand.vmem [shape: bf16[128,128], index: 1, kind: input, shape index: {}]
  %s2 = inlined_call_operand.vmem [shape: f32[512,128], index: 2, kind: output, shape index: {0}]
  %s3 = inlined_call_operand.vmem [shape: f32[1,2,128], index: 3, kind: output, shape index: {1}]
  %4 = xla_tuple %s2, %s3
  %s5 = sld [smem:[#allocation0]]
  $region26: #{basic_block_forward.8} parent=0
    _
  %s7 = ssub.s32 1, %s5
  %s8 = scalar_select 0, %s7, %s5
  // Predicated region
  $region2: #{basic_block_forward.8} parent=0 // pred_check
    _
  $region3: #{basic_block_forward.8} parent=0 // pred_check_branch
    %10 = sbr.rel (0) target = $region5
  $region4: #{basic_block_forward.8} parent=0 // pred_region
    _
  $region5: #{basic_block_forward.8} parent=0 // pred_fallthru
    _
  // Predicated region
  $region6: #{basic_block_forward.8} parent=0 // pred_check
    _
  $region7: #{basic_block_forward.8} parent=0 // pred_check_branch
    %12 = sbr.rel (0) target = $region9
  $region8: #{basic_block_forward.8} parent=0 // pred_region
    _
  $region9: #{basic_block_forward.8} parent=0 // pred_fallthru
    _
  %v14 = vld [vmem:[%s0] sm:$0xf]
  %v15 = vld [vmem:[%s0 + $0x4] sm:$0xf]
  %v16 = vld [vmem:[%s0 + $0x8] sm:$0xf]
  %v17 = vld [vmem:[%s0 + $0xc] sm:$0xf]
  %v18 = vld [vmem:[%s0 + $0x10] sm:$0xf]
  %v19 = vld [vmem:[%s0 + $0x14] sm:$0xf]
  %v20 = vld [vmem:[%s0 + $0x18] sm:$0xf]
  %v21 = vld [vmem:[%s0 + $0x1c] sm:$0xf]
  %v22 = vld [vmem:[%s0 + $0x20] sm:$0xf]
  %v23 = vld [vmem:[%s0 + $0x24] sm:$0xf]
  %v24 = vld [vmem:[%s0 + $0x28] sm:$0xf]
  %v25 = vld [vmem:[%s0 + $0x2c] sm:$0xf]
  %v26 = vld [vmem:[%s0 + $0x30] sm:$0xf]
  %v27 = vld [vmem:[%s0 + $0x34] sm:$0xf]
  %v28 = vld [vmem:[%s0 + $0x38] sm:$0xf]
  %v29 = vld [vmem:[%s0 + $0x3c] sm:$0xf]
  %v30 = vld [vmem:[%s0 + $0x40] sm:$0xf]
  %v31 = vld [vmem:[%s0 + $0x44] sm:$0xf]
  %v32 = vld [vmem:[%s0 + $0x48] sm:$0xf]
  %v33 = vld [vmem:[%s0 + $0x4c] sm:$0xf]
  %v34 = vld [vmem:[%s0 + $0x50] sm:$0xf]
  %v35 = vld [vmem:[%s0 + $0x54] sm:$0xf]
  %v36 = vld [vmem:[%s0 + $0x58] sm:$0xf]
  %v37 = vld [vmem:[%s0 + $0x5c] sm:$0xf]
  %v38 = vld [vmem:[%s0 + $0x60] sm:$0xf]
  %v39 = vld [vmem:[%s0 + $0x64] sm:$0xf]
  %v40 = vld [vmem:[%s0 + $0x68] sm:$0xf]
  %v41 = vld [vmem:[%s0 + $0x6c] sm:$0xf]
  %v42 = vld [vmem:[%s0 + $0x70] sm:$0xf]
  %v43 = vld [vmem:[%s0 + $0x74] sm:$0xf]
  %v44 = vld [vmem:[%s0 + $0x78] sm:$0xf]
  %v45 = vld [vmem:[%s0 + $0x7c] sm:$0xf]
  %v46 = vld [vmem:[%s0 + $0x80] sm:$0xf]
  %v47 = vld [vmem:[%s0 + $0x84] sm:$0xf]
  %v48 = vld [vmem:[%s0 + $0x88] sm:$0xf]
  %v49 = vld [vmem:[%s0 + $0x8c] sm:$0xf]
  %v50 = vld [vmem:[%s0 + $0x90] sm:$0xf]
  %v51 = vld [vmem:[%s0 + $0x94] sm:$0xf]
  %v52 = vld [vmem:[%s0 + $0x98] sm:$0xf]
  %v53 = vld [vmem:[%s0 + $0x9c] sm:$0xf]
  %v54 = vld [vmem:[%s0 + $0xa0] sm:$0xf]
  %v55 = vld [vmem:[%s0 + $0xa4] sm:$0xf]
  %v56 = vld [vmem:[%s0 + $0xa8] sm:$0xf]
  %v57 = vld [vmem:[%s0 + $0xac] sm:$0xf]
  %v58 = vld [vmem:[%s0 + $0xb0] sm:$0xf]
  %v59 = vld [vmem:[%s0 + $0xb4] sm:$0xf]
  %v60 = vld [vmem:[%s0 + $0xb8] sm:$0xf]
  %v61 = vld [vmem:[%s0 + $0xbc] sm:$0xf]
  %v62 = vld [vmem:[%s0 + $0xc0] sm:$0xf]
  %v63 = vld [vmem:[%s0 + $0xc4] sm:$0xf]
  %v64 = vld [vmem:[%s0 + $0xc8] sm:$0xf]
  %v65 = vld [vmem:[%s0 + $0xcc] sm:$0xf]
  %v66 = vld [vmem:[%s0 + $0xd0] sm:$0xf]
  %v67 = vld [vmem:[%s0 + $0xd4] sm:$0xf]
  %v68 = vld [vmem:[%s0 + $0xd8] sm:$0xf]
  %v69 = vld [vmem:[%s0 + $0xdc] sm:$0xf]
  %v70 = vld [vmem:[%s0 + $0xe0] sm:$0xf]
  %v71 = vld [vmem:[%s0 + $0xe4] sm:$0xf]
  %v72 = vld [vmem:[%s0 + $0xe8] sm:$0xf]
  %v73 = vld [vmem:[%s0 + $0xec] sm:$0xf]
  %v74 = vld [vmem:[%s0 + $0xf0] sm:$0xf]
  %v75 = vld [vmem:[%s0 + $0xf4] sm:$0xf]
  %v76 = vld [vmem:[%s0 + $0xf8] sm:$0xf]
  %v77 = vld [vmem:[%s0 + $0xfc] sm:$0xf]
  %v78 = vld [vmem:[%s1] sm:$0xf]
  %v79 = vld [vmem:[%s1 + $0x4] sm:$0xf]
  %v80 = vld [vmem:[%s1 + $0x8] sm:$0xf]
  %v81 = vld [vmem:[%s1 + $0xc] sm:$0xf]
  %v82 = vld [vmem:[%s1 + $0x10] sm:$0xf]
  %v83 = vld [vmem:[%s1 + $0x14] sm:$0xf]
  %v84 = vld [vmem:[%s1 + $0x18] sm:$0xf]
  %v85 = vld [vmem:[%s1 + $0x1c] sm:$0xf]
  %v86 = vld [vmem:[%s1 + $0x20] sm:$0xf]
  %v87 = vld [vmem:[%s1 + $0x24] sm:$0xf]
  %v88 = vld [vmem:[%s1 + $0x28] sm:$0xf]
  %v89 = vld [vmem:[%s1 + $0x2c] sm:$0xf]
  %v90 = vld [vmem:[%s1 + $0x30] sm:$0xf]
  %v91 = vld [vmem:[%s1 + $0x34] sm:$0xf]
  %v92 = vld [vmem:[%s1 + $0x38] sm:$0xf]
  %v93 = vld [vmem:[%s1 + $0x3c] sm:$0xf]
  %v158 = vunpack.c.l.b16 %v14
  %v159 = vunpack.c.l.b16 %v15
  %v160 = vunpack.c.l.b16 %v16
  %v161 = vunpack.c.l.b16 %v17
  %v162 = vunpack.c.l.b16 %v18
  %v163 = vunpack.c.l.b16 %v19
  %v164 = vunpack.c.l.b16 %v20
  %v165 = vunpack.c.l.b16 %v21
  %v166 = vunpack.c.l.b16 %v22
  %v167 = vunpack.c.l.b16 %v23
  %v168 = vunpack.c.l.b16 %v24
  %v169 = vunpack.c.l.b16 %v25
  %v170 = vunpack.c.l.b16 %v26
  %v171 = vunpack.c.l.b16 %v27
  %v172 = vunpack.c.l.b16 %v28
  %v173 = vunpack.c.l.b16 %v29
  %v174 = vunpack.c.l.b16 %v30
  %v175 = vunpack.c.l.b16 %v31
  %v176 = vunpack.c.l.b16 %v32
  %v177 = vunpack.c.l.b16 %v33
  %v178 = vunpack.c.l.b16 %v34
  %v179 = vunpack.c.l.b16 %v35
  %v180 = vunpack.c.l.b16 %v36
  %v181 = vunpack.c.l.b16 %v37
  %v182 = vunpack.c.l.b16 %v38
  %v183 = vunpack.c.l.b16 %v39
  %v184 = vunpack.c.l.b16 %v40
  %v185 = vunpack.c.l.b16 %v41
  %v186 = vunpack.c.l.b16 %v42
  %v187 = vunpack.c.l.b16 %v43
  %v188 = vunpack.c.l.b16 %v44
  %v189 = vunpack.c.l.b16 %v45
  %v190 = vunpack.c.l.b16 %v46
  %v191 = vunpack.c.l.b16 %v47
  %v192 = vunpack.c.l.b16 %v48
  %v193 = vunpack.c.l.b16 %v49
  %v194 = vunpack.c.l.b16 %v50
  %v195 = vunpack.c.l.b16 %v51
  %v196 = vunpack.c.l.b16 %v52
  %v197 = vunpack.c.l.b16 %v53
  %v198 = vunpack.c.l.b16 %v54
  %v199 = vunpack.c.l.b16 %v55
  %v200 = vunpack.c.l.b16 %v56
  %v201 = vunpack.c.l.b16 %v57
  %v202 = vunpack.c.l.b16 %v58
  %v203 = vunpack.c.l.b16 %v59
  %v204 = vunpack.c.l.b16 %v60
  %v205 = vunpack.c.l.b16 %v61
  %v206 = vunpack.c.l.b16 %v62
  %v207 = vunpack.c.l.b16 %v63
  %v208 = vunpack.c.l.b16 %v64
  %v209 = vunpack.c.l.b16 %v65
  %v210 = vunpack.c.l.b16 %v66
  %v211 = vunpack.c.l.b16 %v67
  %v212 = vunpack.c.l.b16 %v68
  %v213 = vunpack.c.l.b16 %v69
  %v214 = vunpack.c.l.b16 %v70
  %v215 = vunpack.c.l.b16 %v71
  %v216 = vunpack.c.l.b16 %v72
  %v217 = vunpack.c.l.b16 %v73
  %v218 = vunpack.c.l.b16 %v74
  %v219 = vunpack.c.l.b16 %v75
  %v220 = vunpack.c.l.b16 %v76
  %v221 = vunpack.c.l.b16 %v77
  %v222 = vpack.c.b16 %v159, %v158
  %v223 = vpack.c.b16 %v161, %v160
  %v224 = vpack.c.b16 %v163, %v162
  %v225 = vpack.c.b16 %v165, %v164
  %v226 = vpack.c.b16 %v167, %v166
  %v227 = vpack.c.b16 %v169, %v168
  %v228 = vpack.c.b16 %v171, %v170
  %v229 = vpack.c.b16 %v173, %v172
  %v230 = vpack.c.b16 %v175, %v174
  %v231 = vpack.c.b16 %v177, %v176
  %v232 = vpack.c.b16 %v179, %v178
  %v233 = vpack.c.b16 %v181, %v180
  %v234 = vpack.c.b16 %v183, %v182
  %v235 = vpack.c.b16 %v185, %v184
  %v236 = vpack.c.b16 %v187, %v186
  %v237 = vpack.c.b16 %v189, %v188
  %v238 = vpack.c.b16 %v191, %v190
  %v239 = vpack.c.b16 %v193, %v192
  %v240 = vpack.c.b16 %v195, %v194
  %v241 = vpack.c.b16 %v197, %v196
  %v242 = vpack.c.b16 %v199, %v198
  %v243 = vpack.c.b16 %v201, %v200
  %v244 = vpack.c.b16 %v203, %v202
  %v245 = vpack.c.b16 %v205, %v204
  %v246 = vpack.c.b16 %v207, %v206
  %v247 = vpack.c.b16 %v209, %v208
  %v248 = vpack.c.b16 %v211, %v210
  %v249 = vpack.c.b16 %v213, %v212
  %v250 = vpack.c.b16 %v215, %v214
  %v251 = vpack.c.b16 %v217, %v216
  %v252 = vpack.c.b16 %v219, %v218
  %v253 = vpack.c.b16 %v221, %v220
  %v302 = vunpack.c.l.b16 %v78
  %v303 = vunpack.c.l.b16 %v79
  %v304 = vunpack.c.l.b16 %v80
  %v305 = vunpack.c.l.b16 %v81
  %v306 = vunpack.c.l.b16 %v82
  %v307 = vunpack.c.l.b16 %v83
  %v308 = vunpack.c.l.b16 %v84
  %v309 = vunpack.c.l.b16 %v85
  %v310 = vunpack.c.l.b16 %v86
  %v311 = vunpack.c.l.b16 %v87
  %v312 = vunpack.c.l.b16 %v88
  %v313 = vunpack.c.l.b16 %v89
  %v314 = vunpack.c.l.b16 %v90
  %v315 = vunpack.c.l.b16 %v91
  %v316 = vunpack.c.l.b16 %v92
  %v317 = vunpack.c.l.b16 %v93
  %v318 = vpack.c.b16 %v303, %v302
  %v319 = vpack.c.b16 %v305, %v304
  %v320 = vpack.c.b16 %v307, %v306
  %v321 = vpack.c.b16 %v309, %v308
  %v322 = vpack.c.b16 %v311, %v310
  %v323 = vpack.c.b16 %v313, %v312
  %v324 = vpack.c.b16 %v315, %v314
  %v325 = vpack.c.b16 %v317, %v316
  %334 = vmatprep.subr.bf16.mxu0 0
  %335 = vmatpush1.bf16.msra.mxu0 %v318
  %336 = vmatprep.subr.bf16.mxu0 0
  %337 = vmatpush1.bf16.msra.mxu0 %v319
  %338 = vmatprep.subr.bf16.mxu0 0
  %339 = vmatpush1.bf16.msra.mxu0 %v320
  %340 = vmatprep.subr.bf16.mxu0 0
  %341 = vmatpush1.bf16.msra.mxu0 %v321
  %342 = vmatprep.subr.bf16.mxu0 0
  %343 = vmatpush1.bf16.msra.mxu0 %v322
  %344 = vmatprep.subr.bf16.mxu0 0
  %345 = vmatpush1.bf16.msra.mxu0 %v323
  %346 = vmatprep.subr.bf16.mxu0 0
  %347 = vmatpush1.bf16.msra.mxu0 %v324
  %348 = vmatprep.subr.bf16.mxu0 0
  %349 = vmatpush1.bf16.msra.mxu0 %v325
  %350 = vmatprep.subr.bf16.mxu0 0
  %351 = vmatpush1.bf16.msra.mxu0 0
  %352 = vmatprep.subr.bf16.mxu0 0
  %353 = vmatpush1.bf16.msra.mxu0 0
  %354 = vmatprep.subr.bf16.mxu0 0
  %355 = vmatpush1.bf16.msra.mxu0 0
  %356 = vmatprep.subr.bf16.mxu0 0
  %357 = vmatpush1.bf16.msra.mxu0 0
  %358 = vmatprep.subr.bf16.mxu0 0
  %359 = vmatpush1.bf16.msra.mxu0 0
  %360 = vmatprep.subr.bf16.mxu0 0
  %361 = vmatpush1.bf16.msra.mxu0 0
  %362 = vmatprep.subr.bf16.mxu0 0
  %363 = vmatpush1.bf16.msra.mxu0 0
  %364 = vmatprep.subr.bf16.mxu0 0
  %365 = vmatpush1.bf16.msra.mxu0 0
  %366 = vmatprep.mubr.bf16.mxu0 0
  %367 = vmatmul.mubr.bf16.gmra.mrb[0].mxu0 %v222
  %v368 = vpop.f32.mrb[0].mxu0
  %v369 = vadd.f32 0.0, %v368
  %v370 = vpop.f32.mrb[0].mxu0
  %v371 = vpop.f32.mrb[0].mxu0
  %v372 = vadd.f32 0.0, %v371
  %v373 = vpop.f32.mrb[0].mxu0
  %374 = vmatprep.mubr.bf16.mxu0 0
  %375 = vmatmul.mubr.bf16.gmra.mrb[0].mxu0 %v223
  %v376 = vpop.f32.mrb[0].mxu0
  %v377 = vadd.f32 0.0, %v376
  %v378 = vpop.f32.mrb[0].mxu0
  %v379 = vpop.f32.mrb[0].mxu0
  %v380 = vadd.f32 0.0, %v379
  %v381 = vpop.f32.mrb[0].mxu0
  %382 = vmatprep.mubr.bf16.mxu0 0
  %383 = vmatmul.mubr.bf16.gmra.mrb[0].mxu0 %v224
  %v384 = vpop.f32.mrb[0].mxu0
  %v385 = vadd.f32 0.0, %v384
  %v386 = vpop.f32.mrb[0].mxu0
  %v387 = vpop.f32.mrb[0].mxu0
  %v388 = vadd.f32 0.0, %v387
  %v389 = vpop.f32.mrb[0].mxu0
  %390 = vmatprep.mubr.bf16.mxu0 0
  %391 = vmatmul.mubr.bf16.gmra.mrb[0].mxu0 %v225
  %v392 = vpop.f32.mrb[0].mxu0
  %v393 = vadd.f32 0.0, %v392
  %v394 = vpop.f32.mrb[0].mxu0
  %v395 = vpop.f32.mrb[0].mxu0
  %v396 = vadd.f32 0.0, %v395
  %v397 = vpop.f32.mrb[0].mxu0
  %398 = vmatprep.mubr.bf16.mxu0 0
  %399 = vmatmul.mubr.bf16.gmra.mrb[0].mxu0 %v226
  %v400 = vpop.f32.mrb[0].mxu0
  %v401 = vadd.f32 0.0, %v400
  %v402 = vpop.f32.mrb[0].mxu0
  %v403 = vpop.f32.mrb[0].mxu0
  %v404 = vadd.f32 0.0, %v403
  %v405 = vpop.f32.mrb[0].mxu0
  %406 = vmatprep.mubr.bf16.mxu0 0
  %407 = vmatmul.mubr.bf16.gmra.mrb[0].mxu0 %v227
  %v408 = vpop.f32.mrb[0].mxu0
  %v409 = vadd.f32 0.0, %v408
  %v410 = vpop.f32.mrb[0].mxu0
  %v411 = vpop.f32.mrb[0].mxu0
  %v412 = vadd.f32 0.0, %v411
  %v413 = vpop.f32.mrb[0].mxu0
  %414 = vmatprep.mubr.bf16.mxu0 0
  %415 = vmatmul.mubr.bf16.gmra.mrb[0].mxu0 %v228
  %v416 = vpop.f32.mrb[0].mxu0
  %v417 = vadd.f32 0.0, %v416
  %v418 = vpop.f32.mrb[0].mxu0
  %v419 = vpop.f32.mrb[0].mxu0
  %v420 = vadd.f32 0.0, %v419
  %v421 = vpop.f32.mrb[0].mxu0
  %422 = vmatprep.mubr.bf16.mxu0 0
  %423 = vmatmul.mubr.bf16.gmra.mrb[0].mxu0 %v229
  %v424 = vpop.f32.mrb[0].mxu0
  %v425 = vadd.f32 0.0, %v424
  %v426 = vpop.f32.mrb[0].mxu0
  %v427 = vpop.f32.mrb[0].mxu0
  %v428 = vadd.f32 0.0, %v427
  %v429 = vpop.f32.mrb[0].mxu0
  %430 = vmatprep.mubr.bf16.mxu0 0
  %431 = vmatmul.mubr.bf16.gmra.mrb[0].mxu0 %v230
  %v432 = vpop.f32.mrb[0].mxu0
  %v433 = vadd.f32 0.0, %v432
  %v434 = vpop.f32.mrb[0].mxu0
  %v435 = vpop.f32.mrb[0].mxu0
  %v436 = vadd.f32 0.0, %v435
  %v437 = vpop.f32.mrb[0].mxu0
  %438 = vmatprep.mubr.bf16.mxu0 0
  %439 = vmatmul.mubr.bf16.gmra.mrb[0].mxu0 %v231
  %v440 = vpop.f32.mrb[0].mxu0
  %v441 = vadd.f32 0.0, %v440
  %v442 = vpop.f32.mrb[0].mxu0
  %v443 = vpop.f32.mrb[0].mxu0
  %v444 = vadd.f32 0.0, %v443
  %v445 = vpop.f32.mrb[0].mxu0
  %446 = vmatprep.mubr.bf16.mxu0 0
  %447 = vmatmul.mubr.bf16.gmra.mrb[0].mxu0 %v232
  %v448 = vpop.f32.mrb[0].mxu0
  %v449 = vadd.f32 0.0, %v448
  %v450 = vpop.f32.mrb[0].mxu0
  %v451 = vpop.f32.mrb[0].mxu0
  %v452 = vadd.f32 0.0, %v451
  %v453 = vpop.f32.mrb[0].mxu0
  %454 = vmatprep.mubr.bf16.mxu0 0
  %455 = vmatmul.mubr.bf16.gmra.mrb[0].mxu0 %v233
  %v456 = vpop.f32.mrb[0].mxu0
  %v457 = vadd.f32 0.0, %v456
  %v458 = vpop.f32.mrb[0].mxu0
  %v459 = vpop.f32.mrb[0].mxu0
  %v460 = vadd.f32 0.0, %v459
  %v461 = vpop.f32.mrb[0].mxu0
  %462 = vmatprep.mubr.bf16.mxu0 0
  %463 = vmatmul.mubr.bf16.gmra.mrb[0].mxu0 %v234
  %v464 = vpop.f32.mrb[0].mxu0
  %v465 = vadd.f32 0.0, %v464
  %v466 = vpop.f32.mrb[0].mxu0
  %v467 = vpop.f32.mrb[0].mxu0
  %v468 = vadd.f32 0.0, %v467
  %v469 = vpop.f32.mrb[0].mxu0
  %470 = vmatprep.mubr.bf16.mxu0 0
  %471 = vmatmul.mubr.bf16.gmra.mrb[0].mxu0 %v235
  %v472 = vpop.f32.mrb[0].mxu0
  %v473 = vadd.f32 0.0, %v472
  %v474 = vpop.f32.mrb[0].mxu0
  %v475 = vpop.f32.mrb[0].mxu0
  %v476 = vadd.f32 0.0, %v475
  %v477 = vpop.f32.mrb[0].mxu0
  %478 = vmatprep.mubr.bf16.mxu0 0
  %479 = vmatmul.mubr.bf16.gmra.mrb[0].mxu0 %v236
  %v480 = vpop.f32.mrb[0].mxu0
  %v481 = vadd.f32 0.0, %v480
  %v482 = vpop.f32.mrb[0].mxu0
  %v483 = vpop.f32.mrb[0].mxu0
  %v484 = vadd.f32 0.0, %v483
  %v485 = vpop.f32.mrb[0].mxu0
  %486 = vmatprep.mubr.bf16.mxu0 0
  %487 = vmatmul.mubr.bf16.gmra.mrb[0].mxu0 %v237
  %v488 = vpop.f32.mrb[0].mxu0
  %v489 = vadd.f32 0.0, %v488
  %v490 = vpop.f32.mrb[0].mxu0
  %v491 = vpop.f32.mrb[0].mxu0
  %v492 = vadd.f32 0.0, %v491
  %v493 = vpop.f32.mrb[0].mxu0
  %494 = vmatprep.mubr.bf16.mxu0 0
  %495 = vmatmul.mubr.bf16.gmra.mrb[0].mxu0 %v238
  %v496 = vpop.f32.mrb[0].mxu0
  %v497 = vadd.f32 0.0, %v496
  %v498 = vpop.f32.mrb[0].mxu0
  %v499 = vpop.f32.mrb[0].mxu0
  %v500 = vadd.f32 0.0, %v499
  %v501 = vpop.f32.mrb[0].mxu0
  %502 = vmatprep.mubr.bf16.mxu0 0
  %503 = vmatmul.mubr.bf16.gmra.mrb[0].mxu0 %v239
  %v504 = vpop.f32.mrb[0].mxu0
  %v505 = vadd.f32 0.0, %v504
  %v506 = vpop.f32.mrb[0].mxu0
  %v507 = vpop.f32.mrb[0].mxu0
  %v508 = vadd.f32 0.0, %v507
  %v509 = vpop.f32.mrb[0].mxu0
  %510 = vmatprep.mubr.bf16.mxu0 0
  %511 = vmatmul.mubr.bf16.gmra.mrb[0].mxu0 %v240
  %v512 = vpop.f32.mrb[0].mxu0
  %v513 = vadd.f32 0.0, %v512
  %v514 = vpop.f32.mrb[0].mxu0
  %v515 = vpop.f32.mrb[0].mxu0
  %v516 = vadd.f32 0.0, %v515
  %v517 = vpop.f32.mrb[0].mxu0
  %518 = vmatprep.mubr.bf16.mxu0 0
  %519 = vmatmul.mubr.bf16.gmra.mrb[0].mxu0 %v241
  %v520 = vpop.f32.mrb[0].mxu0
  %v521 = vadd.f32 0.0, %v520
  %v522 = vpop.f32.mrb[0].mxu0
  %v523 = vpop.f32.mrb[0].mxu0
  %v524 = vadd.f32 0.0, %v523
  %v525 = vpop.f32.mrb[0].mxu0
  %526 = vmatprep.mubr.bf16.mxu0 0
  %527 = vmatmul.mubr.bf16.gmra.mrb[0].mxu0 %v242
  %v528 = vpop.f32.mrb[0].mxu0
  %v529 = vadd.f32 0.0, %v528
  %v530 = vpop.f32.mrb[0].mxu0
  %v531 = vpop.f32.mrb[0].mxu0
  %v532 = vadd.f32 0.0, %v531
  %v533 = vpop.f32.mrb[0].mxu0
  %534 = vmatprep.mubr.bf16.mxu0 0
  %535 = vmatmul.mubr.bf16.gmra.mrb[0].mxu0 %v243
  %v536 = vpop.f32.mrb[0].mxu0
  %v537 = vadd.f32 0.0, %v536
  %v538 = vpop.f32.mrb[0].mxu0
  %v539 = vpop.f32.mrb[0].mxu0
  %v540 = vadd.f32 0.0, %v539
  %v541 = vpop.f32.mrb[0].mxu0
  %542 = vmatprep.mubr.bf16.mxu0 0
  %543 = vmatmul.mubr.bf16.gmra.mrb[0].mxu0 %v244
  %v544 = vpop.f32.mrb[0].mxu0
  %v545 = vadd.f32 0.0, %v544
  %v546 = vpop.f32.mrb[0].mxu0
  %v547 = vpop.f32.mrb[0].mxu0
  %v548 = vadd.f32 0.0, %v547
  %v549 = vpop.f32.mrb[0].mxu0
  %550 = vmatprep.mubr.bf16.mxu0 0
  %551 = vmatmul.mubr.bf16.gmra.mrb[0].mxu0 %v245
  %v552 = vpop.f32.mrb[0].mxu0
  %v553 = vadd.f32 0.0, %v552
  %v554 = vpop.f32.mrb[0].mxu0
  %v555 = vpop.f32.mrb[0].mxu0
  %v556 = vadd.f32 0.0, %v555
  %v557 = vpop.f32.mrb[0].mxu0
  %558 = vmatprep.mubr.bf16.mxu0 0
  %559 = vmatmul.mubr.bf16.gmra.mrb[0].mxu0 %v246
  %v560 = vpop.f32.mrb[0].mxu0
  %v561 = vadd.f32 0.0, %v560
  %v562 = vpop.f32.mrb[0].mxu0
  %v563 = vpop.f32.mrb[0].mxu0
  %v564 = vadd.f32 0.0, %v563
  %v565 = vpop.f32.mrb[0].mxu0
  %566 = vmatprep.mubr.bf16.mxu0 0
  %567 = vmatmul.mubr.bf16.gmra.mrb[0].mxu0 %v247
  %v568 = vpop.f32.mrb[0].mxu0
  %v569 = vadd.f32 0.0, %v568
  %v570 = vpop.f32.mrb[0].mxu0
  %v571 = vpop.f32.mrb[0].mxu0
  %v572 = vadd.f32 0.0, %v571
  %v573 = vpop.f32.mrb[0].mxu0
  %574 = vmatprep.mubr.bf16.mxu0 0
  %575 = vmatmul.mubr.bf16.gmra.mrb[0].mxu0 %v248
  %v576 = vpop.f32.mrb[0].mxu0
  %v577 = vadd.f32 0.0, %v576
  %v578 = vpop.f32.mrb[0].mxu0
  %v579 = vpop.f32.mrb[0].mxu0
  %v580 = vadd.f32 0.0, %v579
  %v581 = vpop.f32.mrb[0].mxu0
  %582 = vmatprep.mubr.bf16.mxu0 0
  %583 = vmatmul.mubr.bf16.gmra.mrb[0].mxu0 %v249
  %v584 = vpop.f32.mrb[0].mxu0
  %v585 = vadd.f32 0.0, %v584
  %v586 = vpop.f32.mrb[0].mxu0
  %v587 = vpop.f32.mrb[0].mxu0
  %v588 = vadd.f32 0.0, %v587
  %v589 = vpop.f32.mrb[0].mxu0
  %590 = vmatprep.mubr.bf16.mxu0 0
  %591 = vmatmul.mubr.bf16.gmra.mrb[0].mxu0 %v250
  %v592 = vpop.f32.mrb[0].mxu0
  %v593 = vadd.f32 0.0, %v592
  %v594 = vpop.f32.mrb[0].mxu0
  %v595 = vpop.f32.mrb[0].mxu0
  %v596 = vadd.f32 0.0, %v595
  %v597 = vpop.f32.mrb[0].mxu0
  %598 = vmatprep.mubr.bf16.mxu0 0
  %599 = vmatmul.mubr.bf16.gmra.mrb[0].mxu0 %v251
  %v600 = vpop.f32.mrb[0].mxu0
  %v601 = vadd.f32 0.0, %v600
  %v602 = vpop.f32.mrb[0].mxu0
  %v603 = vpop.f32.mrb[0].mxu0
  %v604 = vadd.f32 0.0, %v603
  %v605 = vpop.f32.mrb[0].mxu0
  %606 = vmatprep.mubr.bf16.mxu0 0
  %607 = vmatmul.mubr.bf16.gmra.mrb[0].mxu0 %v252
  %v608 = vpop.f32.mrb[0].mxu0
  %v609 = vadd.f32 0.0, %v608
  %v610 = vpop.f32.mrb[0].mxu0
  %v611 = vpop.f32.mrb[0].mxu0
  %v612 = vadd.f32 0.0, %v611
  %v613 = vpop.f32.mrb[0].mxu0
  %614 = vmatprep.mubr.bf16.mxu0 0
  %615 = vmatmul.mubr.bf16.gmra.mrb[0].mxu0 %v253
  %v616 = vpop.f32.mrb[0].mxu0
  %v617 = vadd.f32 0.0, %v616
  %v618 = vpop.f32.mrb[0].mxu0
  %v619 = vpop.f32.mrb[0].mxu0
  %v620 = vadd.f32 0.0, %v619
  %v621 = vpop.f32.mrb[0].mxu0
  %622 = vdwg.mxu0
  %623 = vst [vmem:[%s2] sm:$0xff] %v369
  %624 = vst [vmem:[%s2 + $0x8] sm:$0xff] %v372
  %625 = vst [vmem:[%s2 + $0x10] sm:$0xff] %v377
  %626 = vst [vmem:[%s2 + $0x18] sm:$0xff] %v380
  %627 = vst [vmem:[%s2 + $0x20] sm:$0xff] %v385
  %628 = vst [vmem:[%s2 + $0x28] sm:$0xff] %v388
  %629 = vst [vmem:[%s2 + $0x30] sm:$0xff] %v393
  %630 = vst [vmem:[%s2 + $0x38] sm:$0xff] %v396
  %631 = vst [vmem:[%s2 + $0x40] sm:$0xff] %v401
  %632 = vst [vmem:[%s2 + $0x48] sm:$0xff] %v404
  %633 = vst [vmem:[%s2 + $0x50] sm:$0xff] %v409
  %634 = vst [vmem:[%s2 + $0x58] sm:$0xff] %v412
  %635 = vst [vmem:[%s2 + $0x60] sm:$0xff] %v417
  %636 = vst [vmem:[%s2 + $0x68] sm:$0xff] %v420
  %637 = vst [vmem:[%s2 + $0x70] sm:$0xff] %v425
  %638 = vst [vmem:[%s2 + $0x78] sm:$0xff] %v428
  %639 = vst [vmem:[%s2 + $0x80] sm:$0xff] %v433
  %640 = vst [vmem:[%s2 + $0x88] sm:$0xff] %v436
  %641 = vst [vmem:[%s2 + $0x90] sm:$0xff] %v441
  %642 = vst [vmem:[%s2 + $0x98] sm:$0xff] %v444
  %643 = vst [vmem:[%s2 + $0xa0] sm:$0xff] %v449
  %644 = vst [vmem:[%s2 + $0xa8] sm:$0xff] %v452
  %645 = vst [vmem:[%s2 + $0xb0] sm:$0xff] %v457
  %646 = vst [vmem:[%s2 + $0xb8] sm:$0xff] %v460
  %647 = vst [vmem:[%s2 + $0xc0] sm:$0xff] %v465
  %648 = vst [vmem:[%s2 + $0xc8] sm:$0xff] %v468
  %649 = vst [vmem:[%s2 + $0xd0] sm:$0xff] %v473
  %650 = vst [vmem:[%s2 + $0xd8] sm:$0xff] %v476
  %651 = vst [vmem:[%s2 + $0xe0] sm:$0xff] %v481
  %652 = vst [vmem:[%s2 + $0xe8] sm:$0xff] %v484
  %653 = vst [vmem:[%s2 + $0xf0] sm:$0xff] %v489
  %654 = vst [vmem:[%s2 + $0xf8] sm:$0xff] %v492
  %655 = vst [vmem:[%s2 + $0x100] sm:$0xff] %v497
  %656 = vst [vmem:[%s2 + $0x108] sm:$0xff] %v500
  %657 = vst [vmem:[%s2 + $0x110] sm:$0xff] %v505
  %658 = vst [vmem:[%s2 + $0x118] sm:$0xff] %v508
  %659 = vst [vmem:[%s2 + $0x120] sm:$0xff] %v513
  %660 = vst [vmem:[%s2 + $0x128] sm:$0xff] %v516
  %661 = vst [vmem:[%s2 + $0x130] sm:$0xff] %v521
  %662 = vst [vmem:[%s2 + $0x138] sm:$0xff] %v524
  %663 = vst [vmem:[%s2 + $0x140] sm:$0xff] %v529
  %664 = vst [vmem:[%s2 + $0x148] sm:$0xff] %v532
  %665 = vst [vmem:[%s2 + $0x150] sm:$0xff] %v537
  %666 = vst [vmem:[%s2 + $0x158] sm:$0xff] %v540
  %667 = vst [vmem:[%s2 + $0x160] sm:$0xff] %v545
  %668 = vst [vmem:[%s2 + $0x168] sm:$0xff] %v548
  %669 = vst [vmem:[%s2 + $0x170] sm:$0xff] %v553
  %670 = vst [vmem:[%s2 + $0x178] sm:$0xff] %v556
  %671 = vst [vmem:[%s2 + $0x180] sm:$0xff] %v561
  %672 = vst [vmem:[%s2 + $0x188] sm:$0xff] %v564
  %673 = vst [vmem:[%s2 + $0x190] sm:$0xff] %v569
  %674 = vst [vmem:[%s2 + $0x198] sm:$0xff] %v572
  %675 = vst [vmem:[%s2 + $0x1a0] sm:$0xff] %v577
  %676 = vst [vmem:[%s2 + $0x1a8] sm:$0xff] %v580
  %677 = vst [vmem:[%s2 + $0x1b0] sm:$0xff] %v585
  %678 = vst [vmem:[%s2 + $0x1b8] sm:$0xff] %v588
  %679 = vst [vmem:[%s2 + $0x1c0] sm:$0xff] %v593
  %680 = vst [vmem:[%s2 + $0x1c8] sm:$0xff] %v596
  %681 = vst [vmem:[%s2 + $0x1d0] sm:$0xff] %v601
  %682 = vst [vmem:[%s2 + $0x1d8] sm:$0xff] %v604
  %683 = vst [vmem:[%s2 + $0x1e0] sm:$0xff] %v609
  %684 = vst [vmem:[%s2 + $0x1e8] sm:$0xff] %v612
  %685 = vst [vmem:[%s2 + $0x1f0] sm:$0xff] %v617
  %686 = vst [vmem:[%s2 + $0x1f8] sm:$0xff] %v620
  %v687 = vadd.f32 %v369, %v372
  %v688 = vadd.f32 %v687, %v377
  %v689 = vadd.f32 %v688, %v380
  %v690 = vadd.f32 %v689, %v385
  %v691 = vadd.f32 %v690, %v388
  %v692 = vadd.f32 %v691, %v393
  %v693 = vadd.f32 %v692, %v396
  %v694 = vadd.f32 %v693, %v401
  %v695 = vadd.f32 %v694, %v404
  %v696 = vadd.f32 %v695, %v409
  %v697 = vadd.f32 %v696, %v412
  %v698 = vadd.f32 %v697, %v417
  %v699 = vadd.f32 %v698, %v420
  %v700 = vadd.f32 %v699, %v425
  %v701 = vadd.f32 %v700, %v428
  %v702 = vadd.f32 %v701, %v433
  %v703 = vadd.f32 %v702, %v436
  %v704 = vadd.f32 %v703, %v441
  %v705 = vadd.f32 %v704, %v444
  %v706 = vadd.f32 %v705, %v449
  %v707 = vadd.f32 %v706, %v452
  %v708 = vadd.f32 %v707, %v457
  %v709 = vadd.f32 %v708, %v460
  %v710 = vadd.f32 %v709, %v465
  %v711 = vadd.f32 %v710, %v468
  %v712 = vadd.f32 %v711, %v473
  %v713 = vadd.f32 %v712, %v476
  %v714 = vadd.f32 %v713, %v481
  %v715 = vadd.f32 %v714, %v484
  %v716 = vadd.f32 %v715, %v489
  %v717 = vadd.f32 %v716, %v492
  %v718 = vadd.f32 %v717, %v497
  %v719 = vadd.f32 %v718, %v500
  %v720 = vadd.f32 %v719, %v505
  %v721 = vadd.f32 %v720, %v508
  %v722 = vadd.f32 %v721, %v513
  %v723 = vadd.f32 %v722, %v516
  %v724 = vadd.f32 %v723, %v521
  %v725 = vadd.f32 %v724, %v524
  %v726 = vadd.f32 %v725, %v529
  %v727 = vadd.f32 %v726, %v532
  %v728 = vadd.f32 %v727, %v537
  %v729 = vadd.f32 %v728, %v540
  %v730 = vadd.f32 %v729, %v545
  %v731 = vadd.f32 %v730, %v548
  %v732 = vadd.f32 %v731, %v553
  %v733 = vadd.f32 %v732, %v556
  %v734 = vadd.f32 %v733, %v561
  %v735 = vadd.f32 %v734, %v564
  %v736 = vadd.f32 %v735, %v569
  %v737 = vadd.f32 %v736, %v572
  %v738 = vadd.f32 %v737, %v577
  %v739 = vadd.f32 %v738, %v580
  %v740 = vadd.f32 %v739, %v585
  %v741 = vadd.f32 %v740, %v588
  %v742 = vadd.f32 %v741, %v593
  %v743 = vadd.f32 %v742, %v596
  %v744 = vadd.f32 %v743, %v601
  %v745 = vadd.f32 %v744, %v604
  %v746 = vadd.f32 %v745, %v609
  %v747 = vadd.f32 %v746, %v612
  %v748 = vadd.f32 %v747, %v617
  %v749 = vadd.f32 %v748, %v620
  %v750 = vrot.slane %v749, 4
  %v751 = vadd.f32 %v749, %v750
  %v752 = vrot.slane %v751, 2
  %v753 = vadd.f32 %v751, %v752
  %v754 = vrot.slane %v753, 1
  %v755 = vadd.f32 %v753, %v754
  %v756 = vmul.f32 %v369, %v369
  %v757 = vmul.f32 %v372, %v372
  %v758 = vmul.f32 %v377, %v377
  %v759 = vmul.f32 %v380, %v380
  %v760 = vmul.f32 %v385, %v385
  %v761 = vmul.f32 %v388, %v388
  %v762 = vmul.f32 %v393, %v393
  %v763 = vmul.f32 %v396, %v396
  %v764 = vmul.f32 %v401, %v401
  %v765 = vmul.f32 %v404, %v404
  %v766 = vmul.f32 %v409, %v409
  %v767 = vmul.f32 %v412, %v412
  %v768 = vmul.f32 %v417, %v417
  %v769 = vmul.f32 %v420, %v420
  %v770 = vmul.f32 %v425, %v425
  %v771 = vmul.f32 %v428, %v428
  %v772 = vmul.f32 %v433, %v433
  %v773 = vmul.f32 %v436, %v436
  %v774 = vmul.f32 %v441, %v441
  %v775 = vmul.f32 %v444, %v444
  %v776 = vmul.f32 %v449, %v449
  %v777 = vmul.f32 %v452, %v452
  %v778 = vmul.f32 %v457, %v457
  %v779 = vmul.f32 %v460, %v460
  %v780 = vmul.f32 %v465, %v465
  %v781 = vmul.f32 %v468, %v468
  %v782 = vmul.f32 %v473, %v473
  %v783 = vmul.f32 %v476, %v476
  %v784 = vmul.f32 %v481, %v481
  %v785 = vmul.f32 %v484, %v484
  %v786 = vmul.f32 %v489, %v489
  %v787 = vmul.f32 %v492, %v492
  %v788 = vmul.f32 %v497, %v497
  %v789 = vmul.f32 %v500, %v500
  %v790 = vmul.f32 %v505, %v505
  %v791 = vmul.f32 %v508, %v508
  %v792 = vmul.f32 %v513, %v513
  %v793 = vmul.f32 %v516, %v516
  %v794 = vmul.f32 %v521, %v521
  %v795 = vmul.f32 %v524, %v524
  %v796 = vmul.f32 %v529, %v529
  %v797 = vmul.f32 %v532, %v532
  %v798 = vmul.f32 %v537, %v537
  %v799 = vmul.f32 %v540, %v540
  %v800 = vmul.f32 %v545, %v545
  %v801 = vmul.f32 %v548, %v548
  %v802 = vmul.f32 %v553, %v553
  %v803 = vmul.f32 %v556, %v556
  %v804 = vmul.f32 %v561, %v561
  %v805 = vmul.f32 %v564, %v564
  %v806 = vmul.f32 %v569, %v569
  %v807 = vmul.f32 %v572, %v572
  %v808 = vmul.f32 %v577, %v577
  %v809 = vmul.f32 %v580, %v580
  %v810 = vmul.f32 %v585, %v585
  %v811 = vmul.f32 %v588, %v588
  %v812 = vmul.f32 %v593, %v593
  %v813 = vmul.f32 %v596, %v596
  %v814 = vmul.f32 %v601, %v601
  %v815 = vmul.f32 %v604, %v604
  %v816 = vmul.f32 %v609, %v609
  %v817 = vmul.f32 %v612, %v612
  %v818 = vmul.f32 %v617, %v617
  %v819 = vmul.f32 %v620, %v620
  %v820 = vadd.f32 %v756, %v757
  %v821 = vadd.f32 %v820, %v758
  %v822 = vadd.f32 %v821, %v759
  %v823 = vadd.f32 %v822, %v760
  %v824 = vadd.f32 %v823, %v761
  %v825 = vadd.f32 %v824, %v762
  %v826 = vadd.f32 %v825, %v763
  %v827 = vadd.f32 %v826, %v764
  %v828 = vadd.f32 %v827, %v765
  %v829 = vadd.f32 %v828, %v766
  %v830 = vadd.f32 %v829, %v767
  %v831 = vadd.f32 %v830, %v768
  %v832 = vadd.f32 %v831, %v769
  %v833 = vadd.f32 %v832, %v770
  %v834 = vadd.f32 %v833, %v771
  %v835 = vadd.f32 %v834, %v772
  %v836 = vadd.f32 %v835, %v773
  %v837 = vadd.f32 %v836, %v774
  %v838 = vadd.f32 %v837, %v775
  %v839 = vadd.f32 %v838, %v776
  %v840 = vadd.f32 %v839, %v777
  %v841 = vadd.f32 %v840, %v778
  %v842 = vadd.f32 %v841, %v779
  %v843 = vadd.f32 %v842, %v780
  %v844 = vadd.f32 %v843, %v781
  %v845 = vadd.f32 %v844, %v782
  %v846 = vadd.f32 %v845, %v783
  %v847 = vadd.f32 %v846, %v784
  %v848 = vadd.f32 %v847, %v785
  %v849 = vadd.f32 %v848, %v786
  %v850 = vadd.f32 %v849, %v787
  %v851 = vadd.f32 %v850, %v788
  %v852 = vadd.f32 %v851, %v789
  %v853 = vadd.f32 %v852, %v790
  %v854 = vadd.f32 %v853, %v791
  %v855 = vadd.f32 %v854, %v792
  %v856 = vadd.f32 %v855, %v793
  %v857 = vadd.f32 %v856, %v794
  %v858 = vadd.f32 %v857, %v795
  %v859 = vadd.f32 %v858, %v796
  %v860 = vadd.f32 %v859, %v797
  %v861 = vadd.f32 %v860, %v798
  %v862 = vadd.f32 %v861, %v799
  %v863 = vadd.f32 %v862, %v800
  %v864 = vadd.f32 %v863, %v801
  %v865 = vadd.f32 %v864, %v802
  %v866 = vadd.f32 %v865, %v803
  %v867 = vadd.f32 %v866, %v804
  %v868 = vadd.f32 %v867, %v805
  %v869 = vadd.f32 %v868, %v806
  %v870 = vadd.f32 %v869, %v807
  %v871 = vadd.f32 %v870, %v808
  %v872 = vadd.f32 %v871, %v809
  %v873 = vadd.f32 %v872, %v810
  %v874 = vadd.f32 %v873, %v811
  %v875 = vadd.f32 %v874, %v812
  %v876 = vadd.f32 %v875, %v813
  %v877 = vadd.f32 %v876, %v814
  %v878 = vadd.f32 %v877, %v815
  %v879 = vadd.f32 %v878, %v816
  %v880 = vadd.f32 %v879, %v817
  %v881 = vadd.f32 %v880, %v818
  %v882 = vadd.f32 %v881, %v819
  %v883 = vrot.slane %v882, 4
  %v884 = vadd.f32 %v882, %v883
  %v885 = vrot.slane %v884, 2
  %v886 = vadd.f32 %v884, %v885
  %v887 = vrot.slane %v886, 1
  %v888 = vadd.f32 %v886, %v887
  %vm889 = vcmask 1040384
  %v890 = vsel %vm889, %v755, %v888
  %891 = vst [vmem:[%s3] sm:$0x3] %v890
  // Predicated region
  $region10: #{basic_block_forward.8} parent=0 // pred_check
    _
  $region11: #{basic_block_forward.8} parent=0 // pred_check_branch
    %893 = sbr.rel (0) target = $region13
  $region12: #{basic_block_forward.8} parent=0 // pred_region
    _
  $region13: #{basic_block_forward.8} parent=0 // pred_fallthru
    _
  // Predicated region
  $region14: #{basic_block_forward.8} parent=0 // pred_check
    _
  $region15: #{basic_block_forward.8} parent=0 // pred_check_branch
    %895 = sbr.rel (0) target = $region17
  $region16: #{basic_block_forward.8} parent=0 // pred_region
    _
  $region17: #{basic_block_forward.8} parent=0 // pred_fallthru
    _
  // Predicated region
  $region18: #{basic_block_forward.8} parent=0 // pred_check
    _
  $region19: #{basic_block_forward.8} parent=0 // pred_check_branch
    %897 = sbr.rel (0) target = $region21
  $region20: #{basic_block_forward.8} parent=0 // pred_region
    _
  $region21: #{basic_block_forward.8} parent=0 // pred_fallthru
    _
  // Predicated region
  $region22: #{basic_block_forward.8} parent=0 // pred_check
    _
  $region23: #{basic_block_forward.8} parent=0 // pred_check_branch
    %899 = sbr.rel (0) target = $region25
  $region24: #{basic_block_forward.8} parent=0 // pred_region
    _
  $region25: #{basic_block_forward.8} parent=0 // pred_fallthru
    _

// kernel: basic_block_forward.9
$region0: #{basic_block_forward.9}
  #allocation0 [shape = 'u32[]', space=smem, size = 0x4, offset = 0x4, fixed_abs, tag = 'smem constant byte address 0x4 - core index']
  #allocation1 [shape = 'u32[144,128]{1,0:T(1,128)}', space=vmem, size = 0x12000, scoped, tag = 'internal scratch']
  #allocation2 [shape = 'f32[1,1]{1,0:T(1,128)S(6)}', space=smem, size = 0x200, scoped, tag = 'scoped memory for basic_block_forward.9']
  %s0 = inlined_call_operand.vmem [shape: f32[512,128], index: 0, kind: input, shape index: {}]
  %s1 = inlined_call_operand.vmem [shape: f32[512,128], index: 1, kind: input, shape index: {}]
  %s2 = inlined_call_operand.vmem [shape: f32[1,128], index: 2, kind: input, shape index: {}]
  %s3 = inlined_call_operand.vmem [shape: f32[1,128], index: 3, kind: input, shape index: {}]
  %s4 = inlined_call_operand.vmem [shape: f32[1,128], index: 4, kind: input, shape index: {}]
  %s5 = inlined_call_operand.vmem [shape: f32[1,128], index: 5, kind: input, shape index: {}]
  %s6 = inlined_call_operand.<no memory space> [shape: f32[1,1], index: 6, kind: input, shape index: {}]
  %s7 = inlined_call_operand.vmem [shape: f32[512,128], index: 7, kind: output, shape index: {}]
  %s8 = sld [smem:[#allocation0]]
  $region38: #{basic_block_forward.9} parent=0
    _
  %s10 = ssub.s32 1, %s8
  %s11 = scalar_select 0, %s10, %s8
  %12 = sst [smem:[#allocation2]] %s6
  // Predicated region
  $region2: #{basic_block_forward.9} parent=0 // pred_check
    _
  $region3: #{basic_block_forward.9} parent=0 // pred_check_branch
    %14 = sbr.rel (0) target = $region5
  $region4: #{basic_block_forward.9} parent=0 // pred_region
    _
  $region5: #{basic_block_forward.9} parent=0 // pred_fallthru
    _
  // Predicated region
  $region6: #{basic_block_forward.9} parent=0 // pred_check
    _
  $region7: #{basic_block_forward.9} parent=0 // pred_check_branch
    %16 = sbr.rel (0) target = $region9
  $region8: #{basic_block_forward.9} parent=0 // pred_region
    _
  $region9: #{basic_block_forward.9} parent=0 // pred_fallthru
    _
  // Predicated region
  $region10: #{basic_block_forward.9} parent=0 // pred_check
    _
  $region11: #{basic_block_forward.9} parent=0 // pred_check_branch
    %18 = sbr.rel (0) target = $region13
  $region12: #{basic_block_forward.9} parent=0 // pred_region
    _
  $region13: #{basic_block_forward.9} parent=0 // pred_fallthru
    _
  // Predicated region
  $region14: #{basic_block_forward.9} parent=0 // pred_check
    _
  $region15: #{basic_block_forward.9} parent=0 // pred_check_branch
    %20 = sbr.rel (0) target = $region17
  $region16: #{basic_block_forward.9} parent=0 // pred_region
    _
  $region17: #{basic_block_forward.9} parent=0 // pred_fallthru
    _
  // Predicated region
  $region18: #{basic_block_forward.9} parent=0 // pred_check
    _
  $region19: #{basic_block_forward.9} parent=0 // pred_check_branch
    %22 = sbr.rel (0) target = $region21
  $region20: #{basic_block_forward.9} parent=0 // pred_region
    _
  $region21: #{basic_block_forward.9} parent=0 // pred_fallthru
    _
  // Predicated region
  $region22: #{basic_block_forward.9} parent=0 // pred_check
    _
  $region23: #{basic_block_forward.9} parent=0 // pred_check_branch
    %24 = sbr.rel (0) target = $region25
  $region24: #{basic_block_forward.9} parent=0 // pred_region
    _
  $region25: #{basic_block_forward.9} parent=0 // pred_fallthru
    _
  // Predicated region
  $region26: #{basic_block_forward.9} parent=0 // pred_check
    _
  $region27: #{basic_block_forward.9} parent=0 // pred_check_branch
    %26 = sbr.rel (0) target = $region29
  $region28: #{basic_block_forward.9} parent=0 // pred_region
    _
  $region29: #{basic_block_forward.9} parent=0 // pred_fallthru
    _
  %v27 = vld [vmem:[%s0] sm:$0xff]
  %v28 = vld [vmem:[%s0 + $0x8] sm:$0xff]
  %v29 = vld [vmem:[%s0 + $0x10] sm:$0xff]
  %v30 = vld [vmem:[%s0 + $0x18] sm:$0xff]
  %v31 = vld [vmem:[%s0 + $0x20] sm:$0xff]
  %v32 = vld [vmem:[%s0 + $0x28] sm:$0xff]
  %v33 = vld [vmem:[%s0 + $0x30] sm:$0xff]
  %v34 = vld [vmem:[%s0 + $0x38] sm:$0xff]
  %v35 = vld [vmem:[%s0 + $0x40] sm:$0xff]
  %v36 = vld [vmem:[%s0 + $0x48] sm:$0xff]
  %v37 = vld [vmem:[%s0 + $0x50] sm:$0xff]
  %v38 = vld [vmem:[%s0 + $0x58] sm:$0xff]
  %v39 = vld [vmem:[%s0 + $0x60] sm:$0xff]
  %v40 = vld [vmem:[%s0 + $0x68] sm:$0xff]
  %v41 = vld [vmem:[%s0 + $0x70] sm:$0xff]
  %v42 = vld [vmem:[%s0 + $0x78] sm:$0xff]
  %v43 = vld [vmem:[%s0 + $0x80] sm:$0xff]
  %v44 = vld [vmem:[%s0 + $0x88] sm:$0xff]
  %v45 = vld [vmem:[%s0 + $0x90] sm:$0xff]
  %v46 = vld [vmem:[%s0 + $0x98] sm:$0xff]
  %v47 = vld [vmem:[%s0 + $0xa0] sm:$0xff]
  %v48 = vld [vmem:[%s0 + $0xa8] sm:$0xff]
  %v49 = vld [vmem:[%s0 + $0xb0] sm:$0xff]
  %v50 = vld [vmem:[%s0 + $0xb8] sm:$0xff]
  %v51 = vld [vmem:[%s0 + $0xc0] sm:$0xff]
  %v52 = vld [vmem:[%s0 + $0xc8] sm:$0xff]
  %v53 = vld [vmem:[%s0 + $0xd0] sm:$0xff]
  %v54 = vld [vmem:[%s0 + $0xd8] sm:$0xff]
  %v55 = vld [vmem:[%s0 + $0xe0] sm:$0xff]
  %v56 = vld [vmem:[%s0 + $0xe8] sm:$0xff]
  %v57 = vld [vmem:[%s0 + $0xf0] sm:$0xff]
  %v58 = vld [vmem:[%s0 + $0xf8] sm:$0xff]
  %v59 = vld [vmem:[%s0 + $0x100] sm:$0xff]
  %v60 = vld [vmem:[%s0 + $0x108] sm:$0xff]
  %v61 = vld [vmem:[%s0 + $0x110] sm:$0xff]
  %v62 = vld [vmem:[%s0 + $0x118] sm:$0xff]
  %v63 = vld [vmem:[%s0 + $0x120] sm:$0xff]
  %v64 = vld [vmem:[%s0 + $0x128] sm:$0xff]
  %v65 = vld [vmem:[%s0 + $0x130] sm:$0xff]
  %v66 = vld [vmem:[%s0 + $0x138] sm:$0xff]
  %v67 = vld [vmem:[%s0 + $0x140] sm:$0xff]
  %v68 = vld [vmem:[%s0 + $0x148] sm:$0xff]
  %v69 = vld [vmem:[%s0 + $0x150] sm:$0xff]
  %v70 = vld [vmem:[%s0 + $0x158] sm:$0xff]
  %v71 = vld [vmem:[%s0 + $0x160] sm:$0xff]
  %v72 = vld [vmem:[%s0 + $0x168] sm:$0xff]
  %v73 = vld [vmem:[%s0 + $0x170] sm:$0xff]
  %v74 = vld [vmem:[%s0 + $0x178] sm:$0xff]
  %v75 = vld [vmem:[%s0 + $0x180] sm:$0xff]
  %v76 = vld [vmem:[%s0 + $0x188] sm:$0xff]
  %v77 = vld [vmem:[%s0 + $0x190] sm:$0xff]
  %v78 = vld [vmem:[%s0 + $0x198] sm:$0xff]
  %v79 = vld [vmem:[%s0 + $0x1a0] sm:$0xff]
  %v80 = vld [vmem:[%s0 + $0x1a8] sm:$0xff]
  %v81 = vld [vmem:[%s0 + $0x1b0] sm:$0xff]
  %v82 = vld [vmem:[%s0 + $0x1b8] sm:$0xff]
  %v83 = vld [vmem:[%s0 + $0x1c0] sm:$0xff]
  %v84 = vld [vmem:[%s0 + $0x1c8] sm:$0xff]
  %v85 = vld [vmem:[%s0 + $0x1d0] sm:$0xff]
  %v86 = vld [vmem:[%s0 + $0x1d8] sm:$0xff]
  %v87 = vld [vmem:[%s0 + $0x1e0] sm:$0xff]
  %v88 = vld [vmem:[%s0 + $0x1e8] sm:$0xff]
  %v89 = vld [vmem:[%s0 + $0x1f0] sm:$0xff]
  %v90 = vld [vmem:[%s0 + $0x1f8] sm:$0xff]
  %v91 = vld [vmem:[%s2] sm:$0x1]
  %v93 = vlaneseq
  %v94 = vshrl.u32 %v93, 7
  %v95 = vsub.s32 0, %v94
  %v96 = vrot.slane %v91, %v95
  %v98 = vmul.f32 %v27, %v96
  %v99 = vmul.f32 %v28, %v96
  %v100 = vmul.f32 %v29, %v96
  %v101 = vmul.f32 %v30, %v96
  %v102 = vmul.f32 %v31, %v96
  %v103 = vmul.f32 %v32, %v96
  %v104 = vmul.f32 %v33, %v96
  %v105 = vmul.f32 %v34, %v96
  %v106 = vmul.f32 %v35, %v96
  %v107 = vmul.f32 %v36, %v96
  %v108 = vmul.f32 %v37, %v96
  %v109 = vmul.f32 %v38, %v96
  %v110 = vmul.f32 %v39, %v96
  %v111 = vmul.f32 %v40, %v96
  %v112 = vmul.f32 %v41, %v96
  %v113 = vmul.f32 %v42, %v96
  %v114 = vmul.f32 %v43, %v96
  %v115 = vmul.f32 %v44, %v96
  %v116 = vmul.f32 %v45, %v96
  %v117 = vmul.f32 %v46, %v96
  %v118 = vmul.f32 %v47, %v96
  %v119 = vmul.f32 %v48, %v96
  %v120 = vmul.f32 %v49, %v96
  %v121 = vmul.f32 %v50, %v96
  %v122 = vmul.f32 %v51, %v96
  %v123 = vmul.f32 %v52, %v96
  %v124 = vmul.f32 %v53, %v96
  %v125 = vmul.f32 %v54, %v96
  %v126 = vmul.f32 %v55, %v96
  %v127 = vmul.f32 %v56, %v96
  %v128 = vmul.f32 %v57, %v96
  %v129 = vmul.f32 %v58, %v96
  %v130 = vmul.f32 %v59, %v96
  %v131 = vmul.f32 %v60, %v96
  %v132 = vmul.f32 %v61, %v96
  %v133 = vmul.f32 %v62, %v96
  %v134 = vmul.f32 %v63, %v96
  %v135 = vmul.f32 %v64, %v96
  %v136 = vmul.f32 %v65, %v96
  %v137 = vmul.f32 %v66, %v96
  %v138 = vmul.f32 %v67, %v96
  %v139 = vmul.f32 %v68, %v96
  %v140 = vmul.f32 %v69, %v96
  %v141 = vmul.f32 %v70, %v96
  %v142 = vmul.f32 %v71, %v96
  %v143 = vmul.f32 %v72, %v96
  %v144 = vmul.f32 %v73, %v96
  %v145 = vmul.f32 %v74, %v96
  %v146 = vmul.f32 %v75, %v96
  %v147 = vmul.f32 %v76, %v96
  %v148 = vmul.f32 %v77, %v96
  %v149 = vmul.f32 %v78, %v96
  %v150 = vmul.f32 %v79, %v96
  %v151 = vmul.f32 %v80, %v96
  %v152 = vmul.f32 %v81, %v96
  %v153 = vmul.f32 %v82, %v96
  %v154 = vmul.f32 %v83, %v96
  %v155 = vmul.f32 %v84, %v96
  %v156 = vmul.f32 %v85, %v96
  %v157 = vmul.f32 %v86, %v96
  %v158 = vmul.f32 %v87, %v96
  %v159 = vmul.f32 %v88, %v96
  %v160 = vmul.f32 %v89, %v96
  %v161 = vmul.f32 %v90, %v96
  %v162 = vld [vmem:[%s3] sm:$0x1]
  %v164 = vlaneseq
  %v165 = vshrl.u32 %v164, 7
  %v166 = vsub.s32 0, %v165
  %v167 = vrot.slane %v162, %v166
  %v169 = vadd.f32 %v98, %v167
  %v170 = vadd.f32 %v99, %v167
  %v171 = vadd.f32 %v100, %v167
  %v172 = vadd.f32 %v101, %v167
  %v173 = vadd.f32 %v102, %v167
  %v174 = vadd.f32 %v103, %v167
  %v175 = vadd.f32 %v104, %v167
  %v176 = vadd.f32 %v105, %v167
  %v177 = vadd.f32 %v106, %v167
  %v178 = vadd.f32 %v107, %v167
  %v179 = vadd.f32 %v108, %v167
  %v180 = vadd.f32 %v109, %v167
  %v181 = vadd.f32 %v110, %v167
  %v182 = vadd.f32 %v111, %v167
  %v183 = vadd.f32 %v112, %v167
  %v184 = vadd.f32 %v113, %v167
  %v185 = vadd.f32 %v114, %v167
  %v186 = vadd.f32 %v115, %v167
  %v187 = vadd.f32 %v116, %v167
  %v188 = vadd.f32 %v117, %v167
  %v189 = vadd.f32 %v118, %v167
  %v190 = vadd.f32 %v119, %v167
  %v191 = vadd.f32 %v120, %v167
  %v192 = vadd.f32 %v121, %v167
  %v193 = vadd.f32 %v122, %v167
  %v194 = vadd.f32 %v123, %v167
  %v195 = vadd.f32 %v124, %v167
  %v196 = vadd.f32 %v125, %v167
  %v197 = vadd.f32 %v126, %v167
  %v198 = vadd.f32 %v127, %v167
  %v199 = vadd.f32 %v128, %v167
  %v200 = vadd.f32 %v129, %v167
  %v201 = vadd.f32 %v130, %v167
  %v202 = vadd.f32 %v131, %v167
  %v203 = vadd.f32 %v132, %v167
  %v204 = vadd.f32 %v133, %v167
  %v205 = vadd.f32 %v134, %v167
  %v206 = vadd.f32 %v135, %v167
  %v207 = vadd.f32 %v136, %v167
  %v208 = vadd.f32 %v137, %v167
  %v209 = vadd.f32 %v138, %v167
  %v210 = vadd.f32 %v139, %v167
  %v211 = vadd.f32 %v140, %v167
  %v212 = vadd.f32 %v141, %v167
  %v213 = vadd.f32 %v142, %v167
  %v214 = vadd.f32 %v143, %v167
  %v215 = vadd.f32 %v144, %v167
  %v216 = vadd.f32 %v145, %v167
  %v217 = vadd.f32 %v146, %v167
  %v218 = vadd.f32 %v147, %v167
  %v219 = vadd.f32 %v148, %v167
  %v220 = vadd.f32 %v149, %v167
  %v221 = vadd.f32 %v150, %v167
  %v222 = vadd.f32 %v151, %v167
  %v223 = vadd.f32 %v152, %v167
  %v224 = vadd.f32 %v153, %v167
  %v225 = vadd.f32 %v154, %v167
  %v226 = vadd.f32 %v155, %v167
  %v227 = vadd.f32 %v156, %v167
  %v228 = vadd.f32 %v157, %v167
  %v229 = vadd.f32 %v158, %v167
  %v230 = vadd.f32 %v159, %v167
  %v231 = vadd.f32 %v160, %v167
  %v232 = vadd.f32 %v161, %v167
  %v233 = vld [vmem:[%s1] sm:$0xff]
  %v234 = vld [vmem:[%s1 + $0x8] sm:$0xff]
  %v235 = vld [vmem:[%s1 + $0x10] sm:$0xff]
  %v236 = vld [vmem:[%s1 + $0x18] sm:$0xff]
  %v237 = vld [vmem:[%s1 + $0x20] sm:$0xff]
  %v238 = vld [vmem:[%s1 + $0x28] sm:$0xff]
  %v239 = vld [vmem:[%s1 + $0x30] sm:$0xff]
  %v240 = vld [vmem:[%s1 + $0x38] sm:$0xff]
  %v241 = vld [vmem:[%s1 + $0x40] sm:$0xff]
  %v242 = vld [vmem:[%s1 + $0x48] sm:$0xff]
  %v243 = vld [vmem:[%s1 + $0x50] sm:$0xff]
  %v244 = vld [vmem:[%s1 + $0x58] sm:$0xff]
  %v245 = vld [vmem:[%s1 + $0x60] sm:$0xff]
  %v246 = vld [vmem:[%s1 + $0x68] sm:$0xff]
  %v247 = vld [vmem:[%s1 + $0x70] sm:$0xff]
  %v248 = vld [vmem:[%s1 + $0x78] sm:$0xff]
  %v249 = vld [vmem:[%s1 + $0x80] sm:$0xff]
  %v250 = vld [vmem:[%s1 + $0x88] sm:$0xff]
  %v251 = vld [vmem:[%s1 + $0x90] sm:$0xff]
  %v252 = vld [vmem:[%s1 + $0x98] sm:$0xff]
  %v253 = vld [vmem:[%s1 + $0xa0] sm:$0xff]
  %v254 = vld [vmem:[%s1 + $0xa8] sm:$0xff]
  %v255 = vld [vmem:[%s1 + $0xb0] sm:$0xff]
  %v256 = vld [vmem:[%s1 + $0xb8] sm:$0xff]
  %v257 = vld [vmem:[%s1 + $0xc0] sm:$0xff]
  %v258 = vld [vmem:[%s1 + $0xc8] sm:$0xff]
  %v259 = vld [vmem:[%s1 + $0xd0] sm:$0xff]
  %v260 = vld [vmem:[%s1 + $0xd8] sm:$0xff]
  %v261 = vld [vmem:[%s1 + $0xe0] sm:$0xff]
  %v262 = vld [vmem:[%s1 + $0xe8] sm:$0xff]
  %v263 = vld [vmem:[%s1 + $0xf0] sm:$0xff]
  %v264 = vld [vmem:[%s1 + $0xf8] sm:$0xff]
  %v265 = vld [vmem:[%s1 + $0x100] sm:$0xff]
  %v266 = vld [vmem:[%s1 + $0x108] sm:$0xff]
  %v267 = vld [vmem:[%s1 + $0x110] sm:$0xff]
  %v268 = vld [vmem:[%s1 + $0x118] sm:$0xff]
  %v269 = vld [vmem:[%s1 + $0x120] sm:$0xff]
  %v270 = vld [vmem:[%s1 + $0x128] sm:$0xff]
  %v271 = vld [vmem:[%s1 + $0x130] sm:$0xff]
  %v272 = vld [vmem:[%s1 + $0x138] sm:$0xff]
  %v273 = vld [vmem:[%s1 + $0x140] sm:$0xff]
  %v274 = vld [vmem:[%s1 + $0x148] sm:$0xff]
  %v275 = vld [vmem:[%s1 + $0x150] sm:$0xff]
  %v276 = vld [vmem:[%s1 + $0x158] sm:$0xff]
  %v277 = vld [vmem:[%s1 + $0x160] sm:$0xff]
  %v278 = vld [vmem:[%s1 + $0x168] sm:$0xff]
  %v279 = vld [vmem:[%s1 + $0x170] sm:$0xff]
  %v280 = vld [vmem:[%s1 + $0x178] sm:$0xff]
  %v281 = vld [vmem:[%s1 + $0x180] sm:$0xff]
  %v282 = vld [vmem:[%s1 + $0x188] sm:$0xff]
  %v283 = vld [vmem:[%s1 + $0x190] sm:$0xff]
  %v284 = vld [vmem:[%s1 + $0x198] sm:$0xff]
  %v285 = vld [vmem:[%s1 + $0x1a0] sm:$0xff]
  %v286 = vld [vmem:[%s1 + $0x1a8] sm:$0xff]
  %v287 = vld [vmem:[%s1 + $0x1b0] sm:$0xff]
  %v288 = vld [vmem:[%s1 + $0x1b8] sm:$0xff]
  %v289 = vld [vmem:[%s1 + $0x1c0] sm:$0xff]
  %v290 = vld [vmem:[%s1 + $0x1c8] sm:$0xff]
  %v291 = vld [vmem:[%s1 + $0x1d0] sm:$0xff]
  %v292 = vld [vmem:[%s1 + $0x1d8] sm:$0xff]
  %v293 = vld [vmem:[%s1 + $0x1e0] sm:$0xff]
  %v294 = vld [vmem:[%s1 + $0x1e8] sm:$0xff]
  %v295 = vld [vmem:[%s1 + $0x1f0] sm:$0xff]
  %v296 = vld [vmem:[%s1 + $0x1f8] sm:$0xff]
  %v297 = vld [vmem:[%s4] sm:$0x1]
  %v299 = vlaneseq
  %v300 = vshrl.u32 %v299, 7
  %v301 = vsub.s32 0, %v300
  %v302 = vrot.slane %v297, %v301
  %v304 = vmul.f32 %v233, %v302
  %v305 = vmul.f32 %v234, %v302
  %v306 = vmul.f32 %v235, %v302
  %v307 = vmul.f32 %v236, %v302
  %v308 = vmul.f32 %v237, %v302
  %v309 = vmul.f32 %v238, %v302
  %v310 = vmul.f32 %v239, %v302
  %v311 = vmul.f32 %v240, %v302
  %v312 = vmul.f32 %v241, %v302
  %v313 = vmul.f32 %v242, %v302
  %v314 = vmul.f32 %v243, %v302
  %v315 = vmul.f32 %v244, %v302
  %v316 = vmul.f32 %v245, %v302
  %v317 = vmul.f32 %v246, %v302
  %v318 = vmul.f32 %v247, %v302
  %v319 = vmul.f32 %v248, %v302
  %v320 = vmul.f32 %v249, %v302
  %v321 = vmul.f32 %v250, %v302
  %v322 = vmul.f32 %v251, %v302
  %v323 = vmul.f32 %v252, %v302
  %v324 = vmul.f32 %v253, %v302
  %v325 = vmul.f32 %v254, %v302
  %v326 = vmul.f32 %v255, %v302
  %v327 = vmul.f32 %v256, %v302
  %v328 = vmul.f32 %v257, %v302
  %v329 = vmul.f32 %v258, %v302
  %v330 = vmul.f32 %v259, %v302
  %v331 = vmul.f32 %v260, %v302
  %v332 = vmul.f32 %v261, %v302
  %v333 = vmul.f32 %v262, %v302
  %v334 = vmul.f32 %v263, %v302
  %v335 = vmul.f32 %v264, %v302
  %v336 = vmul.f32 %v265, %v302
  %v337 = vmul.f32 %v266, %v302
  %v338 = vmul.f32 %v267, %v302
  %v339 = vmul.f32 %v268, %v302
  %v340 = vmul.f32 %v269, %v302
  %v341 = vmul.f32 %v270, %v302
  %v342 = vmul.f32 %v271, %v302
  %v343 = vmul.f32 %v272, %v302
  %v344 = vmul.f32 %v273, %v302
  %v345 = vmul.f32 %v274, %v302
  %v346 = vmul.f32 %v275, %v302
  %v347 = vmul.f32 %v276, %v302
  %v348 = vmul.f32 %v277, %v302
  %v349 = vmul.f32 %v278, %v302
  %v350 = vmul.f32 %v279, %v302
  %v351 = vmul.f32 %v280, %v302
  %v352 = vmul.f32 %v281, %v302
  %v353 = vmul.f32 %v282, %v302
  %v354 = vmul.f32 %v283, %v302
  %v355 = vmul.f32 %v284, %v302
  %v356 = vmul.f32 %v285, %v302
  %v357 = vmul.f32 %v286, %v302
  %v358 = vmul.f32 %v287, %v302
  %v359 = vmul.f32 %v288, %v302
  %v360 = vmul.f32 %v289, %v302
  %v361 = vmul.f32 %v290, %v302
  %v362 = vmul.f32 %v291, %v302
  %v363 = vmul.f32 %v292, %v302
  %v364 = vmul.f32 %v293, %v302
  %v365 = vmul.f32 %v294, %v302
  %v366 = vmul.f32 %v295, %v302
  %v367 = vmul.f32 %v296, %v302
  %v368 = vadd.f32 %v169, %v304
  %v369 = vadd.f32 %v170, %v305
  %v370 = vadd.f32 %v171, %v306
  %v371 = vadd.f32 %v172, %v307
  %v372 = vadd.f32 %v173, %v308
  %v373 = vadd.f32 %v174, %v309
  %v374 = vadd.f32 %v175, %v310
  %v375 = vadd.f32 %v176, %v311
  %v376 = vadd.f32 %v177, %v312
  %v377 = vadd.f32 %v178, %v313
  %v378 = vadd.f32 %v179, %v314
  %v379 = vadd.f32 %v180, %v315
  %v380 = vadd.f32 %v181, %v316
  %v381 = vadd.f32 %v182, %v317
  %v382 = vadd.f32 %v183, %v318
  %v383 = vadd.f32 %v184, %v319
  %v384 = vadd.f32 %v185, %v320
  %v385 = vadd.f32 %v186, %v321
  %v386 = vadd.f32 %v187, %v322
  %v387 = vadd.f32 %v188, %v323
  %v388 = vadd.f32 %v189, %v324
  %v389 = vadd.f32 %v190, %v325
  %v390 = vadd.f32 %v191, %v326
  %v391 = vadd.f32 %v192, %v327
  %v392 = vadd.f32 %v193, %v328
  %v393 = vadd.f32 %v194, %v329
  %v394 = vadd.f32 %v195, %v330
  %v395 = vadd.f32 %v196, %v331
  %v396 = vadd.f32 %v197, %v332
  %v397 = vadd.f32 %v198, %v333
  %v398 = vadd.f32 %v199, %v334
  %v399 = vadd.f32 %v200, %v335
  %v400 = vadd.f32 %v201, %v336
  %v401 = vadd.f32 %v202, %v337
  %v402 = vadd.f32 %v203, %v338
  %v403 = vadd.f32 %v204, %v339
  %v404 = vadd.f32 %v205, %v340
  %v405 = vadd.f32 %v206, %v341
  %v406 = vadd.f32 %v207, %v342
  %v407 = vadd.f32 %v208, %v343
  %v408 = vadd.f32 %v209, %v344
  %v409 = vadd.f32 %v210, %v345
  %v410 = vadd.f32 %v211, %v346
  %v411 = vadd.f32 %v212, %v347
  %v412 = vadd.f32 %v213, %v348
  %v413 = vadd.f32 %v214, %v349
  %v414 = vadd.f32 %v215, %v350
  %v415 = vadd.f32 %v216, %v351
  %v416 = vadd.f32 %v217, %v352
  %v417 = vadd.f32 %v218, %v353
  %v418 = vadd.f32 %v219, %v354
  %v419 = vadd.f32 %v220, %v355
  %v420 = vadd.f32 %v221, %v356
  %v421 = vadd.f32 %v222, %v357
  %v422 = vadd.f32 %v223, %v358
  %v423 = vadd.f32 %v224, %v359
  %v424 = vadd.f32 %v225, %v360
  %v425 = vadd.f32 %v226, %v361
  %v426 = vadd.f32 %v227, %v362
  %v427 = vadd.f32 %v228, %v363
  %v428 = vadd.f32 %v229, %v364
  %v429 = vadd.f32 %v230, %v365
  %v430 = vadd.f32 %v231, %v366
  %v431 = vadd.f32 %v232, %v367
  %v432 = vld [vmem:[%s5] sm:$0x1]
  %v434 = vlaneseq
  %v435 = vshrl.u32 %v434, 7
  %v436 = vsub.s32 0, %v435
  %v437 = vrot.slane %v432, %v436
  %v439 = vadd.f32 %v368, %v437
  %v440 = vadd.f32 %v369, %v437
  %v441 = vadd.f32 %v370, %v437
  %v442 = vadd.f32 %v371, %v437
  %v443 = vadd.f32 %v372, %v437
  %v444 = vadd.f32 %v373, %v437
  %v445 = vadd.f32 %v374, %v437
  %v446 = vadd.f32 %v375, %v437
  %v447 = vadd.f32 %v376, %v437
  %v448 = vadd.f32 %v377, %v437
  %v449 = vadd.f32 %v378, %v437
  %v450 = vadd.f32 %v379, %v437
  %v451 = vadd.f32 %v380, %v437
  %v452 = vadd.f32 %v381, %v437
  %v453 = vadd.f32 %v382, %v437
  %v454 = vadd.f32 %v383, %v437
  %v455 = vadd.f32 %v384, %v437
  %v456 = vadd.f32 %v385, %v437
  %v457 = vadd.f32 %v386, %v437
  %v458 = vadd.f32 %v387, %v437
  %v459 = vadd.f32 %v388, %v437
  %v460 = vadd.f32 %v389, %v437
  %v461 = vadd.f32 %v390, %v437
  %v462 = vadd.f32 %v391, %v437
  %v463 = vadd.f32 %v392, %v437
  %v464 = vadd.f32 %v393, %v437
  %v465 = vadd.f32 %v394, %v437
  %v466 = vadd.f32 %v395, %v437
  %v467 = vadd.f32 %v396, %v437
  %v468 = vadd.f32 %v397, %v437
  %v469 = vadd.f32 %v398, %v437
  %v470 = vadd.f32 %v399, %v437
  %v471 = vadd.f32 %v400, %v437
  %v472 = vadd.f32 %v401, %v437
  %v473 = vadd.f32 %v402, %v437
  %v474 = vadd.f32 %v403, %v437
  %v475 = vadd.f32 %v404, %v437
  %v476 = vadd.f32 %v405, %v437
  %v477 = vadd.f32 %v406, %v437
  %v478 = vadd.f32 %v407, %v437
  %v479 = vadd.f32 %v408, %v437
  %v480 = vadd.f32 %v409, %v437
  %v481 = vadd.f32 %v410, %v437
  %v482 = vadd.f32 %v411, %v437
  %v483 = vadd.f32 %v412, %v437
  %v484 = vadd.f32 %v413, %v437
  %v485 = vadd.f32 %v414, %v437
  %v486 = vadd.f32 %v415, %v437
  %v487 = vadd.f32 %v416, %v437
  %v488 = vadd.f32 %v417, %v437
  %v489 = vadd.f32 %v418, %v437
  %v490 = vadd.f32 %v419, %v437
  %v491 = vadd.f32 %v420, %v437
  %v492 = vadd.f32 %v421, %v437
  %v493 = vadd.f32 %v422, %v437
  %v494 = vadd.f32 %v423, %v437
  %v495 = vadd.f32 %v424, %v437
  %v496 = vadd.f32 %v425, %v437
  %v497 = vadd.f32 %v426, %v437
  %v498 = vadd.f32 %v427, %v437
  %v499 = vadd.f32 %v428, %v437
  %v500 = vadd.f32 %v429, %v437
  %v501 = vadd.f32 %v430, %v437
  %v502 = vadd.f32 %v431, %v437
  %s503 = sld [smem:[#allocation2]]
  %v504 = vand.u32 2147483647, %v439
  %v505 = vand.u32 2147483647, %v440
  %v506 = vand.u32 2147483647, %v441
  %v507 = vand.u32 2147483647, %v442
  %v508 = vand.u32 2147483647, %v443
  %v509 = vand.u32 2147483647, %v444
  %v510 = vand.u32 2147483647, %v445
  %v511 = vand.u32 2147483647, %v446
  %v512 = vand.u32 2147483647, %v447
  %v513 = vand.u32 2147483647, %v448
  %v514 = vand.u32 2147483647, %v449
  %v515 = vand.u32 2147483647, %v450
  %v516 = vand.u32 2147483647, %v451
  %v517 = vand.u32 2147483647, %v452
  %v518 = vand.u32 2147483647, %v453
  %v519 = vand.u32 2147483647, %v454
  %v520 = vand.u32 2147483647, %v455
  %v521 = vand.u32 2147483647, %v456
  %v522 = vand.u32 2147483647, %v457
  %v523 = vand.u32 2147483647, %v458
  %v524 = vand.u32 2147483647, %v459
  %v525 = vand.u32 2147483647, %v460
  %v526 = vand.u32 2147483647, %v461
  %v527 = vand.u32 2147483647, %v462
  %v528 = vand.u32 2147483647, %v463
  %v529 = vand.u32 2147483647, %v464
  %v530 = vand.u32 2147483647, %v465
  %v531 = vand.u32 2147483647, %v466
  %v532 = vand.u32 2147483647, %v467
  %v533 = vand.u32 2147483647, %v468
  %v534 = vand.u32 2147483647, %v469
  %v535 = vand.u32 2147483647, %v470
  %v536 = vand.u32 2147483647, %v471
  %v537 = vand.u32 2147483647, %v472
  %v538 = vand.u32 2147483647, %v473
  %v539 = vand.u32 2147483647, %v474
  %v540 = vand.u32 2147483647, %v475
  %v541 = vand.u32 2147483647, %v476
  %v542 = vand.u32 2147483647, %v477
  %v543 = vand.u32 2147483647, %v478
  %v544 = vand.u32 2147483647, %v479
  %v545 = vand.u32 2147483647, %v480
  %v546 = vand.u32 2147483647, %v481
  %v547 = vand.u32 2147483647, %v482
  %v548 = vand.u32 2147483647, %v483
  %v549 = vand.u32 2147483647, %v484
  %v550 = vand.u32 2147483647, %v485
  %v551 = vand.u32 2147483647, %v486
  %v552 = vand.u32 2147483647, %v487
  %v553 = vand.u32 2147483647, %v488
  %v554 = vand.u32 2147483647, %v489
  %v555 = vand.u32 2147483647, %v490
  %v556 = vand.u32 2147483647, %v491
  %v557 = vand.u32 2147483647, %v492
  %v558 = vand.u32 2147483647, %v493
  %v559 = vand.u32 2147483647, %v494
  %v560 = vand.u32 2147483647, %v495
  %v561 = vand.u32 2147483647, %v496
  %v562 = vand.u32 2147483647, %v497
  %v563 = vand.u32 2147483647, %v498
  %v564 = vand.u32 2147483647, %v499
  %v565 = vand.u32 2147483647, %v500
  %v566 = vand.u32 2147483647, %v501
  %v567 = vand.u32 2147483647, %v502
  %v568 = vstv %s503
  %v569 = vsub.f32 %v439, %v568
  %v570 = vsub.f32 %v440, %v568
  %v571 = vsub.f32 %v441, %v568
  %v572 = vsub.f32 %v442, %v568
  %v573 = vsub.f32 %v443, %v568
  %v574 = vsub.f32 %v444, %v568
  %v575 = vsub.f32 %v445, %v568
  %v576 = vsub.f32 %v446, %v568
  %v577 = vsub.f32 %v447, %v568
  %v578 = vsub.f32 %v448, %v568
  %v579 = vsub.f32 %v449, %v568
  %v580 = vsub.f32 %v450, %v568
  %v581 = vsub.f32 %v451, %v568
  %v582 = vsub.f32 %v452, %v568
  %v583 = vsub.f32 %v453, %v568
  %v584 = vsub.f32 %v454, %v568
  %v585 = vsub.f32 %v455, %v568
  %v586 = vsub.f32 %v456, %v568
  %v587 = vsub.f32 %v457, %v568
  %v588 = vsub.f32 %v458, %v568
  %v589 = vsub.f32 %v459, %v568
  %v590 = vsub.f32 %v460, %v568
  %v591 = vsub.f32 %v461, %v568
  %v592 = vsub.f32 %v462, %v568
  %v593 = vsub.f32 %v463, %v568
  %v594 = vsub.f32 %v464, %v568
  %v595 = vsub.f32 %v465, %v568
  %v596 = vsub.f32 %v466, %v568
  %v597 = vsub.f32 %v467, %v568
  %v598 = vsub.f32 %v468, %v568
  %v599 = vsub.f32 %v469, %v568
  %v600 = vsub.f32 %v470, %v568
  %v601 = vsub.f32 %v471, %v568
  %v602 = vsub.f32 %v472, %v568
  %v603 = vsub.f32 %v473, %v568
  %v604 = vsub.f32 %v474, %v568
  %v605 = vsub.f32 %v475, %v568
  %v606 = vsub.f32 %v476, %v568
  %v607 = vsub.f32 %v477, %v568
  %v608 = vsub.f32 %v478, %v568
  %v609 = vsub.f32 %v479, %v568
  %v610 = vsub.f32 %v480, %v568
  %v611 = vsub.f32 %v481, %v568
  %v612 = vsub.f32 %v482, %v568
  %v613 = vsub.f32 %v483, %v568
  %v614 = vsub.f32 %v484, %v568
  %v615 = vsub.f32 %v485, %v568
  %v616 = vsub.f32 %v486, %v568
  %v617 = vsub.f32 %v487, %v568
  %v618 = vsub.f32 %v488, %v568
  %v619 = vsub.f32 %v489, %v568
  %v620 = vsub.f32 %v490, %v568
  %v621 = vsub.f32 %v491, %v568
  %v622 = vsub.f32 %v492, %v568
  %v623 = vsub.f32 %v493, %v568
  %v624 = vsub.f32 %v494, %v568
  %v625 = vsub.f32 %v495, %v568
  %v626 = vsub.f32 %v496, %v568
  %v627 = vsub.f32 %v497, %v568
  %v628 = vsub.f32 %v498, %v568
  %v629 = vsub.f32 %v499, %v568
  %v630 = vsub.f32 %v500, %v568
  %v631 = vsub.f32 %v501, %v568
  %v632 = vsub.f32 %v502, %v568
  %v633 = vand.u32 2147483647, %v569
  %v634 = vand.u32 2147483647, %v570
  %v635 = vand.u32 2147483647, %v571
  %v636 = vand.u32 2147483647, %v572
  %v637 = vand.u32 2147483647, %v573
  %v638 = vand.u32 2147483647, %v574
  %v639 = vand.u32 2147483647, %v575
  %v640 = vand.u32 2147483647, %v576
  %v641 = vand.u32 2147483647, %v577
  %v642 = vand.u32 2147483647, %v578
  %v643 = vand.u32 2147483647, %v579
  %v644 = vand.u32 2147483647, %v580
  %v645 = vand.u32 2147483647, %v581
  %v646 = vand.u32 2147483647, %v582
  %v647 = vand.u32 2147483647, %v583
  %v648 = vand.u32 2147483647, %v584
  %v649 = vand.u32 2147483647, %v585
  %v650 = vand.u32 2147483647, %v586
  %v651 = vand.u32 2147483647, %v587
  %v652 = vand.u32 2147483647, %v588
  %v653 = vand.u32 2147483647, %v589
  %v654 = vand.u32 2147483647, %v590
  %v655 = vand.u32 2147483647, %v591
  %v656 = vand.u32 2147483647, %v592
  %v657 = vand.u32 2147483647, %v593
  %v658 = vand.u32 2147483647, %v594
  %v659 = vand.u32 2147483647, %v595
  %v660 = vand.u32 2147483647, %v596
  %v661 = vand.u32 2147483647, %v597
  %v662 = vand.u32 2147483647, %v598
  %v663 = vand.u32 2147483647, %v599
  %v664 = vand.u32 2147483647, %v600
  %v665 = vand.u32 2147483647, %v601
  %v666 = vand.u32 2147483647, %v602
  %v667 = vand.u32 2147483647, %v603
  %v668 = vand.u32 2147483647, %v604
  %v669 = vand.u32 2147483647, %v605
  %v670 = vand.u32 2147483647, %v606
  %v671 = vand.u32 2147483647, %v607
  %v672 = vand.u32 2147483647, %v608
  %v673 = vand.u32 2147483647, %v609
  %v674 = vand.u32 2147483647, %v610
  %v675 = vand.u32 2147483647, %v611
  %v676 = vand.u32 2147483647, %v612
  %v677 = vand.u32 2147483647, %v613
  %v678 = vand.u32 2147483647, %v614
  %v679 = vand.u32 2147483647, %v615
  %v680 = vand.u32 2147483647, %v616
  %v681 = vand.u32 2147483647, %v617
  %v682 = vand.u32 2147483647, %v618
  %v683 = vand.u32 2147483647, %v619
  %v684 = vand.u32 2147483647, %v620
  %v685 = vand.u32 2147483647, %v621
  %v686 = vand.u32 2147483647, %v622
  %v687 = vand.u32 2147483647, %v623
  %v688 = vand.u32 2147483647, %v624
  %v689 = vand.u32 2147483647, %v625
  %v690 = vand.u32 2147483647, %v626
  %v691 = vand.u32 2147483647, %v627
  %v692 = vand.u32 2147483647, %v628
  %v693 = vand.u32 2147483647, %v629
  %v694 = vand.u32 2147483647, %v630
  %v695 = vand.u32 2147483647, %v631
  %v696 = vand.u32 2147483647, %v632
  %v697 = vsub.f32 %v504, %v633
  %v698 = vsub.f32 %v505, %v634
  %v699 = vsub.f32 %v506, %v635
  %v700 = vsub.f32 %v507, %v636
  %v701 = vsub.f32 %v508, %v637
  %v702 = vsub.f32 %v509, %v638
  %v703 = vsub.f32 %v510, %v639
  %v704 = vsub.f32 %v511, %v640
  %v705 = vsub.f32 %v512, %v641
  %v706 = vsub.f32 %v513, %v642
  %v707 = vsub.f32 %v514, %v643
  %v708 = vsub.f32 %v515, %v644
  %v709 = vsub.f32 %v516, %v645
  %v710 = vsub.f32 %v517, %v646
  %v711 = vsub.f32 %v518, %v647
  %v712 = vsub.f32 %v519, %v648
  %v713 = vsub.f32 %v520, %v649
  %v714 = vsub.f32 %v521, %v650
  %v715 = vsub.f32 %v522, %v651
  %v716 = vsub.f32 %v523, %v652
  %v717 = vsub.f32 %v524, %v653
  %v718 = vsub.f32 %v525, %v654
  %v719 = vsub.f32 %v526, %v655
  %v720 = vsub.f32 %v527, %v656
  %v721 = vsub.f32 %v528, %v657
  %v722 = vsub.f32 %v529, %v658
  %v723 = vsub.f32 %v530, %v659
  %v724 = vsub.f32 %v531, %v660
  %v725 = vsub.f32 %v532, %v661
  %v726 = vsub.f32 %v533, %v662
  %v727 = vsub.f32 %v534, %v663
  %v728 = vsub.f32 %v535, %v664
  %v729 = vsub.f32 %v536, %v665
  %v730 = vsub.f32 %v537, %v666
  %v731 = vsub.f32 %v538, %v667
  %v732 = vsub.f32 %v539, %v668
  %v733 = vsub.f32 %v540, %v669
  %v734 = vsub.f32 %v541, %v670
  %v735 = vsub.f32 %v542, %v671
  %v736 = vsub.f32 %v543, %v672
  %v737 = vsub.f32 %v544, %v673
  %v738 = vsub.f32 %v545, %v674
  %v739 = vsub.f32 %v546, %v675
  %v740 = vsub.f32 %v547, %v676
  %v741 = vsub.f32 %v548, %v677
  %v742 = vsub.f32 %v549, %v678
  %v743 = vsub.f32 %v550, %v679
  %v744 = vsub.f32 %v551, %v680
  %v745 = vsub.f32 %v552, %v681
  %v746 = vsub.f32 %v553, %v682
  %v747 = vsub.f32 %v554, %v683
  %v748 = vsub.f32 %v555, %v684
  %v749 = vsub.f32 %v556, %v685
  %v750 = vsub.f32 %v557, %v686
  %v751 = vsub.f32 %v558, %v687
  %v752 = vsub.f32 %v559, %v688
  %v753 = vsub.f32 %v560, %v689
  %v754 = vsub.f32 %v561, %v690
  %v755 = vsub.f32 %v562, %v691
  %v756 = vsub.f32 %v563, %v692
  %v757 = vsub.f32 %v564, %v693
  %v758 = vsub.f32 %v565, %v694
  %v759 = vsub.f32 %v566, %v695
  %v760 = vsub.f32 %v567, %v696
  %v761 = vadd.f32 %v697, %v568
  %v762 = vadd.f32 %v698, %v568
  %v763 = vadd.f32 %v699, %v568
  %v764 = vadd.f32 %v700, %v568
  %v765 = vadd.f32 %v701, %v568
  %v766 = vadd.f32 %v702, %v568
  %v767 = vadd.f32 %v703, %v568
  %v768 = vadd.f32 %v704, %v568
  %v769 = vadd.f32 %v705, %v568
  %v770 = vadd.f32 %v706, %v568
  %v771 = vadd.f32 %v707, %v568
  %v772 = vadd.f32 %v708, %v568
  %v773 = vadd.f32 %v709, %v568
  %v774 = vadd.f32 %v710, %v568
  %v775 = vadd.f32 %v711, %v568
  %v776 = vadd.f32 %v712, %v568
  %v777 = vadd.f32 %v713, %v568
  %v778 = vadd.f32 %v714, %v568
  %v779 = vadd.f32 %v715, %v568
  %v780 = vadd.f32 %v716, %v568
  %v781 = vadd.f32 %v717, %v568
  %v782 = vadd.f32 %v718, %v568
  %v783 = vadd.f32 %v719, %v568
  %v784 = vadd.f32 %v720, %v568
  %v785 = vadd.f32 %v721, %v568
  %v786 = vadd.f32 %v722, %v568
  %v787 = vadd.f32 %v723, %v568
  %v788 = vadd.f32 %v724, %v568
  %v789 = vadd.f32 %v725, %v568
  %v790 = vadd.f32 %v726, %v568
  %v791 = vadd.f32 %v727, %v568
  %v792 = vadd.f32 %v728, %v568
  %v793 = vadd.f32 %v729, %v568
  %v794 = vadd.f32 %v730, %v568
  %v795 = vadd.f32 %v731, %v568
  %v796 = vadd.f32 %v732, %v568
  %v797 = vadd.f32 %v733, %v568
  %v798 = vadd.f32 %v734, %v568
  %v799 = vadd.f32 %v735, %v568
  %v800 = vadd.f32 %v736, %v568
  %v801 = vadd.f32 %v737, %v568
  %v802 = vadd.f32 %v738, %v568
  %v803 = vadd.f32 %v739, %v568
  %v804 = vadd.f32 %v740, %v568
  %v805 = vadd.f32 %v741, %v568
  %v806 = vadd.f32 %v742, %v568
  %v807 = vadd.f32 %v743, %v568
  %v808 = vadd.f32 %v744, %v568
  %v809 = vadd.f32 %v745, %v568
  %v810 = vadd.f32 %v746, %v568
  %v811 = vadd.f32 %v747, %v568
  %v812 = vadd.f32 %v748, %v568
  %v813 = vadd.f32 %v749, %v568
  %v814 = vadd.f32 %v750, %v568
  %v815 = vadd.f32 %v751, %v568
  %v816 = vadd.f32 %v752, %v568
  %v817 = vadd.f32 %v753, %v568
  %v818 = vadd.f32 %v754, %v568
  %v819 = vadd.f32 %v755, %v568
  %v820 = vadd.f32 %v756, %v568
  %v821 = vadd.f32 %v757, %v568
  %v822 = vadd.f32 %v758, %v568
  %v823 = vadd.f32 %v759, %v568
  %v824 = vadd.f32 %v760, %v568
  %v825 = vmul.f32 %v761, 0.5
  %v826 = vmul.f32 %v762, 0.5
  %v827 = vmul.f32 %v763, 0.5
  %v828 = vmul.f32 %v764, 0.5
  %v829 = vmul.f32 %v765, 0.5
  %v830 = vmul.f32 %v766, 0.5
  %v831 = vmul.f32 %v767, 0.5
  %v832 = vmul.f32 %v768, 0.5
  %v833 = vmul.f32 %v769, 0.5
  %v834 = vmul.f32 %v770, 0.5
  %v835 = vmul.f32 %v771, 0.5
  %v836 = vmul.f32 %v772, 0.5
  %v837 = vmul.f32 %v773, 0.5
  %v838 = vmul.f32 %v774, 0.5
  %v839 = vmul.f32 %v775, 0.5
  %v840 = vmul.f32 %v776, 0.5
  %v841 = vmul.f32 %v777, 0.5
  %v842 = vmul.f32 %v778, 0.5
  %v843 = vmul.f32 %v779, 0.5
  %v844 = vmul.f32 %v780, 0.5
  %v845 = vmul.f32 %v781, 0.5
  %v846 = vmul.f32 %v782, 0.5
  %v847 = vmul.f32 %v783, 0.5
  %v848 = vmul.f32 %v784, 0.5
  %v849 = vmul.f32 %v785, 0.5
  %v850 = vmul.f32 %v786, 0.5
  %v851 = vmul.f32 %v787, 0.5
  %v852 = vmul.f32 %v788, 0.5
  %v853 = vmul.f32 %v789, 0.5
  %v854 = vmul.f32 %v790, 0.5
  %v855 = vmul.f32 %v791, 0.5
  %v856 = vmul.f32 %v792, 0.5
  %v857 = vmul.f32 %v793, 0.5
  %v858 = vmul.f32 %v794, 0.5
  %v859 = vmul.f32 %v795, 0.5
  %v860 = vmul.f32 %v796, 0.5
  %v861 = vmul.f32 %v797, 0.5
  %v862 = vmul.f32 %v798, 0.5
  %v863 = vmul.f32 %v799, 0.5
  %v864 = vmul.f32 %v800, 0.5
  %v865 = vmul.f32 %v801, 0.5
  %v866 = vmul.f32 %v802, 0.5
  %v867 = vmul.f32 %v803, 0.5
  %v868 = vmul.f32 %v804, 0.5
  %v869 = vmul.f32 %v805, 0.5
  %v870 = vmul.f32 %v806, 0.5
  %v871 = vmul.f32 %v807, 0.5
  %v872 = vmul.f32 %v808, 0.5
  %v873 = vmul.f32 %v809, 0.5
  %v874 = vmul.f32 %v810, 0.5
  %v875 = vmul.f32 %v811, 0.5
  %v876 = vmul.f32 %v812, 0.5
  %v877 = vmul.f32 %v813, 0.5
  %v878 = vmul.f32 %v814, 0.5
  %v879 = vmul.f32 %v815, 0.5
  %v880 = vmul.f32 %v816, 0.5
  %v881 = vmul.f32 %v817, 0.5
  %v882 = vmul.f32 %v818, 0.5
  %v883 = vmul.f32 %v819, 0.5
  %v884 = vmul.f32 %v820, 0.5
  %v885 = vmul.f32 %v821, 0.5
  %v886 = vmul.f32 %v822, 0.5
  %v887 = vmul.f32 %v823, 0.5
  %v888 = vmul.f32 %v824, 0.5
  %v889 = vmax.f32 %v825, 0.0
  %v890 = vmax.f32 %v826, 0.0
  %v891 = vmax.f32 %v827, 0.0
  %v892 = vmax.f32 %v828, 0.0
  %v893 = vmax.f32 %v829, 0.0
  %v894 = vmax.f32 %v830, 0.0
  %v895 = vmax.f32 %v831, 0.0
  %v896 = vmax.f32 %v832, 0.0
  %v897 = vmax.f32 %v833, 0.0
  %v898 = vmax.f32 %v834, 0.0
  %v899 = vmax.f32 %v835, 0.0
  %v900 = vmax.f32 %v836, 0.0
  %v901 = vmax.f32 %v837, 0.0
  %v902 = vmax.f32 %v838, 0.0
  %v903 = vmax.f32 %v839, 0.0
  %v904 = vmax.f32 %v840, 0.0
  %v905 = vmax.f32 %v841, 0.0
  %v906 = vmax.f32 %v842, 0.0
  %v907 = vmax.f32 %v843, 0.0
  %v908 = vmax.f32 %v844, 0.0
  %v909 = vmax.f32 %v845, 0.0
  %v910 = vmax.f32 %v846, 0.0
  %v911 = vmax.f32 %v847, 0.0
  %v912 = vmax.f32 %v848, 0.0
  %v913 = vmax.f32 %v849, 0.0
  %v914 = vmax.f32 %v850, 0.0
  %v915 = vmax.f32 %v851, 0.0
  %v916 = vmax.f32 %v852, 0.0
  %v917 = vmax.f32 %v853, 0.0
  %v918 = vmax.f32 %v854, 0.0
  %v919 = vmax.f32 %v855, 0.0
  %v920 = vmax.f32 %v856, 0.0
  %v921 = vmax.f32 %v857, 0.0
  %v922 = vmax.f32 %v858, 0.0
  %v923 = vmax.f32 %v859, 0.0
  %v924 = vmax.f32 %v860, 0.0
  %v925 = vmax.f32 %v861, 0.0
  %v926 = vmax.f32 %v862, 0.0
  %v927 = vmax.f32 %v863, 0.0
  %v928 = vmax.f32 %v864, 0.0
  %v929 = vmax.f32 %v865, 0.0
  %v930 = vmax.f32 %v866, 0.0
  %v931 = vmax.f32 %v867, 0.0
  %v932 = vmax.f32 %v868, 0.0
  %v933 = vmax.f32 %v869, 0.0
  %v934 = vmax.f32 %v870, 0.0
  %v935 = vmax.f32 %v871, 0.0
  %v936 = vmax.f32 %v872, 0.0
  %v937 = vmax.f32 %v873, 0.0
  %v938 = vmax.f32 %v874, 0.0
  %v939 = vmax.f32 %v875, 0.0
  %v940 = vmax.f32 %v876, 0.0
  %v941 = vmax.f32 %v877, 0.0
  %v942 = vmax.f32 %v878, 0.0
  %v943 = vmax.f32 %v879, 0.0
  %v944 = vmax.f32 %v880, 0.0
  %v945 = vmax.f32 %v881, 0.0
  %v946 = vmax.f32 %v882, 0.0
  %v947 = vmax.f32 %v883, 0.0
  %v948 = vmax.f32 %v884, 0.0
  %v949 = vmax.f32 %v885, 0.0
  %v950 = vmax.f32 %v886, 0.0
  %v951 = vmax.f32 %v887, 0.0
  %v952 = vmax.f32 %v888, 0.0
  %953 = vst [vmem:[%s7] sm:$0xff] %v889
  %954 = vst [vmem:[%s7 + $0x8] sm:$0xff] %v890
  %955 = vst [vmem:[%s7 + $0x10] sm:$0xff] %v891
  %956 = vst [vmem:[%s7 + $0x18] sm:$0xff] %v892
  %957 = vst [vmem:[%s7 + $0x20] sm:$0xff] %v893
  %958 = vst [vmem:[%s7 + $0x28] sm:$0xff] %v894
  %959 = vst [vmem:[%s7 + $0x30] sm:$0xff] %v895
  %960 = vst [vmem:[%s7 + $0x38] sm:$0xff] %v896
  %961 = vst [vmem:[%s7 + $0x40] sm:$0xff] %v897
  %962 = vst [vmem:[%s7 + $0x48] sm:$0xff] %v898
  %963 = vst [vmem:[%s7 + $0x50] sm:$0xff] %v899
  %964 = vst [vmem:[%s7 + $0x58] sm:$0xff] %v900
  %965 = vst [vmem:[%s7 + $0x60] sm:$0xff] %v901
  %966 = vst [vmem:[%s7 + $0x68] sm:$0xff] %v902
  %967 = vst [vmem:[%s7 + $0x70] sm:$0xff] %v903
  %968 = vst [vmem:[%s7 + $0x78] sm:$0xff] %v904
  %969 = vst [vmem:[%s7 + $0x80] sm:$0xff] %v905
  %970 = vst [vmem:[%s7 + $0x88] sm:$0xff] %v906
  %971 = vst [vmem:[%s7 + $0x90] sm:$0xff] %v907
  %972 = vst [vmem:[%s7 + $0x98] sm:$0xff] %v908
  %973 = vst [vmem:[%s7 + $0xa0] sm:$0xff] %v909
  %974 = vst [vmem:[%s7 + $0xa8] sm:$0xff] %v910
  %975 = vst [vmem:[%s7 + $0xb0] sm:$0xff] %v911
  %976 = vst [vmem:[%s7 + $0xb8] sm:$0xff] %v912
  %977 = vst [vmem:[%s7 + $0xc0] sm:$0xff] %v913
  %978 = vst [vmem:[%s7 + $0xc8] sm:$0xff] %v914
  %979 = vst [vmem:[%s7 + $0xd0] sm:$0xff] %v915
  %980 = vst [vmem:[%s7 + $0xd8] sm:$0xff] %v916
  %981 = vst [vmem:[%s7 + $0xe0] sm:$0xff] %v917
  %982 = vst [vmem:[%s7 + $0xe8] sm:$0xff] %v918
  %983 = vst [vmem:[%s7 + $0xf0] sm:$0xff] %v919
  %984 = vst [vmem:[%s7 + $0xf8] sm:$0xff] %v920
  %985 = vst [vmem:[%s7 + $0x100] sm:$0xff] %v921
  %986 = vst [vmem:[%s7 + $0x108] sm:$0xff] %v922
  %987 = vst [vmem:[%s7 + $0x110] sm:$0xff] %v923
  %988 = vst [vmem:[%s7 + $0x118] sm:$0xff] %v924
  %989 = vst [vmem:[%s7 + $0x120] sm:$0xff] %v925
  %990 = vst [vmem:[%s7 + $0x128] sm:$0xff] %v926
  %991 = vst [vmem:[%s7 + $0x130] sm:$0xff] %v927
  %992 = vst [vmem:[%s7 + $0x138] sm:$0xff] %v928
  %993 = vst [vmem:[%s7 + $0x140] sm:$0xff] %v929
  %994 = vst [vmem:[%s7 + $0x148] sm:$0xff] %v930
  %995 = vst [vmem:[%s7 + $0x150] sm:$0xff] %v931
  %996 = vst [vmem:[%s7 + $0x158] sm:$0xff] %v932
  %997 = vst [vmem:[%s7 + $0x160] sm:$0xff] %v933
  %998 = vst [vmem:[%s7 + $0x168] sm:$0xff] %v934
  %999 = vst [vmem:[%s7 + $0x170] sm:$0xff] %v935
  %1000 = vst [vmem:[%s7 + $0x178] sm:$0xff] %v936
  %1001 = vst [vmem:[%s7 + $0x180] sm:$0xff] %v937
  %1002 = vst [vmem:[%s7 + $0x188] sm:$0xff] %v938
  %1003 = vst [vmem:[%s7 + $0x190] sm:$0xff] %v939
  %1004 = vst [vmem:[%s7 + $0x198] sm:$0xff] %v940
  %1005 = vst [vmem:[%s7 + $0x1a0] sm:$0xff] %v941
  %1006 = vst [vmem:[%s7 + $0x1a8] sm:$0xff] %v942
  %1007 = vst [vmem:[%s7 + $0x1b0] sm:$0xff] %v943
  %1008 = vst [vmem:[%s7 + $0x1b8] sm:$0xff] %v944
  %1009 = vst [vmem:[%s7 + $0x1c0] sm:$0xff] %v945
  %1010 = vst [vmem:[%s7 + $0x1c8] sm:$0xff] %v946
  %1011 = vst [vmem:[%s7 + $0x1d0] sm:$0xff] %v947
  %1012 = vst [vmem:[%s7 + $0x1d8] sm:$0xff] %v948
  %1013 = vst [vmem:[%s7 + $0x1e0] sm:$0xff] %v949
  %1014 = vst [vmem:[%s7 + $0x1e8] sm:$0xff] %v950
  %1015 = vst [vmem:[%s7 + $0x1f0] sm:$0xff] %v951
  %1016 = vst [vmem:[%s7 + $0x1f8] sm:$0xff] %v952
  // Predicated region
  $region30: #{basic_block_forward.9} parent=0 // pred_check
    _
  $region31: #{basic_block_forward.9} parent=0 // pred_check_branch
    %1018 = sbr.rel (0) target = $region33
  $region32: #{basic_block_forward.9} parent=0 // pred_region
    _
  $region33: #{basic_block_forward.9} parent=0 // pred_fallthru
    _
  // Predicated region
  $region34: #{basic_block_forward.9} parent=0 // pred_check
    _
  $region35: #{basic_block_forward.9} parent=0 // pred_check_branch
    %1020 = sbr.rel (0) target = $region37
  $region36: #{basic_block_forward.9} parent=0 // pred_region
    _
  $region37: #{basic_block_forward.9} parent=0 // pred_fallthru
    _

</llo_original>
